<compile_context>
chip_gen: v7x
topology: tpu7x:2x2x1
jax: 0.10.0
libtpu: 0.0.40
codegen_flags: <defaults>
</compile_context>

<pallas_src>
import jax
import jax.numpy as jnp
from jax.experimental import pallas as pl
from jax.experimental.pallas import tpu as pltpu

OUT_WIDTH = 128  # packed lane-dense output: [softmax probs | value | zero pad]


# --------------------------------------------------------------------------
# Fused per-image kernel factory.
# layer_cfg: per conv layer (h_in, cin, cout), with h_in the (square) input
# spatial size of that layer.  Activations use a flattened zero-padded grid
# layout per image: row = guard + py*(h+2) + px, minor = channels, where
# guard = h+3 zero rows on both ends so every shifted conv-tap slice stays in
# bounds.
# --------------------------------------------------------------------------
def _make_kernel(layer_cfg, action_num):
    n_layers = len(layer_cfg)
    n_in = 1 + 2 * n_layers + 4     # x0 + (w, b) per conv layer + (wa, ba, wpv, bpv)

    def kernel(*refs):
        x0_ref = refs[0]
        conv_refs = refs[1:1 + 2 * n_layers]
        wa_ref, ba_ref, wpv_ref, bpv_ref = refs[1 + 2 * n_layers:n_in]
        out_ref = refs[n_in]
        scratch = refs[n_in + 1:]
        x_scr = scratch[:n_layers - 1]   # pooled activations (inputs of layers 2..n)
        y_scr = scratch[n_layers - 1:]   # conv outputs (source of pooling gathers)

        src = x0_ref
        feat = None
        for l in range(n_layers):
            h, cin, cout = layer_cfg[l]
            wpad = h + 2
            pi = wpad * wpad            # rows of this layer's padded grid
            g = wpad + 1                # guard rows on each end of `src`
            w_ref = conv_refs[2 * l]    # (9*cin, cout) bf16
            b_ref = conv_refs[2 * l + 1]  # (1, cout) f32

            # ---- 3x3 'same' conv as ONE GEMM with K = 9*cin: the im2col LHS
            #      is the lane-axis concat of 9 statically shifted slices.
            taps = []
            for t in range(9):
                dy, dx = t // 3, t % 3
                off = g + (dy - 1) * wpad + (dx - 1)
                taps.append(src[off:off + pi, :])
            lhs = jnp.concatenate(taps, axis=1).astype(jnp.bfloat16)  # (pi, 9*cin)
            y = jnp.dot(lhs, w_ref[...], preferred_element_type=jnp.float32)
            y = jnp.maximum(y + b_ref[...], 0.0)   # bias + relu (relu commutes
            y_ref = y_scr[l]                       # with maxpool: both monotone)
            y_ref[...] = y

            # ---- 2x2/2 max-pool + re-layout: for every pooled output row,
            #      take the elementwise max of 4 stride-2 reads of the conv
            #      output and store it straight into the next layer's
            #      zero-padded (+ guard) buffer (or keep it as the feature).
            ho = h // 2
            if l + 1 < n_layers:
                xn = x_scr[l]
                xn[...] = jnp.zeros(xn.shape, xn.dtype)   # padding ring + guards
                wpad_n = ho + 2
                g_n = wpad_n + 1

            def rd(start, _y=y_ref, _ho=ho):
                if _ho > 1:
                    return _y[pl.ds(start, _ho, 2), :]    # stride-2 sublane read
                return _y[pl.ds(start, 1), :]

            for i in range(ho):
                s00 = (2 * i + 1) * wpad + 1
                m = jnp.maximum(jnp.maximum(rd(s00), rd(s00 + 1)),
                                jnp.maximum(rd(s00 + wpad), rd(s00 + wpad + 1)))
                if l + 1 < n_layers:
                    q0 = g_n + (i + 1) * wpad_n + 1
                    xn[q0:q0 + ho, :] = m
                else:
                    feat = m.astype(jnp.bfloat16)   # embed_size == 1 -> (1, cout)

            if l + 1 < n_layers:
                src = x_scr[l]

        # ---- head: affine + relu, then fused policy/value projection.
        hvec = jnp.dot(feat, wa_ref[...],
                       preferred_element_type=jnp.float32) + ba_ref[...]
        hvec = jnp.maximum(hvec, 0.0).astype(jnp.bfloat16)
        lv = jnp.dot(hvec, wpv_ref[...],
                     preferred_element_type=jnp.float32) + bpv_ref[...]  # (1, 128)

        lane = jax.lax.broadcasted_iota(jnp.int32, lv.shape, 1)
        valid = lane < action_num
        logits = jnp.where(valid, lv, -1e30)                  # mask padding lanes
        mx = jnp.max(logits, axis=-1, keepdims=True)
        e = jnp.where(valid, jnp.exp(logits - mx), 0.0)
        probs = e / jnp.sum(e, axis=-1, keepdims=True)        # f32 softmax
        # Single lane-dense 128-wide store: [probs | value | zeros].
        out_ref[...] = probs + jnp.where(lane == action_num, lv, 0.0)

    return kernel


# --------------------------------------------------------------------------
# Forward pass (wrapper: boundary glue only -- NCHW->NHWC, spatial zero pad,
# flatten, per-image guard rows, weight packing).  Returns (probs, value).
# --------------------------------------------------------------------------
def forward(params, x_nchw):
    convs = params["convs"]
    n_layers = len(convs)
    x = jnp.transpose(x_nchw, (0, 2, 3, 1)).astype(jnp.float32)  # NCHW -> NHWC
    N, H, W, Cin = x.shape
    assert H == W, "square maps only"
    assert (1 << n_layers) == H, (
        "this script supports embed_size == 1")  # TODO(synk): general embed_size

    # Per-image flattened zero-padded row layout with guard rows on both ends.
    g0 = W + 3
    xp = jnp.pad(x, ((0, 0), (1, 1), (1, 1), (0, 0)))
    xp = xp.reshape(N, (H + 2) * (W + 2), Cin)
    xp = jnp.pad(xp, ((0, 0), (g0, g0), (0, 0)))     # (N, rows_img, Cin) f32
    rows_img = xp.shape[1]

    args = [xp]
    in_specs = [pl.BlockSpec((None, rows_img, Cin), lambda b: (b, 0, 0))]
    layer_cfg, x_scratch, y_scratch = [], [], []
    flops = 0
    h, cin = H, Cin
    for l, (w9, b) in enumerate(convs):
        cin_l, cout = w9.shape[1], w9.shape[2]
        assert cin_l == cin
        wpad = h + 2
        pi = wpad * wpad
        layer_cfg.append((h, cin, cout))
        w2 = w9.reshape(9 * cin, cout).astype(jnp.bfloat16)   # K = 9*cin GEMM weight
        bb = b.reshape(1, cout).astype(jnp.float32)
        args += [w2, bb]
        in_specs += [pl.BlockSpec(w2.shape, lambda bidx: (0, 0)),
                     pl.BlockSpec(bb.shape, lambda bidx: (0, 0))]
        y_scratch.append(pltpu.VMEM((pi, cout), jnp.float32))
        flops += 2 * pi * (9 * cin) * cout
        ho = h // 2
        if l + 1 < n_layers:
            x_scratch.append(
                pltpu.VMEM(((ho + 2) * (ho + 2) + 2 * (ho + 3), cout), jnp.float32))
        h, cin = ho, cout

    wa, ba = params["affine"]
    w_pol, b_pol = params["policy"]
    w_val, b_val = params["value"]
    A = w_pol.shape[1]
    hidden = wa.shape[1]
    assert A + 1 <= OUT_WIDTH
    # Fused, lane-padded policy+value projection: cols [0:A) policy, col A value.
    wpv = jnp.zeros((hidden, OUT_WIDTH), jnp.float32)
    wpv = wpv.at[:, :A].set(w_pol).at[:, A].set(w_val[:, 0])
    bpv = jnp.zeros((OUT_WIDTH,), jnp.float32).at[:A].set(b_pol).at[A].set(b_val[0])
    head_args = [wa.astype(jnp.bfloat16), ba.reshape(1, -1).astype(jnp.float32),
                 wpv.astype(jnp.bfloat16), bpv.reshape(1, -1).astype(jnp.float32)]
    args += head_args
    in_specs += [pl.BlockSpec(a.shape, lambda bidx: (0, 0)) for a in head_args]
    flops += 2 * wa.shape[0] * hidden + 2 * hidden * OUT_WIDTH
    flops *= N
    bytes_accessed = sum(int(a.size) * a.dtype.itemsize for a in args) \
        + N * OUT_WIDTH * 4

    kernel = _make_kernel(tuple(layer_cfg), A)
    out = pl.pallas_call(
        kernel,
        out_shape=jax.ShapeDtypeStruct((N, 1, OUT_WIDTH), jnp.float32),
        grid=(N,),
        in_specs=in_specs,
        out_specs=pl.BlockSpec((None, 1, OUT_WIDTH), lambda b: (b, 0, 0)),
        scratch_shapes=x_scratch + y_scratch,
        compiler_params=pltpu.CompilerParams(
            dimension_semantics=("parallel",),        # v7x: batch across both TCs
            vmem_limit_bytes=32 * 1024 * 1024),
        cost_estimate=pl.CostEstimate(flops=int(flops),
                                      transcendentals=int(N * OUT_WIDTH),
                                      bytes_accessed=int(bytes_accessed)),
    )(*args)
    out = out.reshape(N, OUT_WIDTH)
    # TODO(synk): torch.distributions.Categorical has no Pallas equivalent; we
    # return its parameterizing probabilities instead.
    return out[:, :A], out[:, A:A + 1]


# --------------------------------------------------------------------------
# Pure-JAX reference (for a correctness check of the fused kernel).
# --------------------------------------------------------------------------
def forward_reference(params, x_nchw):
    x = x_nchw.astype(jnp.float32)
    for w9, b in params["convs"]:
        cin, cout = w9.shape[1], w9.shape[2]
        w4 = w9.reshape(3, 3, cin, cout)  # (ky, kx, cin, cout) = HWIO
        x = jax.lax.conv_general_dilated(
            x, w4, window_strides=(1, 1), padding="SAME",
            dimension_numbers=("NCHW", "HWIO", "NCHW")) + b.reshape(1, -1, 1, 1)
        x = jax.lax.reduce_window(x, -jnp.inf, jax.lax.max,
                                  (1, 1, 2, 2), (1, 1, 2, 2), "VALID")
        x = jnp.maximum(x, 0.0)
    feat = x.reshape(x.shape[0], -1)
    wa, ba = params["affine"]
    wp, bp = params["policy"]
    wv, bv = params["value"]
    hdn = jnp.maximum(feat @ wa + ba, 0.0)
    probs = jax.nn.softmax(hdn @ wp + bp, axis=-1)
    value = hdn @ wv + bv
    return probs, value


# --------------------------------------------------------------------------
# Deterministic parameter init (shapes follow ActorCriticPolicy.__init__).
# Conv weights are stored as (9, cin, cout) with tap order (dy*3 + dx); the
# torch equivalent mapping is weight.permute(2, 3, 1, 0).reshape(9, cin, cout).
# --------------------------------------------------------------------------
def init_params(key, in_channels, channels, hidden, action_num):
    ks = jax.random.split(key, 2 * len(channels) + 6)
    params = {"convs": []}
    cin = in_channels
    i = 0
    for cout in channels:
        w = jax.random.normal(ks[i], (3, 3, cin, cout), jnp.float32) * 0.1
        b = jax.random.normal(ks[i + 1], (cout,), jnp.float32) * 0.01
        params["convs"].append((w.reshape(9, cin, cout), b))
        cin = cout
        i += 2
    feat = channels[-1]  # * embed_size**2, with embed_size == 1
    params["affine"] = (jax.random.normal(ks[i], (feat, hidden), jnp.float32) * 0.1,
                        jax.random.normal(ks[i + 1], (hidden,), jnp.float32) * 0.01)
    params["policy"] = (jax.random.normal(ks[i + 2], (hidden, action_num),
                                          jnp.float32) * 0.1,
                        jax.random.normal(ks[i + 3], (action_num,),
                                          jnp.float32) * 0.01)
    params["value"] = (jax.random.normal(ks[i + 4], (hidden, 1), jnp.float32) * 0.1,
                       jax.random.normal(ks[i + 5], (1,), jnp.float32) * 0.01)
    return params


if __name__ == "__main__":
    # Small config consistent with the module: in_channels=4, map_size=16,
    # 4 conv layers [8, 16, 32, 64], pooling on, padding='same' => embed_size=1.
    in_channels, map_size = 4, 16
    channels = [8, 16, 32, 64]
    hidden, action_num = 32, 5

    key = jax.random.PRNGKey(0)
    kx, kp = jax.random.split(key)
    x = jax.random.normal(kx, (2, in_channels, map_size, map_size), jnp.float32)
    params = init_params(kp, in_channels, channels, hidden, action_num)

    probs, value = jax.jit(forward)(params, x)
    jax.block_until_ready((probs, value))

    assert probs.shape == (2, action_num) and value.shape == (2, 1)
    assert bool(jnp.all(jnp.abs(jnp.sum(probs, axis=-1) - 1.0) < 1e-4))

    # Numerical check against the plain-JAX reference (bf16 MXU operands in the
    # kernel => loose tolerance).
    ref_probs, ref_value = jax.jit(forward_reference)(params, x)
    assert bool(jnp.allclose(probs, ref_probs, atol=3e-2))
    assert bool(jnp.allclose(value, ref_value, atol=1e-1))

    print("KERNEL_OK")
</pallas_src>

<mosaic_0001>
module attributes {stable_mosaic.version = 11 : i64} {
  func.func @kernel(%arg0: i32, %arg1: memref<1x362x4xf32, #tpu.memory_space<vmem>>, %arg2: memref<36x8xbf16, #tpu.memory_space<vmem>>, %arg3: memref<1x8xf32, #tpu.memory_space<vmem>>, %arg4: memref<72x16xbf16, #tpu.memory_space<vmem>>, %arg5: memref<1x16xf32, #tpu.memory_space<vmem>>, %arg6: memref<144x32xbf16, #tpu.memory_space<vmem>>, %arg7: memref<1x32xf32, #tpu.memory_space<vmem>>, %arg8: memref<288x64xbf16, #tpu.memory_space<vmem>>, %arg9: memref<1x64xf32, #tpu.memory_space<vmem>>, %arg10: memref<64x32xbf16, #tpu.memory_space<vmem>>, %arg11: memref<1x32xf32, #tpu.memory_space<vmem>>, %arg12: memref<32x128xbf16, #tpu.memory_space<vmem>>, %arg13: memref<1x128xf32, #tpu.memory_space<vmem>>, %arg14: memref<1x1x128xf32, #tpu.memory_space<vmem>>, %arg15: memref<122x8xf32, #tpu.memory_space<vmem>>, %arg16: memref<50x16xf32, #tpu.memory_space<vmem>>, %arg17: memref<26x32xf32, #tpu.memory_space<vmem>>, %arg18: memref<324x8xf32, #tpu.memory_space<vmem>>, %arg19: memref<100x16xf32, #tpu.memory_space<vmem>>, %arg20: memref<36x32xf32, #tpu.memory_space<vmem>>, %arg21: memref<16x64xf32, #tpu.memory_space<vmem>>) attributes {dimension_semantics = [#tpu.dimension_semantics<parallel>], iteration_bounds = array<i64: 2>, scalar_prefetch = 0 : i64, scratch_operands = 7 : i64, tpu.core_type = #tpu.core_type<tc>, window_params = [{transform_indices = @transform_0, window_bounds = array<i64: 1, 362, 4>}, {pipeline_mode = #tpu.pipeline_mode<synchronous>, transform_indices = @transform_1, window_bounds = array<i64: 36, 8>}, {pipeline_mode = #tpu.pipeline_mode<synchronous>, transform_indices = @transform_2, window_bounds = array<i64: 1, 8>}, {pipeline_mode = #tpu.pipeline_mode<synchronous>, transform_indices = @transform_3, window_bounds = array<i64: 72, 16>}, {pipeline_mode = #tpu.pipeline_mode<synchronous>, transform_indices = @transform_4, window_bounds = array<i64: 1, 16>}, {pipeline_mode = #tpu.pipeline_mode<synchronous>, transform_indices = @transform_5, window_bounds = array<i64: 144, 32>}, {pipeline_mode = #tpu.pipeline_mode<synchronous>, transform_indices = @transform_6, window_bounds = array<i64: 1, 32>}, {pipeline_mode = #tpu.pipeline_mode<synchronous>, transform_indices = @transform_7, window_bounds = array<i64: 288, 64>}, {pipeline_mode = #tpu.pipeline_mode<synchronous>, transform_indices = @transform_8, window_bounds = array<i64: 1, 64>}, {pipeline_mode = #tpu.pipeline_mode<synchronous>, transform_indices = @transform_9, window_bounds = array<i64: 64, 32>}, {pipeline_mode = #tpu.pipeline_mode<synchronous>, transform_indices = @transform_10, window_bounds = array<i64: 1, 32>}, {pipeline_mode = #tpu.pipeline_mode<synchronous>, transform_indices = @transform_11, window_bounds = array<i64: 32, 128>}, {pipeline_mode = #tpu.pipeline_mode<synchronous>, transform_indices = @transform_12, window_bounds = array<i64: 1, 128>}, {transform_indices = @transform_13, window_bounds = array<i64: 1, 1, 128>}]} {
    %c0 = arith.constant 0 : index
    %c0_0 = arith.constant 0 : index
    %c0_1 = arith.constant 0 : index
    %0 = vector.load %arg1[%c0, %c0_0, %c0_1] : memref<1x362x4xf32, #tpu.memory_space<vmem>>, vector<1x324x4xf32>
    %1 = vector.shape_cast %0 : vector<1x324x4xf32> to vector<324x4xf32>
    %c0_2 = arith.constant 0 : index
    %c1 = arith.constant 1 : index
    %c0_3 = arith.constant 0 : index
    %2 = vector.load %arg1[%c0_2, %c1, %c0_3] : memref<1x362x4xf32, #tpu.memory_space<vmem>>, vector<1x324x4xf32>
    %3 = vector.shape_cast %2 : vector<1x324x4xf32> to vector<324x4xf32>
    %c0_4 = arith.constant 0 : index
    %c2 = arith.constant 2 : index
    %c0_5 = arith.constant 0 : index
    %4 = vector.load %arg1[%c0_4, %c2, %c0_5] : memref<1x362x4xf32, #tpu.memory_space<vmem>>, vector<1x324x4xf32>
    %5 = vector.shape_cast %4 : vector<1x324x4xf32> to vector<324x4xf32>
    %c0_6 = arith.constant 0 : index
    %c18 = arith.constant 18 : index
    %c0_7 = arith.constant 0 : index
    %6 = vector.load %arg1[%c0_6, %c18, %c0_7] : memref<1x362x4xf32, #tpu.memory_space<vmem>>, vector<1x324x4xf32>
    %7 = vector.shape_cast %6 : vector<1x324x4xf32> to vector<324x4xf32>
    %c0_8 = arith.constant 0 : index
    %c19 = arith.constant 19 : index
    %c0_9 = arith.constant 0 : index
    %8 = vector.load %arg1[%c0_8, %c19, %c0_9] : memref<1x362x4xf32, #tpu.memory_space<vmem>>, vector<1x324x4xf32>
    %9 = vector.shape_cast %8 : vector<1x324x4xf32> to vector<324x4xf32>
    %c0_10 = arith.constant 0 : index
    %c20 = arith.constant 20 : index
    %c0_11 = arith.constant 0 : index
    %10 = vector.load %arg1[%c0_10, %c20, %c0_11] : memref<1x362x4xf32, #tpu.memory_space<vmem>>, vector<1x324x4xf32>
    %11 = vector.shape_cast %10 : vector<1x324x4xf32> to vector<324x4xf32>
    %c0_12 = arith.constant 0 : index
    %c36 = arith.constant 36 : index
    %c0_13 = arith.constant 0 : index
    %12 = vector.load %arg1[%c0_12, %c36, %c0_13] : memref<1x362x4xf32, #tpu.memory_space<vmem>>, vector<1x324x4xf32>
    %13 = vector.shape_cast %12 : vector<1x324x4xf32> to vector<324x4xf32>
    %c0_14 = arith.constant 0 : index
    %c37 = arith.constant 37 : index
    %c0_15 = arith.constant 0 : index
    %14 = vector.load %arg1[%c0_14, %c37, %c0_15] : memref<1x362x4xf32, #tpu.memory_space<vmem>>, vector<1x324x4xf32>
    %15 = vector.shape_cast %14 : vector<1x324x4xf32> to vector<324x4xf32>
    %c0_16 = arith.constant 0 : index
    %c38 = arith.constant 38 : index
    %c0_17 = arith.constant 0 : index
    %16 = vector.load %arg1[%c0_16, %c38, %c0_17] : memref<1x362x4xf32, #tpu.memory_space<vmem>>, vector<1x324x4xf32>
    %17 = vector.shape_cast %16 : vector<1x324x4xf32> to vector<324x4xf32>
    %18 = tpu.concatenate %1, %3, %5, %7, %9, %11, %13, %15, %17 in 1 : vector<324x4xf32>, vector<324x4xf32>, vector<324x4xf32>, vector<324x4xf32>, vector<324x4xf32>, vector<324x4xf32>, vector<324x4xf32>, vector<324x4xf32>, vector<324x4xf32> -> vector<324x36xf32>
    %19 = arith.truncf %18 : vector<324x36xf32> to vector<324x36xbf16>
    %c0_18 = arith.constant 0 : index
    %c0_19 = arith.constant 0 : index
    %20 = vector.load %arg2[%c0_18, %c0_19] : memref<36x8xbf16, #tpu.memory_space<vmem>>, vector<36x8xbf16>
    %cst = arith.constant dense<0.000000e+00> : vector<324x8xf32>
    %21 = tpu.matmul %19, %20, %cst {dimension_numbers = #tpu.dot_dimension_numbers<[1], [0], [0], [1], [0, 0, 1, 1], [], []>} : vector<324x36xbf16>, vector<36x8xbf16>, vector<324x8xf32> -> vector<324x8xf32>
    %c0_20 = arith.constant 0 : index
    %c0_21 = arith.constant 0 : index
    %22 = vector.load %arg3[%c0_20, %c0_21] : memref<1x8xf32, #tpu.memory_space<vmem>>, vector<1x8xf32>
    %23 = vector.broadcast %22 : vector<1x8xf32> to vector<324x8xf32>
    %24 = arith.addf %21, %23 : vector<324x8xf32>
    %cst_22 = arith.constant 0.000000e+00 : f32
    %25 = vector.broadcast %cst_22 : f32 to vector<324x8xf32>
    %26 = arith.maximumf %24, %25 : vector<324x8xf32>
    %c0_23 = arith.constant 0 : index
    %c0_24 = arith.constant 0 : index
    %27 = vector.load %arg18[%c0_23, %c0_24] : memref<324x8xf32, #tpu.memory_space<vmem>>, vector<324x8xf32>
    tpu.vector_store %arg18[%c0_23, %c0_24], %26 {strides = array<i32>} : memref<324x8xf32, #tpu.memory_space<vmem>>, vector<324x8xf32>,
    %cst_25 = arith.constant 0.000000e+00 : f32
    %28 = vector.broadcast %cst_25 : f32 to vector<122x8xf32>
    %c0_26 = arith.constant 0 : index
    %c0_27 = arith.constant 0 : index
    %29 = vector.load %arg15[%c0_26, %c0_27] : memref<122x8xf32, #tpu.memory_space<vmem>>, vector<122x8xf32>
    tpu.vector_store %arg15[%c0_26, %c0_27], %28 {strides = array<i32>} : memref<122x8xf32, #tpu.memory_space<vmem>>, vector<122x8xf32>,
    %c19_28 = arith.constant 19 : index
    %c0_29 = arith.constant 0 : index
    %30 = tpu.strided_load %arg18[%c19_28, %c0_29] {strides = array<i32: 2, 1>} : memref<324x8xf32, #tpu.memory_space<vmem>>, vector<8x8xf32>
    %c20_30 = arith.constant 20 : index
    %c0_31 = arith.constant 0 : index
    %31 = tpu.strided_load %arg18[%c20_30, %c0_31] {strides = array<i32: 2, 1>} : memref<324x8xf32, #tpu.memory_space<vmem>>, vector<8x8xf32>
    %32 = arith.maximumf %30, %31 : vector<8x8xf32>
    %c37_32 = arith.constant 37 : index
    %c0_33 = arith.constant 0 : index
    %33 = tpu.strided_load %arg18[%c37_32, %c0_33] {strides = array<i32: 2, 1>} : memref<324x8xf32, #tpu.memory_space<vmem>>, vector<8x8xf32>
    %c38_34 = arith.constant 38 : index
    %c0_35 = arith.constant 0 : index
    %34 = tpu.strided_load %arg18[%c38_34, %c0_35] {strides = array<i32: 2, 1>} : memref<324x8xf32, #tpu.memory_space<vmem>>, vector<8x8xf32>
    %35 = arith.maximumf %33, %34 : vector<8x8xf32>
    %36 = arith.maximumf %32, %35 : vector<8x8xf32>
    %c22 = arith.constant 22 : index
    %c0_36 = arith.constant 0 : index
    %37 = vector.load %arg15[%c22, %c0_36] : memref<122x8xf32, #tpu.memory_space<vmem>>, vector<8x8xf32>
    tpu.vector_store %arg15[%c22, %c0_36], %36 {strides = array<i32>} : memref<122x8xf32, #tpu.memory_space<vmem>>, vector<8x8xf32>,
    %c55 = arith.constant 55 : index
    %c0_37 = arith.constant 0 : index
    %38 = tpu.strided_load %arg18[%c55, %c0_37] {strides = array<i32: 2, 1>} : memref<324x8xf32, #tpu.memory_space<vmem>>, vector<8x8xf32>
    %c56 = arith.constant 56 : index
    %c0_38 = arith.constant 0 : index
    %39 = tpu.strided_load %arg18[%c56, %c0_38] {strides = array<i32: 2, 1>} : memref<324x8xf32, #tpu.memory_space<vmem>>, vector<8x8xf32>
    %40 = arith.maximumf %38, %39 : vector<8x8xf32>
    %c73 = arith.constant 73 : index
    %c0_39 = arith.constant 0 : index
    %41 = tpu.strided_load %arg18[%c73, %c0_39] {strides = array<i32: 2, 1>} : memref<324x8xf32, #tpu.memory_space<vmem>>, vector<8x8xf32>
    %c74 = arith.constant 74 : index
    %c0_40 = arith.constant 0 : index
    %42 = tpu.strided_load %arg18[%c74, %c0_40] {strides = array<i32: 2, 1>} : memref<324x8xf32, #tpu.memory_space<vmem>>, vector<8x8xf32>
    %43 = arith.maximumf %41, %42 : vector<8x8xf32>
    %44 = arith.maximumf %40, %43 : vector<8x8xf32>
    %c32 = arith.constant 32 : index
    %c0_41 = arith.constant 0 : index
    %45 = vector.load %arg15[%c32, %c0_41] : memref<122x8xf32, #tpu.memory_space<vmem>>, vector<8x8xf32>
    tpu.vector_store %arg15[%c32, %c0_41], %44 {strides = array<i32>} : memref<122x8xf32, #tpu.memory_space<vmem>>, vector<8x8xf32>,
    %c91 = arith.constant 91 : index
    %c0_42 = arith.constant 0 : index
    %46 = tpu.strided_load %arg18[%c91, %c0_42] {strides = array<i32: 2, 1>} : memref<324x8xf32, #tpu.memory_space<vmem>>, vector<8x8xf32>
    %c92 = arith.constant 92 : index
    %c0_43 = arith.constant 0 : index
    %47 = tpu.strided_load %arg18[%c92, %c0_43] {strides = array<i32: 2, 1>} : memref<324x8xf32, #tpu.memory_space<vmem>>, vector<8x8xf32>
    %48 = arith.maximumf %46, %47 : vector<8x8xf32>
    %c109 = arith.constant 109 : index
    %c0_44 = arith.constant 0 : index
    %49 = tpu.strided_load %arg18[%c109, %c0_44] {strides = array<i32: 2, 1>} : memref<324x8xf32, #tpu.memory_space<vmem>>, vector<8x8xf32>
    %c110 = arith.constant 110 : index
    %c0_45 = arith.constant 0 : index
    %50 = tpu.strided_load %arg18[%c110, %c0_45] {strides = array<i32: 2, 1>} : memref<324x8xf32, #tpu.memory_space<vmem>>, vector<8x8xf32>
    %51 = arith.maximumf %49, %50 : vector<8x8xf32>
    %52 = arith.maximumf %48, %51 : vector<8x8xf32>
    %c42 = arith.constant 42 : index
    %c0_46 = arith.constant 0 : index
    %53 = vector.load %arg15[%c42, %c0_46] : memref<122x8xf32, #tpu.memory_space<vmem>>, vector<8x8xf32>
    tpu.vector_store %arg15[%c42, %c0_46], %52 {strides = array<i32>} : memref<122x8xf32, #tpu.memory_space<vmem>>, vector<8x8xf32>,
    %c127 = arith.constant 127 : index
    %c0_47 = arith.constant 0 : index
    %54 = tpu.strided_load %arg18[%c127, %c0_47] {strides = array<i32: 2, 1>} : memref<324x8xf32, #tpu.memory_space<vmem>>, vector<8x8xf32>
    %c128 = arith.constant 128 : index
    %c0_48 = arith.constant 0 : index
    %55 = tpu.strided_load %arg18[%c128, %c0_48] {strides = array<i32: 2, 1>} : memref<324x8xf32, #tpu.memory_space<vmem>>, vector<8x8xf32>
    %56 = arith.maximumf %54, %55 : vector<8x8xf32>
    %c145 = arith.constant 145 : index
    %c0_49 = arith.constant 0 : index
    %57 = tpu.strided_load %arg18[%c145, %c0_49] {strides = array<i32: 2, 1>} : memref<324x8xf32, #tpu.memory_space<vmem>>, vector<8x8xf32>
    %c146 = arith.constant 146 : index
    %c0_50 = arith.constant 0 : index
    %58 = tpu.strided_load %arg18[%c146, %c0_50] {strides = array<i32: 2, 1>} : memref<324x8xf32, #tpu.memory_space<vmem>>, vector<8x8xf32>
    %59 = arith.maximumf %57, %58 : vector<8x8xf32>
    %60 = arith.maximumf %56, %59 : vector<8x8xf32>
    %c52 = arith.constant 52 : index
    %c0_51 = arith.constant 0 : index
    %61 = vector.load %arg15[%c52, %c0_51] : memref<122x8xf32, #tpu.memory_space<vmem>>, vector<8x8xf32>
    tpu.vector_store %arg15[%c52, %c0_51], %60 {strides = array<i32>} : memref<122x8xf32, #tpu.memory_space<vmem>>, vector<8x8xf32>,
    %c163 = arith.constant 163 : index
    %c0_52 = arith.constant 0 : index
    %62 = tpu.strided_load %arg18[%c163, %c0_52] {strides = array<i32: 2, 1>} : memref<324x8xf32, #tpu.memory_space<vmem>>, vector<8x8xf32>
    %c164 = arith.constant 164 : index
    %c0_53 = arith.constant 0 : index
    %63 = tpu.strided_load %arg18[%c164, %c0_53] {strides = array<i32: 2, 1>} : memref<324x8xf32, #tpu.memory_space<vmem>>, vector<8x8xf32>
    %64 = arith.maximumf %62, %63 : vector<8x8xf32>
    %c181 = arith.constant 181 : index
    %c0_54 = arith.constant 0 : index
    %65 = tpu.strided_load %arg18[%c181, %c0_54] {strides = array<i32: 2, 1>} : memref<324x8xf32, #tpu.memory_space<vmem>>, vector<8x8xf32>
    %c182 = arith.constant 182 : index
    %c0_55 = arith.constant 0 : index
    %66 = tpu.strided_load %arg18[%c182, %c0_55] {strides = array<i32: 2, 1>} : memref<324x8xf32, #tpu.memory_space<vmem>>, vector<8x8xf32>
    %67 = arith.maximumf %65, %66 : vector<8x8xf32>
    %68 = arith.maximumf %64, %67 : vector<8x8xf32>
    %c62 = arith.constant 62 : index
    %c0_56 = arith.constant 0 : index
    %69 = vector.load %arg15[%c62, %c0_56] : memref<122x8xf32, #tpu.memory_space<vmem>>, vector<8x8xf32>
    tpu.vector_store %arg15[%c62, %c0_56], %68 {strides = array<i32>} : memref<122x8xf32, #tpu.memory_space<vmem>>, vector<8x8xf32>,
    %c199 = arith.constant 199 : index
    %c0_57 = arith.constant 0 : index
    %70 = tpu.strided_load %arg18[%c199, %c0_57] {strides = array<i32: 2, 1>} : memref<324x8xf32, #tpu.memory_space<vmem>>, vector<8x8xf32>
    %c200 = arith.constant 200 : index
    %c0_58 = arith.constant 0 : index
    %71 = tpu.strided_load %arg18[%c200, %c0_58] {strides = array<i32: 2, 1>} : memref<324x8xf32, #tpu.memory_space<vmem>>, vector<8x8xf32>
    %72 = arith.maximumf %70, %71 : vector<8x8xf32>
    %c217 = arith.constant 217 : index
    %c0_59 = arith.constant 0 : index
    %73 = tpu.strided_load %arg18[%c217, %c0_59] {strides = array<i32: 2, 1>} : memref<324x8xf32, #tpu.memory_space<vmem>>, vector<8x8xf32>
    %c218 = arith.constant 218 : index
    %c0_60 = arith.constant 0 : index
    %74 = tpu.strided_load %arg18[%c218, %c0_60] {strides = array<i32: 2, 1>} : memref<324x8xf32, #tpu.memory_space<vmem>>, vector<8x8xf32>
    %75 = arith.maximumf %73, %74 : vector<8x8xf32>
    %76 = arith.maximumf %72, %75 : vector<8x8xf32>
    %c72 = arith.constant 72 : index
    %c0_61 = arith.constant 0 : index
    %77 = vector.load %arg15[%c72, %c0_61] : memref<122x8xf32, #tpu.memory_space<vmem>>, vector<8x8xf32>
    tpu.vector_store %arg15[%c72, %c0_61], %76 {strides = array<i32>} : memref<122x8xf32, #tpu.memory_space<vmem>>, vector<8x8xf32>,
    %c235 = arith.constant 235 : index
    %c0_62 = arith.constant 0 : index
    %78 = tpu.strided_load %arg18[%c235, %c0_62] {strides = array<i32: 2, 1>} : memref<324x8xf32, #tpu.memory_space<vmem>>, vector<8x8xf32>
    %c236 = arith.constant 236 : index
    %c0_63 = arith.constant 0 : index
    %79 = tpu.strided_load %arg18[%c236, %c0_63] {strides = array<i32: 2, 1>} : memref<324x8xf32, #tpu.memory_space<vmem>>, vector<8x8xf32>
    %80 = arith.maximumf %78, %79 : vector<8x8xf32>
    %c253 = arith.constant 253 : index
    %c0_64 = arith.constant 0 : index
    %81 = tpu.strided_load %arg18[%c253, %c0_64] {strides = array<i32: 2, 1>} : memref<324x8xf32, #tpu.memory_space<vmem>>, vector<8x8xf32>
    %c254 = arith.constant 254 : index
    %c0_65 = arith.constant 0 : index
    %82 = tpu.strided_load %arg18[%c254, %c0_65] {strides = array<i32: 2, 1>} : memref<324x8xf32, #tpu.memory_space<vmem>>, vector<8x8xf32>
    %83 = arith.maximumf %81, %82 : vector<8x8xf32>
    %84 = arith.maximumf %80, %83 : vector<8x8xf32>
    %c82 = arith.constant 82 : index
    %c0_66 = arith.constant 0 : index
    %85 = vector.load %arg15[%c82, %c0_66] : memref<122x8xf32, #tpu.memory_space<vmem>>, vector<8x8xf32>
    tpu.vector_store %arg15[%c82, %c0_66], %84 {strides = array<i32>} : memref<122x8xf32, #tpu.memory_space<vmem>>, vector<8x8xf32>,
    %c271 = arith.constant 271 : index
    %c0_67 = arith.constant 0 : index
    %86 = tpu.strided_load %arg18[%c271, %c0_67] {strides = array<i32: 2, 1>} : memref<324x8xf32, #tpu.memory_space<vmem>>, vector<8x8xf32>
    %c272 = arith.constant 272 : index
    %c0_68 = arith.constant 0 : index
    %87 = tpu.strided_load %arg18[%c272, %c0_68] {strides = array<i32: 2, 1>} : memref<324x8xf32, #tpu.memory_space<vmem>>, vector<8x8xf32>
    %88 = arith.maximumf %86, %87 : vector<8x8xf32>
    %c289 = arith.constant 289 : index
    %c0_69 = arith.constant 0 : index
    %89 = tpu.strided_load %arg18[%c289, %c0_69] {strides = array<i32: 2, 1>} : memref<324x8xf32, #tpu.memory_space<vmem>>, vector<8x8xf32>
    %c290 = arith.constant 290 : index
    %c0_70 = arith.constant 0 : index
    %90 = tpu.strided_load %arg18[%c290, %c0_70] {strides = array<i32: 2, 1>} : memref<324x8xf32, #tpu.memory_space<vmem>>, vector<8x8xf32>
    %91 = arith.maximumf %89, %90 : vector<8x8xf32>
    %92 = arith.maximumf %88, %91 : vector<8x8xf32>
    %c92_71 = arith.constant 92 : index
    %c0_72 = arith.constant 0 : index
    %93 = vector.load %arg15[%c92_71, %c0_72] : memref<122x8xf32, #tpu.memory_space<vmem>>, vector<8x8xf32>
    tpu.vector_store %arg15[%c92_71, %c0_72], %92 {strides = array<i32>} : memref<122x8xf32, #tpu.memory_space<vmem>>, vector<8x8xf32>,
    %c0_73 = arith.constant 0 : index
    %c0_74 = arith.constant 0 : index
    %94 = vector.load %arg15[%c0_73, %c0_74] : memref<122x8xf32, #tpu.memory_space<vmem>>, vector<100x8xf32>
    %c1_75 = arith.constant 1 : index
    %c0_76 = arith.constant 0 : index
    %95 = vector.load %arg15[%c1_75, %c0_76] : memref<122x8xf32, #tpu.memory_space<vmem>>, vector<100x8xf32>
    %c2_77 = arith.constant 2 : index
    %c0_78 = arith.constant 0 : index
    %96 = vector.load %arg15[%c2_77, %c0_78] : memref<122x8xf32, #tpu.memory_space<vmem>>, vector<100x8xf32>
    %c10 = arith.constant 10 : index
    %c0_79 = arith.constant 0 : index
    %97 = vector.load %arg15[%c10, %c0_79] : memref<122x8xf32, #tpu.memory_space<vmem>>, vector<100x8xf32>
    %c11 = arith.constant 11 : index
    %c0_80 = arith.constant 0 : index
    %98 = vector.load %arg15[%c11, %c0_80] : memref<122x8xf32, #tpu.memory_space<vmem>>, vector<100x8xf32>
    %c12 = arith.constant 12 : index
    %c0_81 = arith.constant 0 : index
    %99 = vector.load %arg15[%c12, %c0_81] : memref<122x8xf32, #tpu.memory_space<vmem>>, vector<100x8xf32>
    %c20_82 = arith.constant 20 : index
    %c0_83 = arith.constant 0 : index
    %100 = vector.load %arg15[%c20_82, %c0_83] : memref<122x8xf32, #tpu.memory_space<vmem>>, vector<100x8xf32>
    %c21 = arith.constant 21 : index
    %c0_84 = arith.constant 0 : index
    %101 = vector.load %arg15[%c21, %c0_84] : memref<122x8xf32, #tpu.memory_space<vmem>>, vector<100x8xf32>
    %c22_85 = arith.constant 22 : index
    %c0_86 = arith.constant 0 : index
    %102 = vector.load %arg15[%c22_85, %c0_86] : memref<122x8xf32, #tpu.memory_space<vmem>>, vector<100x8xf32>
    %103 = tpu.concatenate %94, %95, %96, %97, %98, %99, %100, %101, %102 in 1 : vector<100x8xf32>, vector<100x8xf32>, vector<100x8xf32>, vector<100x8xf32>, vector<100x8xf32>, vector<100x8xf32>, vector<100x8xf32>, vector<100x8xf32>, vector<100x8xf32> -> vector<100x72xf32>
    %104 = arith.truncf %103 : vector<100x72xf32> to vector<100x72xbf16>
    %c0_87 = arith.constant 0 : index
    %c0_88 = arith.constant 0 : index
    %105 = vector.load %arg4[%c0_87, %c0_88] : memref<72x16xbf16, #tpu.memory_space<vmem>>, vector<72x16xbf16>
    %cst_89 = arith.constant dense<0.000000e+00> : vector<100x16xf32>
    %106 = tpu.matmul %104, %105, %cst_89 {dimension_numbers = #tpu.dot_dimension_numbers<[1], [0], [0], [1], [0, 0, 1, 1], [], []>} : vector<100x72xbf16>, vector<72x16xbf16>, vector<100x16xf32> -> vector<100x16xf32>
    %c0_90 = arith.constant 0 : index
    %c0_91 = arith.constant 0 : index
    %107 = vector.load %arg5[%c0_90, %c0_91] : memref<1x16xf32, #tpu.memory_space<vmem>>, vector<1x16xf32>
    %108 = vector.broadcast %107 : vector<1x16xf32> to vector<100x16xf32>
    %109 = arith.addf %106, %108 : vector<100x16xf32>
    %cst_92 = arith.constant 0.000000e+00 : f32
    %110 = vector.broadcast %cst_92 : f32 to vector<100x16xf32>
    %111 = arith.maximumf %109, %110 : vector<100x16xf32>
    %c0_93 = arith.constant 0 : index
    %c0_94 = arith.constant 0 : index
    %112 = vector.load %arg19[%c0_93, %c0_94] : memref<100x16xf32, #tpu.memory_space<vmem>>, vector<100x16xf32>
    tpu.vector_store %arg19[%c0_93, %c0_94], %111 {strides = array<i32>} : memref<100x16xf32, #tpu.memory_space<vmem>>, vector<100x16xf32>,
    %cst_95 = arith.constant 0.000000e+00 : f32
    %113 = vector.broadcast %cst_95 : f32 to vector<50x16xf32>
    %c0_96 = arith.constant 0 : index
    %c0_97 = arith.constant 0 : index
    %114 = vector.load %arg16[%c0_96, %c0_97] : memref<50x16xf32, #tpu.memory_space<vmem>>, vector<50x16xf32>
    tpu.vector_store %arg16[%c0_96, %c0_97], %113 {strides = array<i32>} : memref<50x16xf32, #tpu.memory_space<vmem>>, vector<50x16xf32>,
    %c11_98 = arith.constant 11 : index
    %c0_99 = arith.constant 0 : index
    %115 = tpu.strided_load %arg19[%c11_98, %c0_99] {strides = array<i32: 2, 1>} : memref<100x16xf32, #tpu.memory_space<vmem>>, vector<4x16xf32>
    %c12_100 = arith.constant 12 : index
    %c0_101 = arith.constant 0 : index
    %116 = tpu.strided_load %arg19[%c12_100, %c0_101] {strides = array<i32: 2, 1>} : memref<100x16xf32, #tpu.memory_space<vmem>>, vector<4x16xf32>
    %117 = arith.maximumf %115, %116 : vector<4x16xf32>
    %c21_102 = arith.constant 21 : index
    %c0_103 = arith.constant 0 : index
    %118 = tpu.strided_load %arg19[%c21_102, %c0_103] {strides = array<i32: 2, 1>} : memref<100x16xf32, #tpu.memory_space<vmem>>, vector<4x16xf32>
    %c22_104 = arith.constant 22 : index
    %c0_105 = arith.constant 0 : index
    %119 = tpu.strided_load %arg19[%c22_104, %c0_105] {strides = array<i32: 2, 1>} : memref<100x16xf32, #tpu.memory_space<vmem>>, vector<4x16xf32>
    %120 = arith.maximumf %118, %119 : vector<4x16xf32>
    %121 = arith.maximumf %117, %120 : vector<4x16xf32>
    %c14 = arith.constant 14 : index
    %c0_106 = arith.constant 0 : index
    %122 = vector.load %arg16[%c14, %c0_106] : memref<50x16xf32, #tpu.memory_space<vmem>>, vector<4x16xf32>
    tpu.vector_store %arg16[%c14, %c0_106], %121 {strides = array<i32>} : memref<50x16xf32, #tpu.memory_space<vmem>>, vector<4x16xf32>,
    %c31 = arith.constant 31 : index
    %c0_107 = arith.constant 0 : index
    %123 = tpu.strided_load %arg19[%c31, %c0_107] {strides = array<i32: 2, 1>} : memref<100x16xf32, #tpu.memory_space<vmem>>, vector<4x16xf32>
    %c32_108 = arith.constant 32 : index
    %c0_109 = arith.constant 0 : index
    %124 = tpu.strided_load %arg19[%c32_108, %c0_109] {strides = array<i32: 2, 1>} : memref<100x16xf32, #tpu.memory_space<vmem>>, vector<4x16xf32>
    %125 = arith.maximumf %123, %124 : vector<4x16xf32>
    %c41 = arith.constant 41 : index
    %c0_110 = arith.constant 0 : index
    %126 = tpu.strided_load %arg19[%c41, %c0_110] {strides = array<i32: 2, 1>} : memref<100x16xf32, #tpu.memory_space<vmem>>, vector<4x16xf32>
    %c42_111 = arith.constant 42 : index
    %c0_112 = arith.constant 0 : index
    %127 = tpu.strided_load %arg19[%c42_111, %c0_112] {strides = array<i32: 2, 1>} : memref<100x16xf32, #tpu.memory_space<vmem>>, vector<4x16xf32>
    %128 = arith.maximumf %126, %127 : vector<4x16xf32>
    %129 = arith.maximumf %125, %128 : vector<4x16xf32>
    %c20_113 = arith.constant 20 : index
    %c0_114 = arith.constant 0 : index
    %130 = vector.load %arg16[%c20_113, %c0_114] : memref<50x16xf32, #tpu.memory_space<vmem>>, vector<4x16xf32>
    tpu.vector_store %arg16[%c20_113, %c0_114], %129 {strides = array<i32>} : memref<50x16xf32, #tpu.memory_space<vmem>>, vector<4x16xf32>,
    %c51 = arith.constant 51 : index
    %c0_115 = arith.constant 0 : index
    %131 = tpu.strided_load %arg19[%c51, %c0_115] {strides = array<i32: 2, 1>} : memref<100x16xf32, #tpu.memory_space<vmem>>, vector<4x16xf32>
    %c52_116 = arith.constant 52 : index
    %c0_117 = arith.constant 0 : index
    %132 = tpu.strided_load %arg19[%c52_116, %c0_117] {strides = array<i32: 2, 1>} : memref<100x16xf32, #tpu.memory_space<vmem>>, vector<4x16xf32>
    %133 = arith.maximumf %131, %132 : vector<4x16xf32>
    %c61 = arith.constant 61 : index
    %c0_118 = arith.constant 0 : index
    %134 = tpu.strided_load %arg19[%c61, %c0_118] {strides = array<i32: 2, 1>} : memref<100x16xf32, #tpu.memory_space<vmem>>, vector<4x16xf32>
    %c62_119 = arith.constant 62 : index
    %c0_120 = arith.constant 0 : index
    %135 = tpu.strided_load %arg19[%c62_119, %c0_120] {strides = array<i32: 2, 1>} : memref<100x16xf32, #tpu.memory_space<vmem>>, vector<4x16xf32>
    %136 = arith.maximumf %134, %135 : vector<4x16xf32>
    %137 = arith.maximumf %133, %136 : vector<4x16xf32>
    %c26 = arith.constant 26 : index
    %c0_121 = arith.constant 0 : index
    %138 = vector.load %arg16[%c26, %c0_121] : memref<50x16xf32, #tpu.memory_space<vmem>>, vector<4x16xf32>
    tpu.vector_store %arg16[%c26, %c0_121], %137 {strides = array<i32>} : memref<50x16xf32, #tpu.memory_space<vmem>>, vector<4x16xf32>,
    %c71 = arith.constant 71 : index
    %c0_122 = arith.constant 0 : index
    %139 = tpu.strided_load %arg19[%c71, %c0_122] {strides = array<i32: 2, 1>} : memref<100x16xf32, #tpu.memory_space<vmem>>, vector<4x16xf32>
    %c72_123 = arith.constant 72 : index
    %c0_124 = arith.constant 0 : index
    %140 = tpu.strided_load %arg19[%c72_123, %c0_124] {strides = array<i32: 2, 1>} : memref<100x16xf32, #tpu.memory_space<vmem>>, vector<4x16xf32>
    %141 = arith.maximumf %139, %140 : vector<4x16xf32>
    %c81 = arith.constant 81 : index
    %c0_125 = arith.constant 0 : index
    %142 = tpu.strided_load %arg19[%c81, %c0_125] {strides = array<i32: 2, 1>} : memref<100x16xf32, #tpu.memory_space<vmem>>, vector<4x16xf32>
    %c82_126 = arith.constant 82 : index
    %c0_127 = arith.constant 0 : index
    %143 = tpu.strided_load %arg19[%c82_126, %c0_127] {strides = array<i32: 2, 1>} : memref<100x16xf32, #tpu.memory_space<vmem>>, vector<4x16xf32>
    %144 = arith.maximumf %142, %143 : vector<4x16xf32>
    %145 = arith.maximumf %141, %144 : vector<4x16xf32>
    %c32_128 = arith.constant 32 : index
    %c0_129 = arith.constant 0 : index
    %146 = vector.load %arg16[%c32_128, %c0_129] : memref<50x16xf32, #tpu.memory_space<vmem>>, vector<4x16xf32>
    tpu.vector_store %arg16[%c32_128, %c0_129], %145 {strides = array<i32>} : memref<50x16xf32, #tpu.memory_space<vmem>>, vector<4x16xf32>,
    %c0_130 = arith.constant 0 : index
    %c0_131 = arith.constant 0 : index
    %147 = vector.load %arg16[%c0_130, %c0_131] : memref<50x16xf32, #tpu.memory_space<vmem>>, vector<36x16xf32>
    %c1_132 = arith.constant 1 : index
    %c0_133 = arith.constant 0 : index
    %148 = vector.load %arg16[%c1_132, %c0_133] : memref<50x16xf32, #tpu.memory_space<vmem>>, vector<36x16xf32>
    %c2_134 = arith.constant 2 : index
    %c0_135 = arith.constant 0 : index
    %149 = vector.load %arg16[%c2_134, %c0_135] : memref<50x16xf32, #tpu.memory_space<vmem>>, vector<36x16xf32>
    %c6 = arith.constant 6 : index
    %c0_136 = arith.constant 0 : index
    %150 = vector.load %arg16[%c6, %c0_136] : memref<50x16xf32, #tpu.memory_space<vmem>>, vector<36x16xf32>
    %c7 = arith.constant 7 : index
    %c0_137 = arith.constant 0 : index
    %151 = vector.load %arg16[%c7, %c0_137] : memref<50x16xf32, #tpu.memory_space<vmem>>, vector<36x16xf32>
    %c8 = arith.constant 8 : index
    %c0_138 = arith.constant 0 : index
    %152 = vector.load %arg16[%c8, %c0_138] : memref<50x16xf32, #tpu.memory_space<vmem>>, vector<36x16xf32>
    %c12_139 = arith.constant 12 : index
    %c0_140 = arith.constant 0 : index
    %153 = vector.load %arg16[%c12_139, %c0_140] : memref<50x16xf32, #tpu.memory_space<vmem>>, vector<36x16xf32>
    %c13 = arith.constant 13 : index
    %c0_141 = arith.constant 0 : index
    %154 = vector.load %arg16[%c13, %c0_141] : memref<50x16xf32, #tpu.memory_space<vmem>>, vector<36x16xf32>
    %c14_142 = arith.constant 14 : index
    %c0_143 = arith.constant 0 : index
    %155 = vector.load %arg16[%c14_142, %c0_143] : memref<50x16xf32, #tpu.memory_space<vmem>>, vector<36x16xf32>
    %156 = tpu.concatenate %147, %148, %149, %150, %151, %152, %153, %154, %155 in 1 : vector<36x16xf32>, vector<36x16xf32>, vector<36x16xf32>, vector<36x16xf32>, vector<36x16xf32>, vector<36x16xf32>, vector<36x16xf32>, vector<36x16xf32>, vector<36x16xf32> -> vector<36x144xf32>
    %157 = arith.truncf %156 : vector<36x144xf32> to vector<36x144xbf16>
    %c0_144 = arith.constant 0 : index
    %c0_145 = arith.constant 0 : index
    %158 = vector.load %arg6[%c0_144, %c0_145] : memref<144x32xbf16, #tpu.memory_space<vmem>>, vector<144x32xbf16>
    %cst_146 = arith.constant dense<0.000000e+00> : vector<36x32xf32>
    %159 = tpu.matmul %157, %158, %cst_146 {dimension_numbers = #tpu.dot_dimension_numbers<[1], [0], [0], [1], [0, 0, 1, 1], [], []>} : vector<36x144xbf16>, vector<144x32xbf16>, vector<36x32xf32> -> vector<36x32xf32>
    %c0_147 = arith.constant 0 : index
    %c0_148 = arith.constant 0 : index
    %160 = vector.load %arg7[%c0_147, %c0_148] : memref<1x32xf32, #tpu.memory_space<vmem>>, vector<1x32xf32>
    %161 = vector.broadcast %160 : vector<1x32xf32> to vector<36x32xf32>
    %162 = arith.addf %159, %161 : vector<36x32xf32>
    %cst_149 = arith.constant 0.000000e+00 : f32
    %163 = vector.broadcast %cst_149 : f32 to vector<36x32xf32>
    %164 = arith.maximumf %162, %163 : vector<36x32xf32>
    %c0_150 = arith.constant 0 : index
    %c0_151 = arith.constant 0 : index
    %165 = vector.load %arg20[%c0_150, %c0_151] : memref<36x32xf32, #tpu.memory_space<vmem>>, vector<36x32xf32>
    tpu.vector_store %arg20[%c0_150, %c0_151], %164 {strides = array<i32>} : memref<36x32xf32, #tpu.memory_space<vmem>>, vector<36x32xf32>,
    %cst_152 = arith.constant 0.000000e+00 : f32
    %166 = vector.broadcast %cst_152 : f32 to vector<26x32xf32>
    %c0_153 = arith.constant 0 : index
    %c0_154 = arith.constant 0 : index
    %167 = vector.load %arg17[%c0_153, %c0_154] : memref<26x32xf32, #tpu.memory_space<vmem>>, vector<26x32xf32>
    tpu.vector_store %arg17[%c0_153, %c0_154], %166 {strides = array<i32>} : memref<26x32xf32, #tpu.memory_space<vmem>>, vector<26x32xf32>,
    %c7_155 = arith.constant 7 : index
    %c0_156 = arith.constant 0 : index
    %168 = tpu.strided_load %arg20[%c7_155, %c0_156] {strides = array<i32: 2, 1>} : memref<36x32xf32, #tpu.memory_space<vmem>>, vector<2x32xf32>
    %c8_157 = arith.constant 8 : index
    %c0_158 = arith.constant 0 : index
    %169 = tpu.strided_load %arg20[%c8_157, %c0_158] {strides = array<i32: 2, 1>} : memref<36x32xf32, #tpu.memory_space<vmem>>, vector<2x32xf32>
    %170 = arith.maximumf %168, %169 : vector<2x32xf32>
    %c13_159 = arith.constant 13 : index
    %c0_160 = arith.constant 0 : index
    %171 = tpu.strided_load %arg20[%c13_159, %c0_160] {strides = array<i32: 2, 1>} : memref<36x32xf32, #tpu.memory_space<vmem>>, vector<2x32xf32>
    %c14_161 = arith.constant 14 : index
    %c0_162 = arith.constant 0 : index
    %172 = tpu.strided_load %arg20[%c14_161, %c0_162] {strides = array<i32: 2, 1>} : memref<36x32xf32, #tpu.memory_space<vmem>>, vector<2x32xf32>
    %173 = arith.maximumf %171, %172 : vector<2x32xf32>
    %174 = arith.maximumf %170, %173 : vector<2x32xf32>
    %c10_163 = arith.constant 10 : index
    %c0_164 = arith.constant 0 : index
    %175 = vector.load %arg17[%c10_163, %c0_164] : memref<26x32xf32, #tpu.memory_space<vmem>>, vector<2x32xf32>
    tpu.vector_store %arg17[%c10_163, %c0_164], %174 {strides = array<i32>} : memref<26x32xf32, #tpu.memory_space<vmem>>, vector<2x32xf32>,
    %c19_165 = arith.constant 19 : index
    %c0_166 = arith.constant 0 : index
    %176 = tpu.strided_load %arg20[%c19_165, %c0_166] {strides = array<i32: 2, 1>} : memref<36x32xf32, #tpu.memory_space<vmem>>, vector<2x32xf32>
    %c20_167 = arith.constant 20 : index
    %c0_168 = arith.constant 0 : index
    %177 = tpu.strided_load %arg20[%c20_167, %c0_168] {strides = array<i32: 2, 1>} : memref<36x32xf32, #tpu.memory_space<vmem>>, vector<2x32xf32>
    %178 = arith.maximumf %176, %177 : vector<2x32xf32>
    %c25 = arith.constant 25 : index
    %c0_169 = arith.constant 0 : index
    %179 = tpu.strided_load %arg20[%c25, %c0_169] {strides = array<i32: 2, 1>} : memref<36x32xf32, #tpu.memory_space<vmem>>, vector<2x32xf32>
    %c26_170 = arith.constant 26 : index
    %c0_171 = arith.constant 0 : index
    %180 = tpu.strided_load %arg20[%c26_170, %c0_171] {strides = array<i32: 2, 1>} : memref<36x32xf32, #tpu.memory_space<vmem>>, vector<2x32xf32>
    %181 = arith.maximumf %179, %180 : vector<2x32xf32>
    %182 = arith.maximumf %178, %181 : vector<2x32xf32>
    %c14_172 = arith.constant 14 : index
    %c0_173 = arith.constant 0 : index
    %183 = vector.load %arg17[%c14_172, %c0_173] : memref<26x32xf32, #tpu.memory_space<vmem>>, vector<2x32xf32>
    tpu.vector_store %arg17[%c14_172, %c0_173], %182 {strides = array<i32>} : memref<26x32xf32, #tpu.memory_space<vmem>>, vector<2x32xf32>,
    %c0_174 = arith.constant 0 : index
    %c0_175 = arith.constant 0 : index
    %184 = vector.load %arg17[%c0_174, %c0_175] : memref<26x32xf32, #tpu.memory_space<vmem>>, vector<16x32xf32>
    %c1_176 = arith.constant 1 : index
    %c0_177 = arith.constant 0 : index
    %185 = vector.load %arg17[%c1_176, %c0_177] : memref<26x32xf32, #tpu.memory_space<vmem>>, vector<16x32xf32>
    %c2_178 = arith.constant 2 : index
    %c0_179 = arith.constant 0 : index
    %186 = vector.load %arg17[%c2_178, %c0_179] : memref<26x32xf32, #tpu.memory_space<vmem>>, vector<16x32xf32>
    %c4 = arith.constant 4 : index
    %c0_180 = arith.constant 0 : index
    %187 = vector.load %arg17[%c4, %c0_180] : memref<26x32xf32, #tpu.memory_space<vmem>>, vector<16x32xf32>
    %c5 = arith.constant 5 : index
    %c0_181 = arith.constant 0 : index
    %188 = vector.load %arg17[%c5, %c0_181] : memref<26x32xf32, #tpu.memory_space<vmem>>, vector<16x32xf32>
    %c6_182 = arith.constant 6 : index
    %c0_183 = arith.constant 0 : index
    %189 = vector.load %arg17[%c6_182, %c0_183] : memref<26x32xf32, #tpu.memory_space<vmem>>, vector<16x32xf32>
    %c8_184 = arith.constant 8 : index
    %c0_185 = arith.constant 0 : index
    %190 = vector.load %arg17[%c8_184, %c0_185] : memref<26x32xf32, #tpu.memory_space<vmem>>, vector<16x32xf32>
    %c9 = arith.constant 9 : index
    %c0_186 = arith.constant 0 : index
    %191 = vector.load %arg17[%c9, %c0_186] : memref<26x32xf32, #tpu.memory_space<vmem>>, vector<16x32xf32>
    %c10_187 = arith.constant 10 : index
    %c0_188 = arith.constant 0 : index
    %192 = vector.load %arg17[%c10_187, %c0_188] : memref<26x32xf32, #tpu.memory_space<vmem>>, vector<16x32xf32>
    %193 = tpu.concatenate %184, %185, %186, %187, %188, %189, %190, %191, %192 in 1 : vector<16x32xf32>, vector<16x32xf32>, vector<16x32xf32>, vector<16x32xf32>, vector<16x32xf32>, vector<16x32xf32>, vector<16x32xf32>, vector<16x32xf32>, vector<16x32xf32> -> vector<16x288xf32>
    %194 = arith.truncf %193 : vector<16x288xf32> to vector<16x288xbf16>
    %c0_189 = arith.constant 0 : index
    %c0_190 = arith.constant 0 : index
    %195 = vector.load %arg8[%c0_189, %c0_190] : memref<288x64xbf16, #tpu.memory_space<vmem>>, vector<288x64xbf16>
    %cst_191 = arith.constant dense<0.000000e+00> : vector<16x64xf32>
    %196 = tpu.matmul %194, %195, %cst_191 {dimension_numbers = #tpu.dot_dimension_numbers<[1], [0], [0], [1], [0, 0, 1, 1], [], []>} : vector<16x288xbf16>, vector<288x64xbf16>, vector<16x64xf32> -> vector<16x64xf32>
    %c0_192 = arith.constant 0 : index
    %c0_193 = arith.constant 0 : index
    %197 = vector.load %arg9[%c0_192, %c0_193] : memref<1x64xf32, #tpu.memory_space<vmem>>, vector<1x64xf32>
    %198 = vector.broadcast %197 : vector<1x64xf32> to vector<16x64xf32>
    %199 = arith.addf %196, %198 : vector<16x64xf32>
    %cst_194 = arith.constant 0.000000e+00 : f32
    %200 = vector.broadcast %cst_194 : f32 to vector<16x64xf32>
    %201 = arith.maximumf %199, %200 : vector<16x64xf32>
    %c0_195 = arith.constant 0 : index
    %c0_196 = arith.constant 0 : index
    %202 = vector.load %arg21[%c0_195, %c0_196] : memref<16x64xf32, #tpu.memory_space<vmem>>, vector<16x64xf32>
    tpu.vector_store %arg21[%c0_195, %c0_196], %201 {strides = array<i32>} : memref<16x64xf32, #tpu.memory_space<vmem>>, vector<16x64xf32>,
    %c5_197 = arith.constant 5 : index
    %c0_198 = arith.constant 0 : index
    %203 = vector.load %arg21[%c5_197, %c0_198] : memref<16x64xf32, #tpu.memory_space<vmem>>, vector<1x64xf32>
    %c6_199 = arith.constant 6 : index
    %c0_200 = arith.constant 0 : index
    %204 = vector.load %arg21[%c6_199, %c0_200] : memref<16x64xf32, #tpu.memory_space<vmem>>, vector<1x64xf32>
    %205 = arith.maximumf %203, %204 : vector<1x64xf32>
    %c9_201 = arith.constant 9 : index
    %c0_202 = arith.constant 0 : index
    %206 = vector.load %arg21[%c9_201, %c0_202] : memref<16x64xf32, #tpu.memory_space<vmem>>, vector<1x64xf32>
    %c10_203 = arith.constant 10 : index
    %c0_204 = arith.constant 0 : index
    %207 = vector.load %arg21[%c10_203, %c0_204] : memref<16x64xf32, #tpu.memory_space<vmem>>, vector<1x64xf32>
    %208 = arith.maximumf %206, %207 : vector<1x64xf32>
    %209 = arith.maximumf %205, %208 : vector<1x64xf32>
    %210 = arith.truncf %209 : vector<1x64xf32> to vector<1x64xbf16>
    %c0_205 = arith.constant 0 : index
    %c0_206 = arith.constant 0 : index
    %211 = vector.load %arg10[%c0_205, %c0_206] : memref<64x32xbf16, #tpu.memory_space<vmem>>, vector<64x32xbf16>
    %cst_207 = arith.constant dense<0.000000e+00> : vector<1x32xf32>
    %212 = tpu.matmul %210, %211, %cst_207 {dimension_numbers = #tpu.dot_dimension_numbers<[1], [0], [0], [1], [0, 0, 1, 1], [], []>} : vector<1x64xbf16>, vector<64x32xbf16>, vector<1x32xf32> -> vector<1x32xf32>
    %c0_208 = arith.constant 0 : index
    %c0_209 = arith.constant 0 : index
    %213 = vector.load %arg11[%c0_208, %c0_209] : memref<1x32xf32, #tpu.memory_space<vmem>>, vector<1x32xf32>
    %214 = arith.addf %212, %213 : vector<1x32xf32>
    %cst_210 = arith.constant 0.000000e+00 : f32
    %215 = vector.broadcast %cst_210 : f32 to vector<1x32xf32>
    %216 = arith.maximumf %214, %215 : vector<1x32xf32>
    %217 = arith.truncf %216 : vector<1x32xf32> to vector<1x32xbf16>
    %c0_211 = arith.constant 0 : index
    %c0_212 = arith.constant 0 : index
    %218 = vector.load %arg12[%c0_211, %c0_212] : memref<32x128xbf16, #tpu.memory_space<vmem>>, vector<32x128xbf16>
    %cst_213 = arith.constant dense<0.000000e+00> : vector<1x128xf32>
    %219 = tpu.matmul %217, %218, %cst_213 {dimension_numbers = #tpu.dot_dimension_numbers<[1], [0], [0], [1], [0, 0, 1, 1], [], []>} : vector<1x32xbf16>, vector<32x128xbf16>, vector<1x128xf32> -> vector<1x128xf32>
    %c0_214 = arith.constant 0 : index
    %c0_215 = arith.constant 0 : index
    %220 = vector.load %arg13[%c0_214, %c0_215] : memref<1x128xf32, #tpu.memory_space<vmem>>, vector<1x128xf32>
    %221 = arith.addf %219, %220 : vector<1x128xf32>
    %222 = tpu.iota {dimensions = array<i32: 1>} : vector<1x128xi32>
    %c5_i32 = arith.constant 5 : i32
    %223 = vector.broadcast %c5_i32 : i32 to vector<1x128xi32>
    %224 = arith.cmpi slt, %222, %223 : vector<1x128xi32>
    %cst_216 = arith.constant -1.000000e+30 : f32
    %225 = vector.broadcast %cst_216 : f32 to vector<1x128xf32>
    %226 = arith.select %224, %221, %225 : vector<1x128xi1>, vector<1x128xf32>
    %cst_217 = arith.constant dense<0xFF800000> : vector<1xf32>
    %227 = vector.multi_reduction <maximumf>, %226, %cst_217 [1] : vector<1x128xf32> to vector<1xf32>
    %228 = vector.shape_cast %227 : vector<1xf32> to vector<1x1xf32>
    %229 = vector.broadcast %228 : vector<1x1xf32> to vector<1x128xf32>
    %230 = arith.subf %226, %229 : vector<1x128xf32>
    %231 = math.exp %230 : vector<1x128xf32>
    %cst_218 = arith.constant 0.000000e+00 : f32
    %232 = vector.broadcast %cst_218 : f32 to vector<1x128xf32>
    %233 = arith.select %224, %231, %232 : vector<1x128xi1>, vector<1x128xf32>
    %cst_219 = arith.constant dense<0.000000e+00> : vector<1xf32>
    %234 = vector.multi_reduction <add>, %233, %cst_219 [1] : vector<1x128xf32> to vector<1xf32>
    %235 = vector.shape_cast %234 : vector<1xf32> to vector<1x1xf32>
    %236 = vector.broadcast %235 : vector<1x1xf32> to vector<1x128xf32>
    %237 = arith.divf %233, %236 : vector<1x128xf32>
    %c5_i32_220 = arith.constant 5 : i32
    %238 = vector.broadcast %c5_i32_220 : i32 to vector<1x128xi32>
    %239 = arith.cmpi eq, %222, %238 : vector<1x128xi32>
    %cst_221 = arith.constant 0.000000e+00 : f32
    %240 = vector.broadcast %cst_221 : f32 to vector<1x128xf32>
    %241 = arith.select %239, %221, %240 : vector<1x128xi1>, vector<1x128xf32>
    %242 = arith.addf %237, %241 : vector<1x128xf32>
    %c0_222 = arith.constant 0 : index
    %c0_223 = arith.constant 0 : index
    %c0_224 = arith.constant 0 : index
    %243 = vector.load %arg14[%c0_222, %c0_223, %c0_224] : memref<1x1x128xf32, #tpu.memory_space<vmem>>, vector<1x1x128xf32>
    %244 = vector.shape_cast %243 : vector<1x1x128xf32> to vector<1x128xf32>
    %245 = vector.shape_cast %242 : vector<1x128xf32> to vector<1x1x128xf32>
    tpu.vector_store %arg14[%c0_222, %c0_223, %c0_224], %245 {strides = array<i32>} : memref<1x1x128xf32, #tpu.memory_space<vmem>>, vector<1x1x128xf32>,
    return
  }
  func.func @transform_0(%arg0: i32) -> (i32, i32, i32) {
    %c0_i32 = arith.constant 0 : i32
    %c0_i32_0 = arith.constant 0 : i32
    %c0_i32_1 = arith.constant 0 : i32
    return %arg0, %c0_i32, %c0_i32_0 : i32, i32, i32
  }
  func.func @transform_1(%arg0: i32) -> (i32, i32) {
    %c0_i32 = arith.constant 0 : i32
    %c0_i32_0 = arith.constant 0 : i32
    %c0_i32_1 = arith.constant 0 : i32
    return %c0_i32, %c0_i32_0 : i32, i32
  }
  func.func @transform_2(%arg0: i32) -> (i32, i32) {
    %c0_i32 = arith.constant 0 : i32
    %c0_i32_0 = arith.constant 0 : i32
    %c0_i32_1 = arith.constant 0 : i32
    return %c0_i32, %c0_i32_0 : i32, i32
  }
  func.func @transform_3(%arg0: i32) -> (i32, i32) {
    %c0_i32 = arith.constant 0 : i32
    %c0_i32_0 = arith.constant 0 : i32
    %c0_i32_1 = arith.constant 0 : i32
    return %c0_i32, %c0_i32_0 : i32, i32
  }
  func.func @transform_4(%arg0: i32) -> (i32, i32) {
    %c0_i32 = arith.constant 0 : i32
    %c0_i32_0 = arith.constant 0 : i32
    %c0_i32_1 = arith.constant 0 : i32
    return %c0_i32, %c0_i32_0 : i32, i32
  }
  func.func @transform_5(%arg0: i32) -> (i32, i32) {
    %c0_i32 = arith.constant 0 : i32
    %c0_i32_0 = arith.constant 0 : i32
    %c0_i32_1 = arith.constant 0 : i32
    return %c0_i32, %c0_i32_0 : i32, i32
  }
  func.func @transform_6(%arg0: i32) -> (i32, i32) {
    %c0_i32 = arith.constant 0 : i32
    %c0_i32_0 = arith.constant 0 : i32
    %c0_i32_1 = arith.constant 0 : i32
    return %c0_i32, %c0_i32_0 : i32, i32
  }
  func.func @transform_7(%arg0: i32) -> (i32, i32) {
    %c0_i32 = arith.constant 0 : i32
    %c0_i32_0 = arith.constant 0 : i32
    %c0_i32_1 = arith.constant 0 : i32
    return %c0_i32, %c0_i32_0 : i32, i32
  }
  func.func @transform_8(%arg0: i32) -> (i32, i32) {
    %c0_i32 = arith.constant 0 : i32
    %c0_i32_0 = arith.constant 0 : i32
    %c0_i32_1 = arith.constant 0 : i32
    return %c0_i32, %c0_i32_0 : i32, i32
  }
  func.func @transform_9(%arg0: i32) -> (i32, i32) {
    %c0_i32 = arith.constant 0 : i32
    %c0_i32_0 = arith.constant 0 : i32
    %c0_i32_1 = arith.constant 0 : i32
    return %c0_i32, %c0_i32_0 : i32, i32
  }
  func.func @transform_10(%arg0: i32) -> (i32, i32) {
    %c0_i32 = arith.constant 0 : i32
    %c0_i32_0 = arith.constant 0 : i32
    %c0_i32_1 = arith.constant 0 : i32
    return %c0_i32, %c0_i32_0 : i32, i32
  }
  func.func @transform_11(%arg0: i32) -> (i32, i32) {
    %c0_i32 = arith.constant 0 : i32
    %c0_i32_0 = arith.constant 0 : i32
    %c0_i32_1 = arith.constant 0 : i32
    return %c0_i32, %c0_i32_0 : i32, i32
  }
  func.func @transform_12(%arg0: i32) -> (i32, i32) {
    %c0_i32 = arith.constant 0 : i32
    %c0_i32_0 = arith.constant 0 : i32
    %c0_i32_1 = arith.constant 0 : i32
    return %c0_i32, %c0_i32_0 : i32, i32
  }
  func.func @transform_13(%arg0: i32) -> (i32, i32, i32) {
    %c0_i32 = arith.constant 0 : i32
    %c0_i32_0 = arith.constant 0 : i32
    %c0_i32_1 = arith.constant 0 : i32
    return %arg0, %c0_i32, %c0_i32_0 : i32, i32, i32
  }
}

</mosaic_0001>

<llo_original>
// kernel: forward.1
$region0: #{forward.1}
  #allocation0 [shape = 'u32[]', space=smem, size = 0x4, offset = 0x4, fixed_abs, tag = 'smem constant byte address 0x4 - core index']
  #allocation1 [shape = 'u32[144,128]{1,0:T(1,128)}', space=vmem, size = 0x12000, scoped, tag = 'internal scratch']
  #allocation2 [shape = 'f32[122,8]{1,0:T(8,128)}', space=vmem, size = 0x10000, scoped, tag = 'scratch operand']
  #allocation3 [shape = 'f32[50,16]{1,0:T(8,128)}', space=vmem, size = 0x7000, scoped, tag = 'scratch operand']
  #allocation4 [shape = 'f32[26,32]{1,0:T(8,128)}', space=vmem, size = 0x4000, scoped, tag = 'scratch operand']
  #allocation5 [shape = 'f32[324,8]{1,0:T(8,128)}', space=vmem, size = 0x29000, scoped, tag = 'scratch operand']
  #allocation6 [shape = 'f32[100,16]{1,0:T(8,128)}', space=vmem, size = 0xd000, scoped, tag = 'scratch operand']
  #allocation7 [shape = 'f32[36,32]{1,0:T(8,128)}', space=vmem, size = 0x5000, scoped, tag = 'scratch operand']
  #allocation8 [shape = 'f32[16,64]{1,0:T(8,128)}', space=vmem, size = 0x2000, scoped, tag = 'scratch operand']
  %s0 = inlined_call_operand.vmem [shape: f32[2,362,4], index: 0, kind: input, shape index: {}]
  %s1 = inlined_call_operand.vmem [shape: bf16[36,8], index: 1, kind: input, shape index: {}]
  %s2 = inlined_call_operand.vmem [shape: f32[1,8], index: 2, kind: input, shape index: {}]
  %s3 = inlined_call_operand.vmem [shape: bf16[72,16], index: 3, kind: input, shape index: {}]
  %s4 = inlined_call_operand.vmem [shape: f32[1,16], index: 4, kind: input, shape index: {}]
  %s5 = inlined_call_operand.vmem [shape: bf16[144,32], index: 5, kind: input, shape index: {}]
  %s6 = inlined_call_operand.vmem [shape: f32[1,32], index: 6, kind: input, shape index: {}]
  %s7 = inlined_call_operand.vmem [shape: bf16[288,64], index: 7, kind: input, shape index: {}]
  %s8 = inlined_call_operand.vmem [shape: f32[1,64], index: 8, kind: input, shape index: {}]
  %s9 = inlined_call_operand.vmem [shape: bf16[64,32], index: 9, kind: input, shape index: {}]
  %s10 = inlined_call_operand.vmem [shape: f32[1,32], index: 10, kind: input, shape index: {}]
  %s11 = inlined_call_operand.vmem [shape: bf16[32,128], index: 11, kind: input, shape index: {}]
  %s12 = inlined_call_operand.vmem [shape: f32[1,128], index: 12, kind: input, shape index: {}]
  %s13 = inlined_call_operand.vmem [shape: f32[2,1,128], index: 13, kind: output, shape index: {}]
  %s14 = sld [smem:[#allocation0]]
  $region85: #{forward.1} parent=0
    _
  %s16 = ssub.s32 1, %s14
  %s17 = scalar_select 0, %s16, %s14
  loop: start=0, step=1, limit=4
  $region2: #{forward.1} parent=0 // loop_pre_header
    _
  $region3: #{forward.1} parent=0 // loop_header
    %s19 = sphi 0, %s23
    %p20 = scmp.ge.s32.totalorder %s19, 4
    %s29 = sphi 0, %s31
    %s32 = sphi 0, %s29
    %s33 = sphi 0, %s32
    %s49 = sphi 0, %s33
    %s53 = sphi 0, %s53
    %s55 = sphi 0, %s53
    %s56 = sphi 0, %s55
    %s70 = sphi 0, %s56
    %s74 = sphi 0, %s74
    %s76 = sphi 0, %s74
    %s77 = sphi 0, %s76
    %s91 = sphi 0, %s77
    %s95 = sphi 0, %s95
    %s97 = sphi 0, %s95
    %s98 = sphi 0, %s97
    %s112 = sphi 0, %s98
    %s116 = sphi 0, %s116
    %s118 = sphi 0, %s116
    %s119 = sphi 0, %s118
    %s133 = sphi 0, %s119
    %s137 = sphi 0, %s137
    %s139 = sphi 0, %s137
    %s140 = sphi 0, %s139
    %s154 = sphi 0, %s140
    %s158 = sphi 0, %s158
    %s160 = sphi 0, %s158
    %s161 = sphi 0, %s160
    %s175 = sphi 0, %s161
    %s179 = sphi 0, %s179
    %s181 = sphi 0, %s179
    %s182 = sphi 0, %s181
    %s196 = sphi 0, %s182
    %s200 = sphi 0, %s200
    %s202 = sphi 0, %s200
    %s203 = sphi 0, %s202
    %s217 = sphi 0, %s203
    %s221 = sphi 0, %s221
    %s223 = sphi 0, %s221
    %s224 = sphi 0, %s223
    %s238 = sphi 0, %s224
    %s242 = sphi 0, %s242
    %s244 = sphi 0, %s242
    %s245 = sphi 0, %s244
    %s259 = sphi 0, %s245
    %s263 = sphi 0, %s263
    %s265 = sphi 0, %s263
    %s266 = sphi 0, %s265
    %s280 = sphi 0, %s266
    %s284 = sphi 0, %s284
    %s286 = sphi 0, %s284
    %s287 = sphi 0, %s286
    %s301 = sphi 0, %s287
    %s307 = sphi 0, %s309
    %s310 = sphi 0, %s307
    %s311 = sphi 0, %s310
    %s327 = sphi 0, %s311
  $region4: #{forward.1} parent=0 // loop_header_branch
    %22 = sbr.rel (%p20) target = $region8
  $region5: #{forward.1} parent=0 // loop_body
    %s24 = ssub.s32 %s19, 1
    %s25 = ssub.s32 %s19, 2
    %s26 = sadd.s32 %s19, 1
    %s27 = ssub.s32 %s19, %s26
    %p28 = scmp.eq.s32.totalorder %s27, 0
    %s30 = sadd.s32 %s29, 1
    %s31 = scalar_select %p28, %s29, %s30
    %p34 = pneg %p28
    %p35 = scmp.eq.s32.totalorder %s19, 1
    %p36 = por %p34, %p35
    %p37 = scmp.ne.s32.totalorder %s29, %s32
    %p38 = scmp.eq.s32.totalorder %s19, 0
    %p39 = por %p37, %p38
    %p40 = scmp.ne.s32.totalorder %s29, %s32
    %p41 = scmp.eq.s32.totalorder %s24, 1
    %p42 = por %p40, %p41
    %p43 = scmp.ne.s32.totalorder %s32, %s33
    %p44 = scmp.eq.s32.totalorder %s24, 0
    %p45 = por %p43, %p44
    %p46 = scmp.ne.s32.totalorder %s32, %s33
    %p47 = scmp.eq.s32.totalorder %s25, 1
    %p48 = por %p46, %p47
    %p50 = scmp.ne.s32.totalorder %s33, %s49
    %p51 = scmp.eq.s32.totalorder %s25, 0
    %p52 = por %p50, %p51
    %s54 = sadd.s32 %s53, 1
    %p57 = scmp.eq.s32.totalorder %s19, 1
    %p58 = scmp.ne.s32.totalorder %s53, %s55
    %p59 = scmp.eq.s32.totalorder %s19, 0
    %p60 = por %p58, %p59
    %p61 = scmp.ne.s32.totalorder %s53, %s55
    %p62 = scmp.eq.s32.totalorder %s24, 1
    %p63 = por %p61, %p62
    %p64 = scmp.ne.s32.totalorder %s55, %s56
    %p65 = scmp.eq.s32.totalorder %s24, 0
    %p66 = por %p64, %p65
    %p67 = scmp.ne.s32.totalorder %s55, %s56
    %p68 = scmp.eq.s32.totalorder %s25, 1
    %p69 = por %p67, %p68
    %p71 = scmp.ne.s32.totalorder %s56, %s70
    %p72 = scmp.eq.s32.totalorder %s25, 0
    %p73 = por %p71, %p72
    %s75 = sadd.s32 %s74, 1
    %p78 = scmp.eq.s32.totalorder %s19, 1
    %p79 = scmp.ne.s32.totalorder %s74, %s76
    %p80 = scmp.eq.s32.totalorder %s19, 0
    %p81 = por %p79, %p80
    %p82 = scmp.ne.s32.totalorder %s74, %s76
    %p83 = scmp.eq.s32.totalorder %s24, 1
    %p84 = por %p82, %p83
    %p85 = scmp.ne.s32.totalorder %s76, %s77
    %p86 = scmp.eq.s32.totalorder %s24, 0
    %p87 = por %p85, %p86
    %p88 = scmp.ne.s32.totalorder %s76, %s77
    %p89 = scmp.eq.s32.totalorder %s25, 1
    %p90 = por %p88, %p89
    %p92 = scmp.ne.s32.totalorder %s77, %s91
    %p93 = scmp.eq.s32.totalorder %s25, 0
    %p94 = por %p92, %p93
    %s96 = sadd.s32 %s95, 1
    %p99 = scmp.eq.s32.totalorder %s19, 1
    %p100 = scmp.ne.s32.totalorder %s95, %s97
    %p101 = scmp.eq.s32.totalorder %s19, 0
    %p102 = por %p100, %p101
    %p103 = scmp.ne.s32.totalorder %s95, %s97
    %p104 = scmp.eq.s32.totalorder %s24, 1
    %p105 = por %p103, %p104
    %p106 = scmp.ne.s32.totalorder %s97, %s98
    %p107 = scmp.eq.s32.totalorder %s24, 0
    %p108 = por %p106, %p107
    %p109 = scmp.ne.s32.totalorder %s97, %s98
    %p110 = scmp.eq.s32.totalorder %s25, 1
    %p111 = por %p109, %p110
    %p113 = scmp.ne.s32.totalorder %s98, %s112
    %p114 = scmp.eq.s32.totalorder %s25, 0
    %p115 = por %p113, %p114
    %s117 = sadd.s32 %s116, 1
    %p120 = scmp.eq.s32.totalorder %s19, 1
    %p121 = scmp.ne.s32.totalorder %s116, %s118
    %p122 = scmp.eq.s32.totalorder %s19, 0
    %p123 = por %p121, %p122
    %p124 = scmp.ne.s32.totalorder %s116, %s118
    %p125 = scmp.eq.s32.totalorder %s24, 1
    %p126 = por %p124, %p125
    %p127 = scmp.ne.s32.totalorder %s118, %s119
    %p128 = scmp.eq.s32.totalorder %s24, 0
    %p129 = por %p127, %p128
    %p130 = scmp.ne.s32.totalorder %s118, %s119
    %p131 = scmp.eq.s32.totalorder %s25, 1
    %p132 = por %p130, %p131
    %p134 = scmp.ne.s32.totalorder %s119, %s133
    %p135 = scmp.eq.s32.totalorder %s25, 0
    %p136 = por %p134, %p135
    %s138 = sadd.s32 %s137, 1
    %p141 = scmp.eq.s32.totalorder %s19, 1
    %p142 = scmp.ne.s32.totalorder %s137, %s139
    %p143 = scmp.eq.s32.totalorder %s19, 0
    %p144 = por %p142, %p143
    %p145 = scmp.ne.s32.totalorder %s137, %s139
    %p146 = scmp.eq.s32.totalorder %s24, 1
    %p147 = por %p145, %p146
    %p148 = scmp.ne.s32.totalorder %s139, %s140
    %p149 = scmp.eq.s32.totalorder %s24, 0
    %p150 = por %p148, %p149
    %p151 = scmp.ne.s32.totalorder %s139, %s140
    %p152 = scmp.eq.s32.totalorder %s25, 1
    %p153 = por %p151, %p152
    %p155 = scmp.ne.s32.totalorder %s140, %s154
    %p156 = scmp.eq.s32.totalorder %s25, 0
    %p157 = por %p155, %p156
    %s159 = sadd.s32 %s158, 1
    %p162 = scmp.eq.s32.totalorder %s19, 1
    %p163 = scmp.ne.s32.totalorder %s158, %s160
    %p164 = scmp.eq.s32.totalorder %s19, 0
    %p165 = por %p163, %p164
    %p166 = scmp.ne.s32.totalorder %s158, %s160
    %p167 = scmp.eq.s32.totalorder %s24, 1
    %p168 = por %p166, %p167
    %p169 = scmp.ne.s32.totalorder %s160, %s161
    %p170 = scmp.eq.s32.totalorder %s24, 0
    %p171 = por %p169, %p170
    %p172 = scmp.ne.s32.totalorder %s160, %s161
    %p173 = scmp.eq.s32.totalorder %s25, 1
    %p174 = por %p172, %p173
    %p176 = scmp.ne.s32.totalorder %s161, %s175
    %p177 = scmp.eq.s32.totalorder %s25, 0
    %p178 = por %p176, %p177
    %s180 = sadd.s32 %s179, 1
    %p183 = scmp.eq.s32.totalorder %s19, 1
    %p184 = scmp.ne.s32.totalorder %s179, %s181
    %p185 = scmp.eq.s32.totalorder %s19, 0
    %p186 = por %p184, %p185
    %p187 = scmp.ne.s32.totalorder %s179, %s181
    %p188 = scmp.eq.s32.totalorder %s24, 1
    %p189 = por %p187, %p188
    %p190 = scmp.ne.s32.totalorder %s181, %s182
    %p191 = scmp.eq.s32.totalorder %s24, 0
    %p192 = por %p190, %p191
    %p193 = scmp.ne.s32.totalorder %s181, %s182
    %p194 = scmp.eq.s32.totalorder %s25, 1
    %p195 = por %p193, %p194
    %p197 = scmp.ne.s32.totalorder %s182, %s196
    %p198 = scmp.eq.s32.totalorder %s25, 0
    %p199 = por %p197, %p198
    %s201 = sadd.s32 %s200, 1
    %p204 = scmp.eq.s32.totalorder %s19, 1
    %p205 = scmp.ne.s32.totalorder %s200, %s202
    %p206 = scmp.eq.s32.totalorder %s19, 0
    %p207 = por %p205, %p206
    %p208 = scmp.ne.s32.totalorder %s200, %s202
    %p209 = scmp.eq.s32.totalorder %s24, 1
    %p210 = por %p208, %p209
    %p211 = scmp.ne.s32.totalorder %s202, %s203
    %p212 = scmp.eq.s32.totalorder %s24, 0
    %p213 = por %p211, %p212
    %p214 = scmp.ne.s32.totalorder %s202, %s203
    %p215 = scmp.eq.s32.totalorder %s25, 1
    %p216 = por %p214, %p215
    %p218 = scmp.ne.s32.totalorder %s203, %s217
    %p219 = scmp.eq.s32.totalorder %s25, 0
    %p220 = por %p218, %p219
    %s222 = sadd.s32 %s221, 1
    %p225 = scmp.eq.s32.totalorder %s19, 1
    %p226 = scmp.ne.s32.totalorder %s221, %s223
    %p227 = scmp.eq.s32.totalorder %s19, 0
    %p228 = por %p226, %p227
    %p229 = scmp.ne.s32.totalorder %s221, %s223
    %p230 = scmp.eq.s32.totalorder %s24, 1
    %p231 = por %p229, %p230
    %p232 = scmp.ne.s32.totalorder %s223, %s224
    %p233 = scmp.eq.s32.totalorder %s24, 0
    %p234 = por %p232, %p233
    %p235 = scmp.ne.s32.totalorder %s223, %s224
    %p236 = scmp.eq.s32.totalorder %s25, 1
    %p237 = por %p235, %p236
    %p239 = scmp.ne.s32.totalorder %s224, %s238
    %p240 = scmp.eq.s32.totalorder %s25, 0
    %p241 = por %p239, %p240
    %s243 = sadd.s32 %s242, 1
    %p246 = scmp.eq.s32.totalorder %s19, 1
    %p247 = scmp.ne.s32.totalorder %s242, %s244
    %p248 = scmp.eq.s32.totalorder %s19, 0
    %p249 = por %p247, %p248
    %p250 = scmp.ne.s32.totalorder %s242, %s244
    %p251 = scmp.eq.s32.totalorder %s24, 1
    %p252 = por %p250, %p251
    %p253 = scmp.ne.s32.totalorder %s244, %s245
    %p254 = scmp.eq.s32.totalorder %s24, 0
    %p255 = por %p253, %p254
    %p256 = scmp.ne.s32.totalorder %s244, %s245
    %p257 = scmp.eq.s32.totalorder %s25, 1
    %p258 = por %p256, %p257
    %p260 = scmp.ne.s32.totalorder %s245, %s259
    %p261 = scmp.eq.s32.totalorder %s25, 0
    %p262 = por %p260, %p261
    %s264 = sadd.s32 %s263, 1
    %p267 = scmp.eq.s32.totalorder %s19, 1
    %p268 = scmp.ne.s32.totalorder %s263, %s265
    %p269 = scmp.eq.s32.totalorder %s19, 0
    %p270 = por %p268, %p269
    %p271 = scmp.ne.s32.totalorder %s263, %s265
    %p272 = scmp.eq.s32.totalorder %s24, 1
    %p273 = por %p271, %p272
    %p274 = scmp.ne.s32.totalorder %s265, %s266
    %p275 = scmp.eq.s32.totalorder %s24, 0
    %p276 = por %p274, %p275
    %p277 = scmp.ne.s32.totalorder %s265, %s266
    %p278 = scmp.eq.s32.totalorder %s25, 1
    %p279 = por %p277, %p278
    %p281 = scmp.ne.s32.totalorder %s266, %s280
    %p282 = scmp.eq.s32.totalorder %s25, 0
    %p283 = por %p281, %p282
    %s285 = sadd.s32 %s284, 1
    %p288 = scmp.eq.s32.totalorder %s19, 1
    %p289 = scmp.ne.s32.totalorder %s284, %s286
    %p290 = scmp.eq.s32.totalorder %s19, 0
    %p291 = por %p289, %p290
    %p292 = scmp.ne.s32.totalorder %s284, %s286
    %p293 = scmp.eq.s32.totalorder %s24, 1
    %p294 = por %p292, %p293
    %p295 = scmp.ne.s32.totalorder %s286, %s287
    %p296 = scmp.eq.s32.totalorder %s24, 0
    %p297 = por %p295, %p296
    %p298 = scmp.ne.s32.totalorder %s286, %s287
    %p299 = scmp.eq.s32.totalorder %s25, 1
    %p300 = por %p298, %p299
    %p302 = scmp.ne.s32.totalorder %s287, %s301
    %p303 = scmp.eq.s32.totalorder %s25, 0
    %p304 = por %p302, %p303
    %s305 = ssub.s32 %s19, %s26
    %p306 = scmp.eq.s32.totalorder %s305, 0
    %s308 = sadd.s32 %s307, 1
    %s309 = scalar_select %p306, %s307, %s308
    %p312 = pneg %p306
    %p313 = scmp.eq.s32.totalorder %s19, 1
    %p314 = por %p312, %p313
    %p315 = scmp.ne.s32.totalorder %s307, %s310
    %p316 = scmp.eq.s32.totalorder %s19, 0
    %p317 = por %p315, %p316
    %p318 = scmp.ne.s32.totalorder %s307, %s310
    %p319 = scmp.eq.s32.totalorder %s24, 1
    %p320 = por %p318, %p319
    %p321 = scmp.ne.s32.totalorder %s310, %s311
    %p322 = scmp.eq.s32.totalorder %s24, 0
    %p323 = por %p321, %p322
    %p324 = scmp.ne.s32.totalorder %s310, %s311
    %p325 = scmp.eq.s32.totalorder %s25, 1
    %p326 = por %p324, %p325
    %p328 = scmp.ne.s32.totalorder %s311, %s327
    %p329 = scmp.eq.s32.totalorder %s25, 0
    %p330 = por %p328, %p329
    %p331 = scmp.le.s32.totalorder 1, %s19
    %p332 = scmp.lt.s32.totalorder %s19, 3
    %p333 = pnand %p331, %p332
    %p334 = pneg %p333
    // Predicated region
    $region9: #{forward.1} parent=5 // pred_check
      _
    $region10: #{forward.1} parent=5 // pred_check_branch
      %336 = sbr.rel (%p333) target = $region12
    $region11: #{forward.1} parent=5 // pred_region
      %s337 = ssub.s32 %s19, 1
      // Predicated region
      $region13: #{forward.1} parent=11 // pred_check
        %p338 = pneg %p66
      $region14: #{forward.1} parent=11 // pred_check_branch
        %340 = sbr.rel (%p338) target = $region16
      $region15: #{forward.1} parent=11 // pred_region
        _
      $region16: #{forward.1} parent=11 // pred_fallthru
        _
      // Predicated region
      $region17: #{forward.1} parent=11 // pred_check
        %p341 = pneg %p87
      $region18: #{forward.1} parent=11 // pred_check_branch
        %343 = sbr.rel (%p341) target = $region20
      $region19: #{forward.1} parent=11 // pred_region
        _
      $region20: #{forward.1} parent=11 // pred_fallthru
        _
      // Predicated region
      $region21: #{forward.1} parent=11 // pred_check
        %p344 = pneg %p108
      $region22: #{forward.1} parent=11 // pred_check_branch
        %346 = sbr.rel (%p344) target = $region24
      $region23: #{forward.1} parent=11 // pred_region
        _
      $region24: #{forward.1} parent=11 // pred_fallthru
        _
      // Predicated region
      $region25: #{forward.1} parent=11 // pred_check
        %p347 = pneg %p129
      $region26: #{forward.1} parent=11 // pred_check_branch
        %349 = sbr.rel (%p347) target = $region28
      $region27: #{forward.1} parent=11 // pred_region
        _
      $region28: #{forward.1} parent=11 // pred_fallthru
        _
      // Predicated region
      $region29: #{forward.1} parent=11 // pred_check
        %p350 = pneg %p150
      $region30: #{forward.1} parent=11 // pred_check_branch
        %352 = sbr.rel (%p350) target = $region32
      $region31: #{forward.1} parent=11 // pred_region
        _
      $region32: #{forward.1} parent=11 // pred_fallthru
        _
      // Predicated region
      $region33: #{forward.1} parent=11 // pred_check
        %p353 = pneg %p171
      $region34: #{forward.1} parent=11 // pred_check_branch
        %355 = sbr.rel (%p353) target = $region36
      $region35: #{forward.1} parent=11 // pred_region
        _
      $region36: #{forward.1} parent=11 // pred_fallthru
        _
      // Predicated region
      $region37: #{forward.1} parent=11 // pred_check
        %p356 = pneg %p192
      $region38: #{forward.1} parent=11 // pred_check_branch
        %358 = sbr.rel (%p356) target = $region40
      $region39: #{forward.1} parent=11 // pred_region
        _
      $region40: #{forward.1} parent=11 // pred_fallthru
        _
      // Predicated region
      $region41: #{forward.1} parent=11 // pred_check
        %p359 = pneg %p213
      $region42: #{forward.1} parent=11 // pred_check_branch
        %361 = sbr.rel (%p359) target = $region44
      $region43: #{forward.1} parent=11 // pred_region
        _
      $region44: #{forward.1} parent=11 // pred_fallthru
        _
      // Predicated region
      $region45: #{forward.1} parent=11 // pred_check
        %p362 = pneg %p234
      $region46: #{forward.1} parent=11 // pred_check_branch
        %364 = sbr.rel (%p362) target = $region48
      $region47: #{forward.1} parent=11 // pred_region
        _
      $region48: #{forward.1} parent=11 // pred_fallthru
        _
      // Predicated region
      $region49: #{forward.1} parent=11 // pred_check
        %p365 = pneg %p255
      $region50: #{forward.1} parent=11 // pred_check_branch
        %367 = sbr.rel (%p365) target = $region52
      $region51: #{forward.1} parent=11 // pred_region
        _
      $region52: #{forward.1} parent=11 // pred_fallthru
        _
      // Predicated region
      $region53: #{forward.1} parent=11 // pred_check
        %p368 = pneg %p276
      $region54: #{forward.1} parent=11 // pred_check_branch
        %370 = sbr.rel (%p368) target = $region56
      $region55: #{forward.1} parent=11 // pred_region
        _
      $region56: #{forward.1} parent=11 // pred_fallthru
        _
      // Predicated region
      $region57: #{forward.1} parent=11 // pred_check
        %p371 = pneg %p297
      $region58: #{forward.1} parent=11 // pred_check_branch
        %373 = sbr.rel (%p371) target = $region60
      $region59: #{forward.1} parent=11 // pred_region
        _
      $region60: #{forward.1} parent=11 // pred_fallthru
        _
    $region12: #{forward.1} parent=5 // pred_fallthru
      _
    %p374 = scmp.lt.s32.totalorder %s19, 2
    // Predicated region
    $region61: #{forward.1} parent=5 // pred_check
      %p375 = pneg %p374
    $region62: #{forward.1} parent=5 // pred_check_branch
      %377 = sbr.rel (%p375) target = $region64
    $region63: #{forward.1} parent=5 // pred_region
      // Predicated region
      $region65: #{forward.1} parent=63 // pred_check
        %p378 = pneg %p39
      $region66: #{forward.1} parent=63 // pred_check_branch
        %380 = sbr.rel (%p378) target = $region68
      $region67: #{forward.1} parent=63 // pred_region
        %p381 = scmp.lt.s32.totalorder %s19, 1
        %s382 = scalar_select %p381, %s19, 1
        %s383 = smul.addr %s382, 46
        %s384 = smul.addr %s383, 8
        %s385 = scalar_lea.vmem %s0, %s384
      $region68: #{forward.1} parent=63 // pred_fallthru
        _
    $region64: #{forward.1} parent=5 // pred_fallthru
      _
    %p386 = scmp.le.s32.totalorder 1, %s19
    %p387 = scmp.lt.s32.totalorder %s19, 3
    %p388 = pnand %p386, %p387
    %p389 = pneg %p388
    // Predicated region
    $region69: #{forward.1} parent=5 // pred_check
      _
    $region70: #{forward.1} parent=5 // pred_check_branch
      %391 = sbr.rel (%p388) target = $region72
    $region71: #{forward.1} parent=5 // pred_region
      %s392 = ssub.s32 %s19, 1
      %p393 = scmp.lt.s32.totalorder %s24, 1
      %s394 = scalar_select %p393, %s24, 1
      %s395 = smul.addr %s394, 46
      %s396 = smul.addr %s395, 8
      %s397 = scalar_lea.vmem %s0, %s396
      %p398 = pneg %p45
      %p399 = pneg %p42
      %p400 = pneg %p66
      %p401 = pneg %p63
      %p402 = pneg %p87
      %p403 = pneg %p84
      %p404 = pneg %p108
      %p405 = pneg %p105
      %p406 = pneg %p129
      %p407 = pneg %p126
      %p408 = pneg %p150
      %p409 = pneg %p147
      %p410 = pneg %p171
      %p411 = pneg %p168
      %p412 = pneg %p192
      %p413 = pneg %p189
      %p414 = pneg %p213
      %p415 = pneg %p210
      %p416 = pneg %p234
      %p417 = pneg %p231
      %p418 = pneg %p255
      %p419 = pneg %p252
      %p420 = pneg %p276
      %p421 = pneg %p273
      %p422 = pneg %p297
      %p423 = pneg %p294
      %p424 = pneg %p323
      %p425 = pneg %p320
      %p426 = scmp.lt.s32.totalorder %s24, 1
      %s427 = scalar_select %p426, %s24, 1
      %s428 = scalar_lea.vmem %s13, %s427
      %p429 = scmp.lt.s32.totalorder %s24, 1
      %s430 = scalar_select %p429, %s24, 1
      %s431 = smul.addr %s430, 46
      %s432 = smul.addr %s431, 8
      %s433 = scalar_lea.vmem %s0, %s432
      %p434 = scmp.lt.s32.totalorder %s24, 1
      %s435 = scalar_select %p434, %s24, 1
      %s436 = scalar_lea.vmem %s13, %s435
      %v438 = vld [vmem:[%s433] sm:$0xff]
      %v439 = vld [vmem:[%s433 + $0x8] sm:$0xff]
      %v440 = vld [vmem:[%s433 + $0x10] sm:$0xff]
      %v441 = vld [vmem:[%s433 + $0x18] sm:$0xff]
      %v442 = vld [vmem:[%s433 + $0x20] sm:$0xff]
      %v443 = vld [vmem:[%s433 + $0x28] sm:$0xff]
      %v444 = vld [vmem:[%s433 + $0x30] sm:$0xff]
      %v445 = vld [vmem:[%s433 + $0x38] sm:$0xff]
      %v446 = vld [vmem:[%s433 + $0x40] sm:$0xff]
      %v447 = vld [vmem:[%s433 + $0x48] sm:$0xff]
      %v448 = vld [vmem:[%s433 + $0x50] sm:$0xff]
      %v449 = vld [vmem:[%s433 + $0x58] sm:$0xff]
      %v450 = vld [vmem:[%s433 + $0x60] sm:$0xff]
      %v451 = vld [vmem:[%s433 + $0x68] sm:$0xff]
      %v452 = vld [vmem:[%s433 + $0x70] sm:$0xff]
      %v453 = vld [vmem:[%s433 + $0x78] sm:$0xff]
      %v454 = vld [vmem:[%s433 + $0x80] sm:$0xff]
      %v455 = vld [vmem:[%s433 + $0x88] sm:$0xff]
      %v456 = vld [vmem:[%s433 + $0x90] sm:$0xff]
      %v457 = vld [vmem:[%s433 + $0x98] sm:$0xff]
      %v458 = vld [vmem:[%s433 + $0xa0] sm:$0xff]
      %v459 = vld [vmem:[%s433 + $0xa8] sm:$0xff]
      %v460 = vld [vmem:[%s433 + $0xb0] sm:$0xff]
      %v461 = vld [vmem:[%s433 + $0xb8] sm:$0xff]
      %v462 = vld [vmem:[%s433 + $0xc0] sm:$0xff]
      %v463 = vld [vmem:[%s433 + $0xc8] sm:$0xff]
      %v464 = vld [vmem:[%s433 + $0xd0] sm:$0xff]
      %v465 = vld [vmem:[%s433 + $0xd8] sm:$0xff]
      %v466 = vld [vmem:[%s433 + $0xe0] sm:$0xff]
      %v467 = vld [vmem:[%s433 + $0xe8] sm:$0xff]
      %v468 = vld [vmem:[%s433 + $0xf0] sm:$0xff]
      %v469 = vld [vmem:[%s433 + $0xf8] sm:$0xff]
      %v470 = vld [vmem:[%s433 + $0x100] sm:$0xff]
      %v471 = vld [vmem:[%s433 + $0x108] sm:$0xff]
      %v472 = vld [vmem:[%s433 + $0x110] sm:$0xff]
      %v473 = vld [vmem:[%s433 + $0x118] sm:$0xff]
      %v474 = vld [vmem:[%s433 + $0x120] sm:$0xff]
      %v475 = vld [vmem:[%s433 + $0x128] sm:$0xff]
      %v476 = vld [vmem:[%s433 + $0x130] sm:$0xff]
      %v477 = vld [vmem:[%s433 + $0x138] sm:$0xff]
      %v478 = vld [vmem:[%s433 + $0x140] sm:$0xf]
      %v479 = vld [vmem:[%s433 + $0x1] sm:$0xff]
      %v480 = vld [vmem:[%s433 + $0x9] sm:$0xff]
      %v481 = vld [vmem:[%s433 + $0x11] sm:$0xff]
      %v482 = vld [vmem:[%s433 + $0x19] sm:$0xff]
      %v483 = vld [vmem:[%s433 + $0x21] sm:$0xff]
      %v484 = vld [vmem:[%s433 + $0x29] sm:$0xff]
      %v485 = vld [vmem:[%s433 + $0x31] sm:$0xff]
      %v486 = vld [vmem:[%s433 + $0x39] sm:$0xff]
      %v487 = vld [vmem:[%s433 + $0x41] sm:$0xff]
      %v488 = vld [vmem:[%s433 + $0x49] sm:$0xff]
      %v489 = vld [vmem:[%s433 + $0x51] sm:$0xff]
      %v490 = vld [vmem:[%s433 + $0x59] sm:$0xff]
      %v491 = vld [vmem:[%s433 + $0x61] sm:$0xff]
      %v492 = vld [vmem:[%s433 + $0x69] sm:$0xff]
      %v493 = vld [vmem:[%s433 + $0x71] sm:$0xff]
      %v494 = vld [vmem:[%s433 + $0x79] sm:$0xff]
      %v495 = vld [vmem:[%s433 + $0x81] sm:$0xff]
      %v496 = vld [vmem:[%s433 + $0x89] sm:$0xff]
      %v497 = vld [vmem:[%s433 + $0x91] sm:$0xff]
      %v498 = vld [vmem:[%s433 + $0x99] sm:$0xff]
      %v499 = vld [vmem:[%s433 + $0xa1] sm:$0xff]
      %v500 = vld [vmem:[%s433 + $0xa9] sm:$0xff]
      %v501 = vld [vmem:[%s433 + $0xb1] sm:$0xff]
      %v502 = vld [vmem:[%s433 + $0xb9] sm:$0xff]
      %v503 = vld [vmem:[%s433 + $0xc1] sm:$0xff]
      %v504 = vld [vmem:[%s433 + $0xc9] sm:$0xff]
      %v505 = vld [vmem:[%s433 + $0xd1] sm:$0xff]
      %v506 = vld [vmem:[%s433 + $0xd9] sm:$0xff]
      %v507 = vld [vmem:[%s433 + $0xe1] sm:$0xff]
      %v508 = vld [vmem:[%s433 + $0xe9] sm:$0xff]
      %v509 = vld [vmem:[%s433 + $0xf1] sm:$0xff]
      %v510 = vld [vmem:[%s433 + $0xf9] sm:$0xff]
      %v511 = vld [vmem:[%s433 + $0x101] sm:$0xff]
      %v512 = vld [vmem:[%s433 + $0x109] sm:$0xff]
      %v513 = vld [vmem:[%s433 + $0x111] sm:$0xff]
      %v514 = vld [vmem:[%s433 + $0x119] sm:$0xff]
      %v515 = vld [vmem:[%s433 + $0x121] sm:$0xff]
      %v516 = vld [vmem:[%s433 + $0x129] sm:$0xff]
      %v517 = vld [vmem:[%s433 + $0x131] sm:$0xff]
      %v518 = vld [vmem:[%s433 + $0x139] sm:$0xff]
      %v519 = vld [vmem:[%s433 + $0x141] sm:$0xf]
      %v520 = vld [vmem:[%s433 + $0x2] sm:$0xff]
      %v521 = vld [vmem:[%s433 + $0xa] sm:$0xff]
      %v522 = vld [vmem:[%s433 + $0x12] sm:$0xff]
      %v523 = vld [vmem:[%s433 + $0x1a] sm:$0xff]
      %v524 = vld [vmem:[%s433 + $0x22] sm:$0xff]
      %v525 = vld [vmem:[%s433 + $0x2a] sm:$0xff]
      %v526 = vld [vmem:[%s433 + $0x32] sm:$0xff]
      %v527 = vld [vmem:[%s433 + $0x3a] sm:$0xff]
      %v528 = vld [vmem:[%s433 + $0x42] sm:$0xff]
      %v529 = vld [vmem:[%s433 + $0x4a] sm:$0xff]
      %v530 = vld [vmem:[%s433 + $0x52] sm:$0xff]
      %v531 = vld [vmem:[%s433 + $0x5a] sm:$0xff]
      %v532 = vld [vmem:[%s433 + $0x62] sm:$0xff]
      %v533 = vld [vmem:[%s433 + $0x6a] sm:$0xff]
      %v534 = vld [vmem:[%s433 + $0x72] sm:$0xff]
      %v535 = vld [vmem:[%s433 + $0x7a] sm:$0xff]
      %v536 = vld [vmem:[%s433 + $0x82] sm:$0xff]
      %v537 = vld [vmem:[%s433 + $0x8a] sm:$0xff]
      %v538 = vld [vmem:[%s433 + $0x92] sm:$0xff]
      %v539 = vld [vmem:[%s433 + $0x9a] sm:$0xff]
      %v540 = vld [vmem:[%s433 + $0xa2] sm:$0xff]
      %v541 = vld [vmem:[%s433 + $0xaa] sm:$0xff]
      %v542 = vld [vmem:[%s433 + $0xb2] sm:$0xff]
      %v543 = vld [vmem:[%s433 + $0xba] sm:$0xff]
      %v544 = vld [vmem:[%s433 + $0xc2] sm:$0xff]
      %v545 = vld [vmem:[%s433 + $0xca] sm:$0xff]
      %v546 = vld [vmem:[%s433 + $0xd2] sm:$0xff]
      %v547 = vld [vmem:[%s433 + $0xda] sm:$0xff]
      %v548 = vld [vmem:[%s433 + $0xe2] sm:$0xff]
      %v549 = vld [vmem:[%s433 + $0xea] sm:$0xff]
      %v550 = vld [vmem:[%s433 + $0xf2] sm:$0xff]
      %v551 = vld [vmem:[%s433 + $0xfa] sm:$0xff]
      %v552 = vld [vmem:[%s433 + $0x102] sm:$0xff]
      %v553 = vld [vmem:[%s433 + $0x10a] sm:$0xff]
      %v554 = vld [vmem:[%s433 + $0x112] sm:$0xff]
      %v555 = vld [vmem:[%s433 + $0x11a] sm:$0xff]
      %v556 = vld [vmem:[%s433 + $0x122] sm:$0xff]
      %v557 = vld [vmem:[%s433 + $0x12a] sm:$0xff]
      %v558 = vld [vmem:[%s433 + $0x132] sm:$0xff]
      %v559 = vld [vmem:[%s433 + $0x13a] sm:$0xff]
      %v560 = vld [vmem:[%s433 + $0x142] sm:$0xf]
      %v561 = vld [vmem:[%s433 + $0x142] sm:$0xff]
      %v562 = vld [vmem:[%s433 + $0x14a] sm:$0xff]
      %v563 = vld [vmem:[%s433 + $0x152] sm:$0xf]
      %v564 = vld [vmem:[%s433 + $0x13] sm:$0xff]
      %v565 = vld [vmem:[%s433 + $0x1b] sm:$0xff]
      %v566 = vld [vmem:[%s433 + $0x23] sm:$0xff]
      %v567 = vld [vmem:[%s433 + $0x2b] sm:$0xff]
      %v568 = vld [vmem:[%s433 + $0x33] sm:$0xff]
      %v569 = vld [vmem:[%s433 + $0x3b] sm:$0xff]
      %v570 = vld [vmem:[%s433 + $0x43] sm:$0xff]
      %v571 = vld [vmem:[%s433 + $0x4b] sm:$0xff]
      %v572 = vld [vmem:[%s433 + $0x53] sm:$0xff]
      %v573 = vld [vmem:[%s433 + $0x5b] sm:$0xff]
      %v574 = vld [vmem:[%s433 + $0x63] sm:$0xff]
      %v575 = vld [vmem:[%s433 + $0x6b] sm:$0xff]
      %v576 = vld [vmem:[%s433 + $0x73] sm:$0xff]
      %v577 = vld [vmem:[%s433 + $0x7b] sm:$0xff]
      %v578 = vld [vmem:[%s433 + $0x83] sm:$0xff]
      %v579 = vld [vmem:[%s433 + $0x8b] sm:$0xff]
      %v580 = vld [vmem:[%s433 + $0x93] sm:$0xff]
      %v581 = vld [vmem:[%s433 + $0x9b] sm:$0xff]
      %v582 = vld [vmem:[%s433 + $0xa3] sm:$0xff]
      %v583 = vld [vmem:[%s433 + $0xab] sm:$0xff]
      %v584 = vld [vmem:[%s433 + $0xb3] sm:$0xff]
      %v585 = vld [vmem:[%s433 + $0xbb] sm:$0xff]
      %v586 = vld [vmem:[%s433 + $0xc3] sm:$0xff]
      %v587 = vld [vmem:[%s433 + $0xcb] sm:$0xff]
      %v588 = vld [vmem:[%s433 + $0xd3] sm:$0xff]
      %v589 = vld [vmem:[%s433 + $0xdb] sm:$0xff]
      %v590 = vld [vmem:[%s433 + $0xe3] sm:$0xff]
      %v591 = vld [vmem:[%s433 + $0xeb] sm:$0xff]
      %v592 = vld [vmem:[%s433 + $0xf3] sm:$0xff]
      %v593 = vld [vmem:[%s433 + $0xfb] sm:$0xff]
      %v594 = vld [vmem:[%s433 + $0x103] sm:$0xff]
      %v595 = vld [vmem:[%s433 + $0x10b] sm:$0xff]
      %v596 = vld [vmem:[%s433 + $0x113] sm:$0xff]
      %v597 = vld [vmem:[%s433 + $0x11b] sm:$0xff]
      %v598 = vld [vmem:[%s433 + $0x123] sm:$0xff]
      %v599 = vld [vmem:[%s433 + $0x12b] sm:$0xff]
      %v600 = vld [vmem:[%s433 + $0x133] sm:$0xff]
      %v601 = vld [vmem:[%s433 + $0x13b] sm:$0xff]
      %v602 = vld [vmem:[%s433 + $0x143] sm:$0xff]
      %v603 = vld [vmem:[%s433 + $0x14b] sm:$0xff]
      %v604 = vld [vmem:[%s433 + $0x153] sm:$0xf]
      %v605 = vld [vmem:[%s433 + $0x14] sm:$0xff]
      %v606 = vld [vmem:[%s433 + $0x1c] sm:$0xff]
      %v607 = vld [vmem:[%s433 + $0x24] sm:$0xff]
      %v608 = vld [vmem:[%s433 + $0x2c] sm:$0xff]
      %v609 = vld [vmem:[%s433 + $0x34] sm:$0xff]
      %v610 = vld [vmem:[%s433 + $0x3c] sm:$0xff]
      %v611 = vld [vmem:[%s433 + $0x44] sm:$0xff]
      %v612 = vld [vmem:[%s433 + $0x4c] sm:$0xff]
      %v613 = vld [vmem:[%s433 + $0x54] sm:$0xff]
      %v614 = vld [vmem:[%s433 + $0x5c] sm:$0xff]
      %v615 = vld [vmem:[%s433 + $0x64] sm:$0xff]
      %v616 = vld [vmem:[%s433 + $0x6c] sm:$0xff]
      %v617 = vld [vmem:[%s433 + $0x74] sm:$0xff]
      %v618 = vld [vmem:[%s433 + $0x7c] sm:$0xff]
      %v619 = vld [vmem:[%s433 + $0x84] sm:$0xff]
      %v620 = vld [vmem:[%s433 + $0x8c] sm:$0xff]
      %v621 = vld [vmem:[%s433 + $0x94] sm:$0xff]
      %v622 = vld [vmem:[%s433 + $0x9c] sm:$0xff]
      %v623 = vld [vmem:[%s433 + $0xa4] sm:$0xff]
      %v624 = vld [vmem:[%s433 + $0xac] sm:$0xff]
      %v625 = vld [vmem:[%s433 + $0xb4] sm:$0xff]
      %v626 = vld [vmem:[%s433 + $0xbc] sm:$0xff]
      %v627 = vld [vmem:[%s433 + $0xc4] sm:$0xff]
      %v628 = vld [vmem:[%s433 + $0xcc] sm:$0xff]
      %v629 = vld [vmem:[%s433 + $0xd4] sm:$0xff]
      %v630 = vld [vmem:[%s433 + $0xdc] sm:$0xff]
      %v631 = vld [vmem:[%s433 + $0xe4] sm:$0xff]
      %v632 = vld [vmem:[%s433 + $0xec] sm:$0xff]
      %v633 = vld [vmem:[%s433 + $0xf4] sm:$0xff]
      %v634 = vld [vmem:[%s433 + $0xfc] sm:$0xff]
      %v635 = vld [vmem:[%s433 + $0x104] sm:$0xff]
      %v636 = vld [vmem:[%s433 + $0x10c] sm:$0xff]
      %v637 = vld [vmem:[%s433 + $0x114] sm:$0xff]
      %v638 = vld [vmem:[%s433 + $0x11c] sm:$0xff]
      %v639 = vld [vmem:[%s433 + $0x124] sm:$0xff]
      %v640 = vld [vmem:[%s433 + $0x12c] sm:$0xff]
      %v641 = vld [vmem:[%s433 + $0x134] sm:$0xff]
      %v642 = vld [vmem:[%s433 + $0x13c] sm:$0xff]
      %v643 = vld [vmem:[%s433 + $0x144] sm:$0xff]
      %v644 = vld [vmem:[%s433 + $0x14c] sm:$0xff]
      %v645 = vld [vmem:[%s433 + $0x154] sm:$0xf]
      %v646 = vld [vmem:[%s433 + $0x154] sm:$0xff]
      %v647 = vld [vmem:[%s433 + $0x15c] sm:$0xff]
      %v648 = vld [vmem:[%s433 + $0x164] sm:$0xf]
      %v649 = vld [vmem:[%s433 + $0x25] sm:$0xff]
      %v650 = vld [vmem:[%s433 + $0x2d] sm:$0xff]
      %v651 = vld [vmem:[%s433 + $0x35] sm:$0xff]
      %v652 = vld [vmem:[%s433 + $0x3d] sm:$0xff]
      %v653 = vld [vmem:[%s433 + $0x45] sm:$0xff]
      %v654 = vld [vmem:[%s433 + $0x4d] sm:$0xff]
      %v655 = vld [vmem:[%s433 + $0x55] sm:$0xff]
      %v656 = vld [vmem:[%s433 + $0x5d] sm:$0xff]
      %v657 = vld [vmem:[%s433 + $0x65] sm:$0xff]
      %v658 = vld [vmem:[%s433 + $0x6d] sm:$0xff]
      %v659 = vld [vmem:[%s433 + $0x75] sm:$0xff]
      %v660 = vld [vmem:[%s433 + $0x7d] sm:$0xff]
      %v661 = vld [vmem:[%s433 + $0x85] sm:$0xff]
      %v662 = vld [vmem:[%s433 + $0x8d] sm:$0xff]
      %v663 = vld [vmem:[%s433 + $0x95] sm:$0xff]
      %v664 = vld [vmem:[%s433 + $0x9d] sm:$0xff]
      %v665 = vld [vmem:[%s433 + $0xa5] sm:$0xff]
      %v666 = vld [vmem:[%s433 + $0xad] sm:$0xff]
      %v667 = vld [vmem:[%s433 + $0xb5] sm:$0xff]
      %v668 = vld [vmem:[%s433 + $0xbd] sm:$0xff]
      %v669 = vld [vmem:[%s433 + $0xc5] sm:$0xff]
      %v670 = vld [vmem:[%s433 + $0xcd] sm:$0xff]
      %v671 = vld [vmem:[%s433 + $0xd5] sm:$0xff]
      %v672 = vld [vmem:[%s433 + $0xdd] sm:$0xff]
      %v673 = vld [vmem:[%s433 + $0xe5] sm:$0xff]
      %v674 = vld [vmem:[%s433 + $0xed] sm:$0xff]
      %v675 = vld [vmem:[%s433 + $0xf5] sm:$0xff]
      %v676 = vld [vmem:[%s433 + $0xfd] sm:$0xff]
      %v677 = vld [vmem:[%s433 + $0x105] sm:$0xff]
      %v678 = vld [vmem:[%s433 + $0x10d] sm:$0xff]
      %v679 = vld [vmem:[%s433 + $0x115] sm:$0xff]
      %v680 = vld [vmem:[%s433 + $0x11d] sm:$0xff]
      %v681 = vld [vmem:[%s433 + $0x125] sm:$0xff]
      %v682 = vld [vmem:[%s433 + $0x12d] sm:$0xff]
      %v683 = vld [vmem:[%s433 + $0x135] sm:$0xff]
      %v684 = vld [vmem:[%s433 + $0x13d] sm:$0xff]
      %v685 = vld [vmem:[%s433 + $0x145] sm:$0xff]
      %v686 = vld [vmem:[%s433 + $0x14d] sm:$0xff]
      %v687 = vld [vmem:[%s433 + $0x155] sm:$0xff]
      %v688 = vld [vmem:[%s433 + $0x15d] sm:$0xff]
      %v689 = vld [vmem:[%s433 + $0x165] sm:$0xf]
      %v690 = vld [vmem:[%s433 + $0x26] sm:$0xff]
      %v691 = vld [vmem:[%s433 + $0x2e] sm:$0xff]
      %v692 = vld [vmem:[%s433 + $0x36] sm:$0xff]
      %v693 = vld [vmem:[%s433 + $0x3e] sm:$0xff]
      %v694 = vld [vmem:[%s433 + $0x46] sm:$0xff]
      %v695 = vld [vmem:[%s433 + $0x4e] sm:$0xff]
      %v696 = vld [vmem:[%s433 + $0x56] sm:$0xff]
      %v697 = vld [vmem:[%s433 + $0x5e] sm:$0xff]
      %v698 = vld [vmem:[%s433 + $0x66] sm:$0xff]
      %v699 = vld [vmem:[%s433 + $0x6e] sm:$0xff]
      %v700 = vld [vmem:[%s433 + $0x76] sm:$0xff]
      %v701 = vld [vmem:[%s433 + $0x7e] sm:$0xff]
      %v702 = vld [vmem:[%s433 + $0x86] sm:$0xff]
      %v703 = vld [vmem:[%s433 + $0x8e] sm:$0xff]
      %v704 = vld [vmem:[%s433 + $0x96] sm:$0xff]
      %v705 = vld [vmem:[%s433 + $0x9e] sm:$0xff]
      %v706 = vld [vmem:[%s433 + $0xa6] sm:$0xff]
      %v707 = vld [vmem:[%s433 + $0xae] sm:$0xff]
      %v708 = vld [vmem:[%s433 + $0xb6] sm:$0xff]
      %v709 = vld [vmem:[%s433 + $0xbe] sm:$0xff]
      %v710 = vld [vmem:[%s433 + $0xc6] sm:$0xff]
      %v711 = vld [vmem:[%s433 + $0xce] sm:$0xff]
      %v712 = vld [vmem:[%s433 + $0xd6] sm:$0xff]
      %v713 = vld [vmem:[%s433 + $0xde] sm:$0xff]
      %v714 = vld [vmem:[%s433 + $0xe6] sm:$0xff]
      %v715 = vld [vmem:[%s433 + $0xee] sm:$0xff]
      %v716 = vld [vmem:[%s433 + $0xf6] sm:$0xff]
      %v717 = vld [vmem:[%s433 + $0xfe] sm:$0xff]
      %v718 = vld [vmem:[%s433 + $0x106] sm:$0xff]
      %v719 = vld [vmem:[%s433 + $0x10e] sm:$0xff]
      %v720 = vld [vmem:[%s433 + $0x116] sm:$0xff]
      %v721 = vld [vmem:[%s433 + $0x11e] sm:$0xff]
      %v722 = vld [vmem:[%s433 + $0x126] sm:$0xff]
      %v723 = vld [vmem:[%s433 + $0x12e] sm:$0xff]
      %v724 = vld [vmem:[%s433 + $0x136] sm:$0xff]
      %v725 = vld [vmem:[%s433 + $0x13e] sm:$0xff]
      %v726 = vld [vmem:[%s433 + $0x146] sm:$0xff]
      %v727 = vld [vmem:[%s433 + $0x14e] sm:$0xff]
      %v728 = vld [vmem:[%s433 + $0x156] sm:$0xff]
      %v729 = vld [vmem:[%s433 + $0x15e] sm:$0xff]
      %v730 = vld [vmem:[%s433 + $0x166] sm:$0xf]
      %772 = vrot.lane.b32.xlu0 %v479, 4
      %v773 = vpop.permute.xlu0 %772
      %774 = vrot.lane.b32.xlu0 %v480, 4
      %v775 = vpop.permute.xlu0 %774
      %776 = vrot.lane.b32.xlu0 %v481, 4
      %v777 = vpop.permute.xlu0 %776
      %778 = vrot.lane.b32.xlu0 %v482, 4
      %v779 = vpop.permute.xlu0 %778
      %780 = vrot.lane.b32.xlu0 %v483, 4
      %v781 = vpop.permute.xlu0 %780
      %782 = vrot.lane.b32.xlu0 %v484, 4
      %v783 = vpop.permute.xlu0 %782
      %784 = vrot.lane.b32.xlu0 %v485, 4
      %v785 = vpop.permute.xlu0 %784
      %786 = vrot.lane.b32.xlu0 %v486, 4
      %v787 = vpop.permute.xlu0 %786
      %788 = vrot.lane.b32.xlu0 %v487, 4
      %v789 = vpop.permute.xlu0 %788
      %790 = vrot.lane.b32.xlu0 %v488, 4
      %v791 = vpop.permute.xlu0 %790
      %792 = vrot.lane.b32.xlu0 %v489, 4
      %v793 = vpop.permute.xlu0 %792
      %794 = vrot.lane.b32.xlu0 %v490, 4
      %v795 = vpop.permute.xlu0 %794
      %796 = vrot.lane.b32.xlu0 %v491, 4
      %v797 = vpop.permute.xlu0 %796
      %798 = vrot.lane.b32.xlu0 %v492, 4
      %v799 = vpop.permute.xlu0 %798
      %800 = vrot.lane.b32.xlu0 %v493, 4
      %v801 = vpop.permute.xlu0 %800
      %802 = vrot.lane.b32.xlu0 %v494, 4
      %v803 = vpop.permute.xlu0 %802
      %804 = vrot.lane.b32.xlu0 %v495, 4
      %v805 = vpop.permute.xlu0 %804
      %806 = vrot.lane.b32.xlu0 %v496, 4
      %v807 = vpop.permute.xlu0 %806
      %808 = vrot.lane.b32.xlu0 %v497, 4
      %v809 = vpop.permute.xlu0 %808
      %810 = vrot.lane.b32.xlu0 %v498, 4
      %v811 = vpop.permute.xlu0 %810
      %812 = vrot.lane.b32.xlu0 %v499, 4
      %v813 = vpop.permute.xlu0 %812
      %814 = vrot.lane.b32.xlu0 %v500, 4
      %v815 = vpop.permute.xlu0 %814
      %816 = vrot.lane.b32.xlu0 %v501, 4
      %v817 = vpop.permute.xlu0 %816
      %818 = vrot.lane.b32.xlu0 %v502, 4
      %v819 = vpop.permute.xlu0 %818
      %820 = vrot.lane.b32.xlu0 %v503, 4
      %v821 = vpop.permute.xlu0 %820
      %822 = vrot.lane.b32.xlu0 %v504, 4
      %v823 = vpop.permute.xlu0 %822
      %824 = vrot.lane.b32.xlu0 %v505, 4
      %v825 = vpop.permute.xlu0 %824
      %826 = vrot.lane.b32.xlu0 %v506, 4
      %v827 = vpop.permute.xlu0 %826
      %828 = vrot.lane.b32.xlu0 %v507, 4
      %v829 = vpop.permute.xlu0 %828
      %830 = vrot.lane.b32.xlu0 %v508, 4
      %v831 = vpop.permute.xlu0 %830
      %832 = vrot.lane.b32.xlu0 %v509, 4
      %v833 = vpop.permute.xlu0 %832
      %834 = vrot.lane.b32.xlu0 %v510, 4
      %v835 = vpop.permute.xlu0 %834
      %836 = vrot.lane.b32.xlu0 %v511, 4
      %v837 = vpop.permute.xlu0 %836
      %838 = vrot.lane.b32.xlu0 %v512, 4
      %v839 = vpop.permute.xlu0 %838
      %840 = vrot.lane.b32.xlu0 %v513, 4
      %v841 = vpop.permute.xlu0 %840
      %842 = vrot.lane.b32.xlu0 %v514, 4
      %v843 = vpop.permute.xlu0 %842
      %844 = vrot.lane.b32.xlu0 %v515, 4
      %v845 = vpop.permute.xlu0 %844
      %846 = vrot.lane.b32.xlu0 %v516, 4
      %v847 = vpop.permute.xlu0 %846
      %848 = vrot.lane.b32.xlu0 %v517, 4
      %v849 = vpop.permute.xlu0 %848
      %850 = vrot.lane.b32.xlu0 %v518, 4
      %v851 = vpop.permute.xlu0 %850
      %852 = vrot.lane.b32.xlu0 %v519, 4
      %v853 = vpop.permute.xlu0 %852
      %936 = vrot.lane.b32.xlu0 %v520, 8
      %v937 = vpop.permute.xlu0 %936
      %938 = vrot.lane.b32.xlu0 %v521, 8
      %v939 = vpop.permute.xlu0 %938
      %940 = vrot.lane.b32.xlu0 %v522, 8
      %v941 = vpop.permute.xlu0 %940
      %942 = vrot.lane.b32.xlu0 %v523, 8
      %v943 = vpop.permute.xlu0 %942
      %944 = vrot.lane.b32.xlu0 %v524, 8
      %v945 = vpop.permute.xlu0 %944
      %946 = vrot.lane.b32.xlu0 %v525, 8
      %v947 = vpop.permute.xlu0 %946
      %948 = vrot.lane.b32.xlu0 %v526, 8
      %v949 = vpop.permute.xlu0 %948
      %950 = vrot.lane.b32.xlu0 %v527, 8
      %v951 = vpop.permute.xlu0 %950
      %952 = vrot.lane.b32.xlu0 %v528, 8
      %v953 = vpop.permute.xlu0 %952
      %954 = vrot.lane.b32.xlu0 %v529, 8
      %v955 = vpop.permute.xlu0 %954
      %956 = vrot.lane.b32.xlu0 %v530, 8
      %v957 = vpop.permute.xlu0 %956
      %958 = vrot.lane.b32.xlu0 %v531, 8
      %v959 = vpop.permute.xlu0 %958
      %960 = vrot.lane.b32.xlu0 %v532, 8
      %v961 = vpop.permute.xlu0 %960
      %962 = vrot.lane.b32.xlu0 %v533, 8
      %v963 = vpop.permute.xlu0 %962
      %964 = vrot.lane.b32.xlu0 %v534, 8
      %v965 = vpop.permute.xlu0 %964
      %966 = vrot.lane.b32.xlu0 %v535, 8
      %v967 = vpop.permute.xlu0 %966
      %968 = vrot.lane.b32.xlu0 %v536, 8
      %v969 = vpop.permute.xlu0 %968
      %970 = vrot.lane.b32.xlu0 %v537, 8
      %v971 = vpop.permute.xlu0 %970
      %972 = vrot.lane.b32.xlu0 %v538, 8
      %v973 = vpop.permute.xlu0 %972
      %974 = vrot.lane.b32.xlu0 %v539, 8
      %v975 = vpop.permute.xlu0 %974
      %976 = vrot.lane.b32.xlu0 %v540, 8
      %v977 = vpop.permute.xlu0 %976
      %978 = vrot.lane.b32.xlu0 %v541, 8
      %v979 = vpop.permute.xlu0 %978
      %980 = vrot.lane.b32.xlu0 %v542, 8
      %v981 = vpop.permute.xlu0 %980
      %982 = vrot.lane.b32.xlu0 %v543, 8
      %v983 = vpop.permute.xlu0 %982
      %984 = vrot.lane.b32.xlu0 %v544, 8
      %v985 = vpop.permute.xlu0 %984
      %986 = vrot.lane.b32.xlu0 %v545, 8
      %v987 = vpop.permute.xlu0 %986
      %988 = vrot.lane.b32.xlu0 %v546, 8
      %v989 = vpop.permute.xlu0 %988
      %990 = vrot.lane.b32.xlu0 %v547, 8
      %v991 = vpop.permute.xlu0 %990
      %992 = vrot.lane.b32.xlu0 %v548, 8
      %v993 = vpop.permute.xlu0 %992
      %994 = vrot.lane.b32.xlu0 %v549, 8
      %v995 = vpop.permute.xlu0 %994
      %996 = vrot.lane.b32.xlu0 %v550, 8
      %v997 = vpop.permute.xlu0 %996
      %998 = vrot.lane.b32.xlu0 %v551, 8
      %v999 = vpop.permute.xlu0 %998
      %1000 = vrot.lane.b32.xlu0 %v552, 8
      %v1001 = vpop.permute.xlu0 %1000
      %1002 = vrot.lane.b32.xlu0 %v553, 8
      %v1003 = vpop.permute.xlu0 %1002
      %1004 = vrot.lane.b32.xlu0 %v554, 8
      %v1005 = vpop.permute.xlu0 %1004
      %1006 = vrot.lane.b32.xlu0 %v555, 8
      %v1007 = vpop.permute.xlu0 %1006
      %1008 = vrot.lane.b32.xlu0 %v556, 8
      %v1009 = vpop.permute.xlu0 %1008
      %1010 = vrot.lane.b32.xlu0 %v557, 8
      %v1011 = vpop.permute.xlu0 %1010
      %1012 = vrot.lane.b32.xlu0 %v558, 8
      %v1013 = vpop.permute.xlu0 %1012
      %1014 = vrot.lane.b32.xlu0 %v559, 8
      %v1015 = vpop.permute.xlu0 %1014
      %1016 = vrot.lane.b32.xlu0 %v560, 8
      %v1017 = vpop.permute.xlu0 %1016
      %1062 = vrot.lane.b32.xlu0 %v522, 12
      %v1063 = vpop.permute.xlu0 %1062
      %1064 = vrot.lane.b32.xlu0 %v523, 12
      %v1065 = vpop.permute.xlu0 %1064
      %1066 = vrot.lane.b32.xlu0 %v524, 12
      %v1067 = vpop.permute.xlu0 %1066
      %1068 = vrot.lane.b32.xlu0 %v525, 12
      %v1069 = vpop.permute.xlu0 %1068
      %1070 = vrot.lane.b32.xlu0 %v526, 12
      %v1071 = vpop.permute.xlu0 %1070
      %1072 = vrot.lane.b32.xlu0 %v527, 12
      %v1073 = vpop.permute.xlu0 %1072
      %1074 = vrot.lane.b32.xlu0 %v528, 12
      %v1075 = vpop.permute.xlu0 %1074
      %1076 = vrot.lane.b32.xlu0 %v529, 12
      %v1077 = vpop.permute.xlu0 %1076
      %1078 = vrot.lane.b32.xlu0 %v530, 12
      %v1079 = vpop.permute.xlu0 %1078
      %1080 = vrot.lane.b32.xlu0 %v531, 12
      %v1081 = vpop.permute.xlu0 %1080
      %1082 = vrot.lane.b32.xlu0 %v532, 12
      %v1083 = vpop.permute.xlu0 %1082
      %1084 = vrot.lane.b32.xlu0 %v533, 12
      %v1085 = vpop.permute.xlu0 %1084
      %1086 = vrot.lane.b32.xlu0 %v534, 12
      %v1087 = vpop.permute.xlu0 %1086
      %1088 = vrot.lane.b32.xlu0 %v535, 12
      %v1089 = vpop.permute.xlu0 %1088
      %1090 = vrot.lane.b32.xlu0 %v536, 12
      %v1091 = vpop.permute.xlu0 %1090
      %1092 = vrot.lane.b32.xlu0 %v537, 12
      %v1093 = vpop.permute.xlu0 %1092
      %1094 = vrot.lane.b32.xlu0 %v538, 12
      %v1095 = vpop.permute.xlu0 %1094
      %1096 = vrot.lane.b32.xlu0 %v539, 12
      %v1097 = vpop.permute.xlu0 %1096
      %1098 = vrot.lane.b32.xlu0 %v540, 12
      %v1099 = vpop.permute.xlu0 %1098
      %1100 = vrot.lane.b32.xlu0 %v541, 12
      %v1101 = vpop.permute.xlu0 %1100
      %1102 = vrot.lane.b32.xlu0 %v542, 12
      %v1103 = vpop.permute.xlu0 %1102
      %1104 = vrot.lane.b32.xlu0 %v543, 12
      %v1105 = vpop.permute.xlu0 %1104
      %1106 = vrot.lane.b32.xlu0 %v544, 12
      %v1107 = vpop.permute.xlu0 %1106
      %1108 = vrot.lane.b32.xlu0 %v545, 12
      %v1109 = vpop.permute.xlu0 %1108
      %1110 = vrot.lane.b32.xlu0 %v546, 12
      %v1111 = vpop.permute.xlu0 %1110
      %1112 = vrot.lane.b32.xlu0 %v547, 12
      %v1113 = vpop.permute.xlu0 %1112
      %1114 = vrot.lane.b32.xlu0 %v548, 12
      %v1115 = vpop.permute.xlu0 %1114
      %1116 = vrot.lane.b32.xlu0 %v549, 12
      %v1117 = vpop.permute.xlu0 %1116
      %1118 = vrot.lane.b32.xlu0 %v550, 12
      %v1119 = vpop.permute.xlu0 %1118
      %1120 = vrot.lane.b32.xlu0 %v551, 12
      %v1121 = vpop.permute.xlu0 %1120
      %1122 = vrot.lane.b32.xlu0 %v552, 12
      %v1123 = vpop.permute.xlu0 %1122
      %1124 = vrot.lane.b32.xlu0 %v553, 12
      %v1125 = vpop.permute.xlu0 %1124
      %1126 = vrot.lane.b32.xlu0 %v554, 12
      %v1127 = vpop.permute.xlu0 %1126
      %1128 = vrot.lane.b32.xlu0 %v555, 12
      %v1129 = vpop.permute.xlu0 %1128
      %1130 = vrot.lane.b32.xlu0 %v556, 12
      %v1131 = vpop.permute.xlu0 %1130
      %1132 = vrot.lane.b32.xlu0 %v557, 12
      %v1133 = vpop.permute.xlu0 %1132
      %1134 = vrot.lane.b32.xlu0 %v558, 12
      %v1135 = vpop.permute.xlu0 %1134
      %1136 = vrot.lane.b32.xlu0 %v559, 12
      %v1137 = vpop.permute.xlu0 %1136
      %1138 = vrot.lane.b32.xlu0 %v561, 12
      %v1139 = vpop.permute.xlu0 %1138
      %1140 = vrot.lane.b32.xlu0 %v562, 12
      %v1141 = vpop.permute.xlu0 %1140
      %1142 = vrot.lane.b32.xlu0 %v563, 12
      %v1143 = vpop.permute.xlu0 %1142
      %1226 = vrot.lane.b32.xlu0 %v564, 16
      %v1227 = vpop.permute.xlu0 %1226
      %1228 = vrot.lane.b32.xlu0 %v565, 16
      %v1229 = vpop.permute.xlu0 %1228
      %1230 = vrot.lane.b32.xlu0 %v566, 16
      %v1231 = vpop.permute.xlu0 %1230
      %1232 = vrot.lane.b32.xlu0 %v567, 16
      %v1233 = vpop.permute.xlu0 %1232
      %1234 = vrot.lane.b32.xlu0 %v568, 16
      %v1235 = vpop.permute.xlu0 %1234
      %1236 = vrot.lane.b32.xlu0 %v569, 16
      %v1237 = vpop.permute.xlu0 %1236
      %1238 = vrot.lane.b32.xlu0 %v570, 16
      %v1239 = vpop.permute.xlu0 %1238
      %1240 = vrot.lane.b32.xlu0 %v571, 16
      %v1241 = vpop.permute.xlu0 %1240
      %1242 = vrot.lane.b32.xlu0 %v572, 16
      %v1243 = vpop.permute.xlu0 %1242
      %1244 = vrot.lane.b32.xlu0 %v573, 16
      %v1245 = vpop.permute.xlu0 %1244
      %1246 = vrot.lane.b32.xlu0 %v574, 16
      %v1247 = vpop.permute.xlu0 %1246
      %1248 = vrot.lane.b32.xlu0 %v575, 16
      %v1249 = vpop.permute.xlu0 %1248
      %1250 = vrot.lane.b32.xlu0 %v576, 16
      %v1251 = vpop.permute.xlu0 %1250
      %1252 = vrot.lane.b32.xlu0 %v577, 16
      %v1253 = vpop.permute.xlu0 %1252
      %1254 = vrot.lane.b32.xlu0 %v578, 16
      %v1255 = vpop.permute.xlu0 %1254
      %1256 = vrot.lane.b32.xlu0 %v579, 16
      %v1257 = vpop.permute.xlu0 %1256
      %1258 = vrot.lane.b32.xlu0 %v580, 16
      %v1259 = vpop.permute.xlu0 %1258
      %1260 = vrot.lane.b32.xlu0 %v581, 16
      %v1261 = vpop.permute.xlu0 %1260
      %1262 = vrot.lane.b32.xlu0 %v582, 16
      %v1263 = vpop.permute.xlu0 %1262
      %1264 = vrot.lane.b32.xlu0 %v583, 16
      %v1265 = vpop.permute.xlu0 %1264
      %1266 = vrot.lane.b32.xlu0 %v584, 16
      %v1267 = vpop.permute.xlu0 %1266
      %1268 = vrot.lane.b32.xlu0 %v585, 16
      %v1269 = vpop.permute.xlu0 %1268
      %1270 = vrot.lane.b32.xlu0 %v586, 16
      %v1271 = vpop.permute.xlu0 %1270
      %1272 = vrot.lane.b32.xlu0 %v587, 16
      %v1273 = vpop.permute.xlu0 %1272
      %1274 = vrot.lane.b32.xlu0 %v588, 16
      %v1275 = vpop.permute.xlu0 %1274
      %1276 = vrot.lane.b32.xlu0 %v589, 16
      %v1277 = vpop.permute.xlu0 %1276
      %1278 = vrot.lane.b32.xlu0 %v590, 16
      %v1279 = vpop.permute.xlu0 %1278
      %1280 = vrot.lane.b32.xlu0 %v591, 16
      %v1281 = vpop.permute.xlu0 %1280
      %1282 = vrot.lane.b32.xlu0 %v592, 16
      %v1283 = vpop.permute.xlu0 %1282
      %1284 = vrot.lane.b32.xlu0 %v593, 16
      %v1285 = vpop.permute.xlu0 %1284
      %1286 = vrot.lane.b32.xlu0 %v594, 16
      %v1287 = vpop.permute.xlu0 %1286
      %1288 = vrot.lane.b32.xlu0 %v595, 16
      %v1289 = vpop.permute.xlu0 %1288
      %1290 = vrot.lane.b32.xlu0 %v596, 16
      %v1291 = vpop.permute.xlu0 %1290
      %1292 = vrot.lane.b32.xlu0 %v597, 16
      %v1293 = vpop.permute.xlu0 %1292
      %1294 = vrot.lane.b32.xlu0 %v598, 16
      %v1295 = vpop.permute.xlu0 %1294
      %1296 = vrot.lane.b32.xlu0 %v599, 16
      %v1297 = vpop.permute.xlu0 %1296
      %1298 = vrot.lane.b32.xlu0 %v600, 16
      %v1299 = vpop.permute.xlu0 %1298
      %1300 = vrot.lane.b32.xlu0 %v601, 16
      %v1301 = vpop.permute.xlu0 %1300
      %1302 = vrot.lane.b32.xlu0 %v602, 16
      %v1303 = vpop.permute.xlu0 %1302
      %1304 = vrot.lane.b32.xlu0 %v603, 16
      %v1305 = vpop.permute.xlu0 %1304
      %1306 = vrot.lane.b32.xlu0 %v604, 16
      %v1307 = vpop.permute.xlu0 %1306
      %1390 = vrot.lane.b32.xlu0 %v605, 20
      %v1391 = vpop.permute.xlu0 %1390
      %1392 = vrot.lane.b32.xlu0 %v606, 20
      %v1393 = vpop.permute.xlu0 %1392
      %1394 = vrot.lane.b32.xlu0 %v607, 20
      %v1395 = vpop.permute.xlu0 %1394
      %1396 = vrot.lane.b32.xlu0 %v608, 20
      %v1397 = vpop.permute.xlu0 %1396
      %1398 = vrot.lane.b32.xlu0 %v609, 20
      %v1399 = vpop.permute.xlu0 %1398
      %1400 = vrot.lane.b32.xlu0 %v610, 20
      %v1401 = vpop.permute.xlu0 %1400
      %1402 = vrot.lane.b32.xlu0 %v611, 20
      %v1403 = vpop.permute.xlu0 %1402
      %1404 = vrot.lane.b32.xlu0 %v612, 20
      %v1405 = vpop.permute.xlu0 %1404
      %1406 = vrot.lane.b32.xlu0 %v613, 20
      %v1407 = vpop.permute.xlu0 %1406
      %1408 = vrot.lane.b32.xlu0 %v614, 20
      %v1409 = vpop.permute.xlu0 %1408
      %1410 = vrot.lane.b32.xlu0 %v615, 20
      %v1411 = vpop.permute.xlu0 %1410
      %1412 = vrot.lane.b32.xlu0 %v616, 20
      %v1413 = vpop.permute.xlu0 %1412
      %1414 = vrot.lane.b32.xlu0 %v617, 20
      %v1415 = vpop.permute.xlu0 %1414
      %1416 = vrot.lane.b32.xlu0 %v618, 20
      %v1417 = vpop.permute.xlu0 %1416
      %1418 = vrot.lane.b32.xlu0 %v619, 20
      %v1419 = vpop.permute.xlu0 %1418
      %1420 = vrot.lane.b32.xlu0 %v620, 20
      %v1421 = vpop.permute.xlu0 %1420
      %1422 = vrot.lane.b32.xlu0 %v621, 20
      %v1423 = vpop.permute.xlu0 %1422
      %1424 = vrot.lane.b32.xlu0 %v622, 20
      %v1425 = vpop.permute.xlu0 %1424
      %1426 = vrot.lane.b32.xlu0 %v623, 20
      %v1427 = vpop.permute.xlu0 %1426
      %1428 = vrot.lane.b32.xlu0 %v624, 20
      %v1429 = vpop.permute.xlu0 %1428
      %1430 = vrot.lane.b32.xlu0 %v625, 20
      %v1431 = vpop.permute.xlu0 %1430
      %1432 = vrot.lane.b32.xlu0 %v626, 20
      %v1433 = vpop.permute.xlu0 %1432
      %1434 = vrot.lane.b32.xlu0 %v627, 20
      %v1435 = vpop.permute.xlu0 %1434
      %1436 = vrot.lane.b32.xlu0 %v628, 20
      %v1437 = vpop.permute.xlu0 %1436
      %1438 = vrot.lane.b32.xlu0 %v629, 20
      %v1439 = vpop.permute.xlu0 %1438
      %1440 = vrot.lane.b32.xlu0 %v630, 20
      %v1441 = vpop.permute.xlu0 %1440
      %1442 = vrot.lane.b32.xlu0 %v631, 20
      %v1443 = vpop.permute.xlu0 %1442
      %1444 = vrot.lane.b32.xlu0 %v632, 20
      %v1445 = vpop.permute.xlu0 %1444
      %1446 = vrot.lane.b32.xlu0 %v633, 20
      %v1447 = vpop.permute.xlu0 %1446
      %1448 = vrot.lane.b32.xlu0 %v634, 20
      %v1449 = vpop.permute.xlu0 %1448
      %1450 = vrot.lane.b32.xlu0 %v635, 20
      %v1451 = vpop.permute.xlu0 %1450
      %1452 = vrot.lane.b32.xlu0 %v636, 20
      %v1453 = vpop.permute.xlu0 %1452
      %1454 = vrot.lane.b32.xlu0 %v637, 20
      %v1455 = vpop.permute.xlu0 %1454
      %1456 = vrot.lane.b32.xlu0 %v638, 20
      %v1457 = vpop.permute.xlu0 %1456
      %1458 = vrot.lane.b32.xlu0 %v639, 20
      %v1459 = vpop.permute.xlu0 %1458
      %1460 = vrot.lane.b32.xlu0 %v640, 20
      %v1461 = vpop.permute.xlu0 %1460
      %1462 = vrot.lane.b32.xlu0 %v641, 20
      %v1463 = vpop.permute.xlu0 %1462
      %1464 = vrot.lane.b32.xlu0 %v642, 20
      %v1465 = vpop.permute.xlu0 %1464
      %1466 = vrot.lane.b32.xlu0 %v643, 20
      %v1467 = vpop.permute.xlu0 %1466
      %1468 = vrot.lane.b32.xlu0 %v644, 20
      %v1469 = vpop.permute.xlu0 %1468
      %1470 = vrot.lane.b32.xlu0 %v645, 20
      %v1471 = vpop.permute.xlu0 %1470
      %1516 = vrot.lane.b32.xlu0 %v607, 24
      %v1517 = vpop.permute.xlu0 %1516
      %1518 = vrot.lane.b32.xlu0 %v608, 24
      %v1519 = vpop.permute.xlu0 %1518
      %1520 = vrot.lane.b32.xlu0 %v609, 24
      %v1521 = vpop.permute.xlu0 %1520
      %1522 = vrot.lane.b32.xlu0 %v610, 24
      %v1523 = vpop.permute.xlu0 %1522
      %1524 = vrot.lane.b32.xlu0 %v611, 24
      %v1525 = vpop.permute.xlu0 %1524
      %1526 = vrot.lane.b32.xlu0 %v612, 24
      %v1527 = vpop.permute.xlu0 %1526
      %1528 = vrot.lane.b32.xlu0 %v613, 24
      %v1529 = vpop.permute.xlu0 %1528
      %1530 = vrot.lane.b32.xlu0 %v614, 24
      %v1531 = vpop.permute.xlu0 %1530
      %1532 = vrot.lane.b32.xlu0 %v615, 24
      %v1533 = vpop.permute.xlu0 %1532
      %1534 = vrot.lane.b32.xlu0 %v616, 24
      %v1535 = vpop.permute.xlu0 %1534
      %1536 = vrot.lane.b32.xlu0 %v617, 24
      %v1537 = vpop.permute.xlu0 %1536
      %1538 = vrot.lane.b32.xlu0 %v618, 24
      %v1539 = vpop.permute.xlu0 %1538
      %1540 = vrot.lane.b32.xlu0 %v619, 24
      %v1541 = vpop.permute.xlu0 %1540
      %1542 = vrot.lane.b32.xlu0 %v620, 24
      %v1543 = vpop.permute.xlu0 %1542
      %1544 = vrot.lane.b32.xlu0 %v621, 24
      %v1545 = vpop.permute.xlu0 %1544
      %1546 = vrot.lane.b32.xlu0 %v622, 24
      %v1547 = vpop.permute.xlu0 %1546
      %1548 = vrot.lane.b32.xlu0 %v623, 24
      %v1549 = vpop.permute.xlu0 %1548
      %1550 = vrot.lane.b32.xlu0 %v624, 24
      %v1551 = vpop.permute.xlu0 %1550
      %1552 = vrot.lane.b32.xlu0 %v625, 24
      %v1553 = vpop.permute.xlu0 %1552
      %1554 = vrot.lane.b32.xlu0 %v626, 24
      %v1555 = vpop.permute.xlu0 %1554
      %1556 = vrot.lane.b32.xlu0 %v627, 24
      %v1557 = vpop.permute.xlu0 %1556
      %1558 = vrot.lane.b32.xlu0 %v628, 24
      %v1559 = vpop.permute.xlu0 %1558
      %1560 = vrot.lane.b32.xlu0 %v629, 24
      %v1561 = vpop.permute.xlu0 %1560
      %1562 = vrot.lane.b32.xlu0 %v630, 24
      %v1563 = vpop.permute.xlu0 %1562
      %1564 = vrot.lane.b32.xlu0 %v631, 24
      %v1565 = vpop.permute.xlu0 %1564
      %1566 = vrot.lane.b32.xlu0 %v632, 24
      %v1567 = vpop.permute.xlu0 %1566
      %1568 = vrot.lane.b32.xlu0 %v633, 24
      %v1569 = vpop.permute.xlu0 %1568
      %1570 = vrot.lane.b32.xlu0 %v634, 24
      %v1571 = vpop.permute.xlu0 %1570
      %1572 = vrot.lane.b32.xlu0 %v635, 24
      %v1573 = vpop.permute.xlu0 %1572
      %1574 = vrot.lane.b32.xlu0 %v636, 24
      %v1575 = vpop.permute.xlu0 %1574
      %1576 = vrot.lane.b32.xlu0 %v637, 24
      %v1577 = vpop.permute.xlu0 %1576
      %1578 = vrot.lane.b32.xlu0 %v638, 24
      %v1579 = vpop.permute.xlu0 %1578
      %1580 = vrot.lane.b32.xlu0 %v639, 24
      %v1581 = vpop.permute.xlu0 %1580
      %1582 = vrot.lane.b32.xlu0 %v640, 24
      %v1583 = vpop.permute.xlu0 %1582
      %1584 = vrot.lane.b32.xlu0 %v641, 24
      %v1585 = vpop.permute.xlu0 %1584
      %1586 = vrot.lane.b32.xlu0 %v642, 24
      %v1587 = vpop.permute.xlu0 %1586
      %1588 = vrot.lane.b32.xlu0 %v643, 24
      %v1589 = vpop.permute.xlu0 %1588
      %1590 = vrot.lane.b32.xlu0 %v644, 24
      %v1591 = vpop.permute.xlu0 %1590
      %1592 = vrot.lane.b32.xlu0 %v646, 24
      %v1593 = vpop.permute.xlu0 %1592
      %1594 = vrot.lane.b32.xlu0 %v647, 24
      %v1595 = vpop.permute.xlu0 %1594
      %1596 = vrot.lane.b32.xlu0 %v648, 24
      %v1597 = vpop.permute.xlu0 %1596
      %1680 = vrot.lane.b32.xlu0 %v649, 28
      %v1681 = vpop.permute.xlu0 %1680
      %1682 = vrot.lane.b32.xlu0 %v650, 28
      %v1683 = vpop.permute.xlu0 %1682
      %1684 = vrot.lane.b32.xlu0 %v651, 28
      %v1685 = vpop.permute.xlu0 %1684
      %1686 = vrot.lane.b32.xlu0 %v652, 28
      %v1687 = vpop.permute.xlu0 %1686
      %1688 = vrot.lane.b32.xlu0 %v653, 28
      %v1689 = vpop.permute.xlu0 %1688
      %1690 = vrot.lane.b32.xlu0 %v654, 28
      %v1691 = vpop.permute.xlu0 %1690
      %1692 = vrot.lane.b32.xlu0 %v655, 28
      %v1693 = vpop.permute.xlu0 %1692
      %1694 = vrot.lane.b32.xlu0 %v656, 28
      %v1695 = vpop.permute.xlu0 %1694
      %1696 = vrot.lane.b32.xlu0 %v657, 28
      %v1697 = vpop.permute.xlu0 %1696
      %1698 = vrot.lane.b32.xlu0 %v658, 28
      %v1699 = vpop.permute.xlu0 %1698
      %1700 = vrot.lane.b32.xlu0 %v659, 28
      %v1701 = vpop.permute.xlu0 %1700
      %1702 = vrot.lane.b32.xlu0 %v660, 28
      %v1703 = vpop.permute.xlu0 %1702
      %1704 = vrot.lane.b32.xlu0 %v661, 28
      %v1705 = vpop.permute.xlu0 %1704
      %1706 = vrot.lane.b32.xlu0 %v662, 28
      %v1707 = vpop.permute.xlu0 %1706
      %1708 = vrot.lane.b32.xlu0 %v663, 28
      %v1709 = vpop.permute.xlu0 %1708
      %1710 = vrot.lane.b32.xlu0 %v664, 28
      %v1711 = vpop.permute.xlu0 %1710
      %1712 = vrot.lane.b32.xlu0 %v665, 28
      %v1713 = vpop.permute.xlu0 %1712
      %1714 = vrot.lane.b32.xlu0 %v666, 28
      %v1715 = vpop.permute.xlu0 %1714
      %1716 = vrot.lane.b32.xlu0 %v667, 28
      %v1717 = vpop.permute.xlu0 %1716
      %1718 = vrot.lane.b32.xlu0 %v668, 28
      %v1719 = vpop.permute.xlu0 %1718
      %1720 = vrot.lane.b32.xlu0 %v669, 28
      %v1721 = vpop.permute.xlu0 %1720
      %1722 = vrot.lane.b32.xlu0 %v670, 28
      %v1723 = vpop.permute.xlu0 %1722
      %1724 = vrot.lane.b32.xlu0 %v671, 28
      %v1725 = vpop.permute.xlu0 %1724
      %1726 = vrot.lane.b32.xlu0 %v672, 28
      %v1727 = vpop.permute.xlu0 %1726
      %1728 = vrot.lane.b32.xlu0 %v673, 28
      %v1729 = vpop.permute.xlu0 %1728
      %1730 = vrot.lane.b32.xlu0 %v674, 28
      %v1731 = vpop.permute.xlu0 %1730
      %1732 = vrot.lane.b32.xlu0 %v675, 28
      %v1733 = vpop.permute.xlu0 %1732
      %1734 = vrot.lane.b32.xlu0 %v676, 28
      %v1735 = vpop.permute.xlu0 %1734
      %1736 = vrot.lane.b32.xlu0 %v677, 28
      %v1737 = vpop.permute.xlu0 %1736
      %1738 = vrot.lane.b32.xlu0 %v678, 28
      %v1739 = vpop.permute.xlu0 %1738
      %1740 = vrot.lane.b32.xlu0 %v679, 28
      %v1741 = vpop.permute.xlu0 %1740
      %1742 = vrot.lane.b32.xlu0 %v680, 28
      %v1743 = vpop.permute.xlu0 %1742
      %1744 = vrot.lane.b32.xlu0 %v681, 28
      %v1745 = vpop.permute.xlu0 %1744
      %1746 = vrot.lane.b32.xlu0 %v682, 28
      %v1747 = vpop.permute.xlu0 %1746
      %1748 = vrot.lane.b32.xlu0 %v683, 28
      %v1749 = vpop.permute.xlu0 %1748
      %1750 = vrot.lane.b32.xlu0 %v684, 28
      %v1751 = vpop.permute.xlu0 %1750
      %1752 = vrot.lane.b32.xlu0 %v685, 28
      %v1753 = vpop.permute.xlu0 %1752
      %1754 = vrot.lane.b32.xlu0 %v686, 28
      %v1755 = vpop.permute.xlu0 %1754
      %1756 = vrot.lane.b32.xlu0 %v687, 28
      %v1757 = vpop.permute.xlu0 %1756
      %1758 = vrot.lane.b32.xlu0 %v688, 28
      %v1759 = vpop.permute.xlu0 %1758
      %1760 = vrot.lane.b32.xlu0 %v689, 28
      %v1761 = vpop.permute.xlu0 %1760
      %1844 = vrot.lane.b32.xlu0 %v690, 32
      %v1845 = vpop.permute.xlu0 %1844
      %1846 = vrot.lane.b32.xlu0 %v691, 32
      %v1847 = vpop.permute.xlu0 %1846
      %1848 = vrot.lane.b32.xlu0 %v692, 32
      %v1849 = vpop.permute.xlu0 %1848
      %1850 = vrot.lane.b32.xlu0 %v693, 32
      %v1851 = vpop.permute.xlu0 %1850
      %1852 = vrot.lane.b32.xlu0 %v694, 32
      %v1853 = vpop.permute.xlu0 %1852
      %1854 = vrot.lane.b32.xlu0 %v695, 32
      %v1855 = vpop.permute.xlu0 %1854
      %1856 = vrot.lane.b32.xlu0 %v696, 32
      %v1857 = vpop.permute.xlu0 %1856
      %1858 = vrot.lane.b32.xlu0 %v697, 32
      %v1859 = vpop.permute.xlu0 %1858
      %1860 = vrot.lane.b32.xlu0 %v698, 32
      %v1861 = vpop.permute.xlu0 %1860
      %1862 = vrot.lane.b32.xlu0 %v699, 32
      %v1863 = vpop.permute.xlu0 %1862
      %1864 = vrot.lane.b32.xlu0 %v700, 32
      %v1865 = vpop.permute.xlu0 %1864
      %1866 = vrot.lane.b32.xlu0 %v701, 32
      %v1867 = vpop.permute.xlu0 %1866
      %1868 = vrot.lane.b32.xlu0 %v702, 32
      %v1869 = vpop.permute.xlu0 %1868
      %1870 = vrot.lane.b32.xlu0 %v703, 32
      %v1871 = vpop.permute.xlu0 %1870
      %1872 = vrot.lane.b32.xlu0 %v704, 32
      %v1873 = vpop.permute.xlu0 %1872
      %1874 = vrot.lane.b32.xlu0 %v705, 32
      %v1875 = vpop.permute.xlu0 %1874
      %1876 = vrot.lane.b32.xlu0 %v706, 32
      %v1877 = vpop.permute.xlu0 %1876
      %1878 = vrot.lane.b32.xlu0 %v707, 32
      %v1879 = vpop.permute.xlu0 %1878
      %1880 = vrot.lane.b32.xlu0 %v708, 32
      %v1881 = vpop.permute.xlu0 %1880
      %1882 = vrot.lane.b32.xlu0 %v709, 32
      %v1883 = vpop.permute.xlu0 %1882
      %1884 = vrot.lane.b32.xlu0 %v710, 32
      %v1885 = vpop.permute.xlu0 %1884
      %1886 = vrot.lane.b32.xlu0 %v711, 32
      %v1887 = vpop.permute.xlu0 %1886
      %1888 = vrot.lane.b32.xlu0 %v712, 32
      %v1889 = vpop.permute.xlu0 %1888
      %1890 = vrot.lane.b32.xlu0 %v713, 32
      %v1891 = vpop.permute.xlu0 %1890
      %1892 = vrot.lane.b32.xlu0 %v714, 32
      %v1893 = vpop.permute.xlu0 %1892
      %1894 = vrot.lane.b32.xlu0 %v715, 32
      %v1895 = vpop.permute.xlu0 %1894
      %1896 = vrot.lane.b32.xlu0 %v716, 32
      %v1897 = vpop.permute.xlu0 %1896
      %1898 = vrot.lane.b32.xlu0 %v717, 32
      %v1899 = vpop.permute.xlu0 %1898
      %1900 = vrot.lane.b32.xlu0 %v718, 32
      %v1901 = vpop.permute.xlu0 %1900
      %1902 = vrot.lane.b32.xlu0 %v719, 32
      %v1903 = vpop.permute.xlu0 %1902
      %1904 = vrot.lane.b32.xlu0 %v720, 32
      %v1905 = vpop.permute.xlu0 %1904
      %1906 = vrot.lane.b32.xlu0 %v721, 32
      %v1907 = vpop.permute.xlu0 %1906
      %1908 = vrot.lane.b32.xlu0 %v722, 32
      %v1909 = vpop.permute.xlu0 %1908
      %1910 = vrot.lane.b32.xlu0 %v723, 32
      %v1911 = vpop.permute.xlu0 %1910
      %1912 = vrot.lane.b32.xlu0 %v724, 32
      %v1913 = vpop.permute.xlu0 %1912
      %1914 = vrot.lane.b32.xlu0 %v725, 32
      %v1915 = vpop.permute.xlu0 %1914
      %1916 = vrot.lane.b32.xlu0 %v726, 32
      %v1917 = vpop.permute.xlu0 %1916
      %1918 = vrot.lane.b32.xlu0 %v727, 32
      %v1919 = vpop.permute.xlu0 %1918
      %1920 = vrot.lane.b32.xlu0 %v728, 32
      %v1921 = vpop.permute.xlu0 %1920
      %1922 = vrot.lane.b32.xlu0 %v729, 32
      %v1923 = vpop.permute.xlu0 %1922
      %1924 = vrot.lane.b32.xlu0 %v730, 32
      %v1925 = vpop.permute.xlu0 %1924
      %vm1967 = vcmask 31744
      %v1968 = vsel %vm1967, %v438, %v773
      %v1969 = vsel %vm1967, %v439, %v775
      %v1970 = vsel %vm1967, %v440, %v777
      %v1971 = vsel %vm1967, %v441, %v779
      %v1972 = vsel %vm1967, %v442, %v781
      %v1973 = vsel %vm1967, %v443, %v783
      %v1974 = vsel %vm1967, %v444, %v785
      %v1975 = vsel %vm1967, %v445, %v787
      %v1976 = vsel %vm1967, %v446, %v789
      %v1977 = vsel %vm1967, %v447, %v791
      %v1978 = vsel %vm1967, %v448, %v793
      %v1979 = vsel %vm1967, %v449, %v795
      %v1980 = vsel %vm1967, %v450, %v797
      %v1981 = vsel %vm1967, %v451, %v799
      %v1982 = vsel %vm1967, %v452, %v801
      %v1983 = vsel %vm1967, %v453, %v803
      %v1984 = vsel %vm1967, %v454, %v805
      %v1985 = vsel %vm1967, %v455, %v807
      %v1986 = vsel %vm1967, %v456, %v809
      %v1987 = vsel %vm1967, %v457, %v811
      %v1988 = vsel %vm1967, %v458, %v813
      %v1989 = vsel %vm1967, %v459, %v815
      %v1990 = vsel %vm1967, %v460, %v817
      %v1991 = vsel %vm1967, %v461, %v819
      %v1992 = vsel %vm1967, %v462, %v821
      %v1993 = vsel %vm1967, %v463, %v823
      %v1994 = vsel %vm1967, %v464, %v825
      %v1995 = vsel %vm1967, %v465, %v827
      %v1996 = vsel %vm1967, %v466, %v829
      %v1997 = vsel %vm1967, %v467, %v831
      %v1998 = vsel %vm1967, %v468, %v833
      %v1999 = vsel %vm1967, %v469, %v835
      %v2000 = vsel %vm1967, %v470, %v837
      %v2001 = vsel %vm1967, %v471, %v839
      %v2002 = vsel %vm1967, %v472, %v841
      %v2003 = vsel %vm1967, %v473, %v843
      %v2004 = vsel %vm1967, %v474, %v845
      %v2005 = vsel %vm1967, %v475, %v847
      %v2006 = vsel %vm1967, %v476, %v849
      %v2007 = vsel %vm1967, %v477, %v851
      %v2008 = vsel %vm1967, %v478, %v853
      %vm2009 = vcmask 64512
      %v2010 = vsel %vm2009, %v1968, %v937
      %v2011 = vsel %vm2009, %v1969, %v939
      %v2012 = vsel %vm2009, %v1970, %v941
      %v2013 = vsel %vm2009, %v1971, %v943
      %v2014 = vsel %vm2009, %v1972, %v945
      %v2015 = vsel %vm2009, %v1973, %v947
      %v2016 = vsel %vm2009, %v1974, %v949
      %v2017 = vsel %vm2009, %v1975, %v951
      %v2018 = vsel %vm2009, %v1976, %v953
      %v2019 = vsel %vm2009, %v1977, %v955
      %v2020 = vsel %vm2009, %v1978, %v957
      %v2021 = vsel %vm2009, %v1979, %v959
      %v2022 = vsel %vm2009, %v1980, %v961
      %v2023 = vsel %vm2009, %v1981, %v963
      %v2024 = vsel %vm2009, %v1982, %v965
      %v2025 = vsel %vm2009, %v1983, %v967
      %v2026 = vsel %vm2009, %v1984, %v969
      %v2027 = vsel %vm2009, %v1985, %v971
      %v2028 = vsel %vm2009, %v1986, %v973
      %v2029 = vsel %vm2009, %v1987, %v975
      %v2030 = vsel %vm2009, %v1988, %v977
      %v2031 = vsel %vm2009, %v1989, %v979
      %v2032 = vsel %vm2009, %v1990, %v981
      %v2033 = vsel %vm2009, %v1991, %v983
      %v2034 = vsel %vm2009, %v1992, %v985
      %v2035 = vsel %vm2009, %v1993, %v987
      %v2036 = vsel %vm2009, %v1994, %v989
      %v2037 = vsel %vm2009, %v1995, %v991
      %v2038 = vsel %vm2009, %v1996, %v993
      %v2039 = vsel %vm2009, %v1997, %v995
      %v2040 = vsel %vm2009, %v1998, %v997
      %v2041 = vsel %vm2009, %v1999, %v999
      %v2042 = vsel %vm2009, %v2000, %v1001
      %v2043 = vsel %vm2009, %v2001, %v1003
      %v2044 = vsel %vm2009, %v2002, %v1005
      %v2045 = vsel %vm2009, %v2003, %v1007
      %v2046 = vsel %vm2009, %v2004, %v1009
      %v2047 = vsel %vm2009, %v2005, %v1011
      %v2048 = vsel %vm2009, %v2006, %v1013
      %v2049 = vsel %vm2009, %v2007, %v1015
      %v2050 = vsel %vm2009, %v2008, %v1017
      %vm2051 = vcmask 97280
      %v2052 = vsel %vm2051, %v2010, %v1063
      %v2053 = vsel %vm2051, %v2011, %v1065
      %v2054 = vsel %vm2051, %v2012, %v1067
      %v2055 = vsel %vm2051, %v2013, %v1069
      %v2056 = vsel %vm2051, %v2014, %v1071
      %v2057 = vsel %vm2051, %v2015, %v1073
      %v2058 = vsel %vm2051, %v2016, %v1075
      %v2059 = vsel %vm2051, %v2017, %v1077
      %v2060 = vsel %vm2051, %v2018, %v1079
      %v2061 = vsel %vm2051, %v2019, %v1081
      %v2062 = vsel %vm2051, %v2020, %v1083
      %v2063 = vsel %vm2051, %v2021, %v1085
      %v2064 = vsel %vm2051, %v2022, %v1087
      %v2065 = vsel %vm2051, %v2023, %v1089
      %v2066 = vsel %vm2051, %v2024, %v1091
      %v2067 = vsel %vm2051, %v2025, %v1093
      %v2068 = vsel %vm2051, %v2026, %v1095
      %v2069 = vsel %vm2051, %v2027, %v1097
      %v2070 = vsel %vm2051, %v2028, %v1099
      %v2071 = vsel %vm2051, %v2029, %v1101
      %v2072 = vsel %vm2051, %v2030, %v1103
      %v2073 = vsel %vm2051, %v2031, %v1105
      %v2074 = vsel %vm2051, %v2032, %v1107
      %v2075 = vsel %vm2051, %v2033, %v1109
      %v2076 = vsel %vm2051, %v2034, %v1111
      %v2077 = vsel %vm2051, %v2035, %v1113
      %v2078 = vsel %vm2051, %v2036, %v1115
      %v2079 = vsel %vm2051, %v2037, %v1117
      %v2080 = vsel %vm2051, %v2038, %v1119
      %v2081 = vsel %vm2051, %v2039, %v1121
      %v2082 = vsel %vm2051, %v2040, %v1123
      %v2083 = vsel %vm2051, %v2041, %v1125
      %v2084 = vsel %vm2051, %v2042, %v1127
      %v2085 = vsel %vm2051, %v2043, %v1129
      %v2086 = vsel %vm2051, %v2044, %v1131
      %v2087 = vsel %vm2051, %v2045, %v1133
      %v2088 = vsel %vm2051, %v2046, %v1135
      %v2089 = vsel %vm2051, %v2047, %v1137
      %v2090 = vsel %vm2051, %v2048, %v1139
      %v2091 = vsel %vm2051, %v2049, %v1141
      %v2092 = vsel %vm2051, %v2050, %v1143
      %vm2093 = vcmask 130048
      %v2094 = vsel %vm2093, %v2052, %v1227
      %v2095 = vsel %vm2093, %v2053, %v1229
      %v2096 = vsel %vm2093, %v2054, %v1231
      %v2097 = vsel %vm2093, %v2055, %v1233
      %v2098 = vsel %vm2093, %v2056, %v1235
      %v2099 = vsel %vm2093, %v2057, %v1237
      %v2100 = vsel %vm2093, %v2058, %v1239
      %v2101 = vsel %vm2093, %v2059, %v1241
      %v2102 = vsel %vm2093, %v2060, %v1243
      %v2103 = vsel %vm2093, %v2061, %v1245
      %v2104 = vsel %vm2093, %v2062, %v1247
      %v2105 = vsel %vm2093, %v2063, %v1249
      %v2106 = vsel %vm2093, %v2064, %v1251
      %v2107 = vsel %vm2093, %v2065, %v1253
      %v2108 = vsel %vm2093, %v2066, %v1255
      %v2109 = vsel %vm2093, %v2067, %v1257
      %v2110 = vsel %vm2093, %v2068, %v1259
      %v2111 = vsel %vm2093, %v2069, %v1261
      %v2112 = vsel %vm2093, %v2070, %v1263
      %v2113 = vsel %vm2093, %v2071, %v1265
      %v2114 = vsel %vm2093, %v2072, %v1267
      %v2115 = vsel %vm2093, %v2073, %v1269
      %v2116 = vsel %vm2093, %v2074, %v1271
      %v2117 = vsel %vm2093, %v2075, %v1273
      %v2118 = vsel %vm2093, %v2076, %v1275
      %v2119 = vsel %vm2093, %v2077, %v1277
      %v2120 = vsel %vm2093, %v2078, %v1279
      %v2121 = vsel %vm2093, %v2079, %v1281
      %v2122 = vsel %vm2093, %v2080, %v1283
      %v2123 = vsel %vm2093, %v2081, %v1285
      %v2124 = vsel %vm2093, %v2082, %v1287
      %v2125 = vsel %vm2093, %v2083, %v1289
      %v2126 = vsel %vm2093, %v2084, %v1291
      %v2127 = vsel %vm2093, %v2085, %v1293
      %v2128 = vsel %vm2093, %v2086, %v1295
      %v2129 = vsel %vm2093, %v2087, %v1297
      %v2130 = vsel %vm2093, %v2088, %v1299
      %v2131 = vsel %vm2093, %v2089, %v1301
      %v2132 = vsel %vm2093, %v2090, %v1303
      %v2133 = vsel %vm2093, %v2091, %v1305
      %v2134 = vsel %vm2093, %v2092, %v1307
      %vm2135 = vcmask 162816
      %v2136 = vsel %vm2135, %v2094, %v1391
      %v2137 = vsel %vm2135, %v2095, %v1393
      %v2138 = vsel %vm2135, %v2096, %v1395
      %v2139 = vsel %vm2135, %v2097, %v1397
      %v2140 = vsel %vm2135, %v2098, %v1399
      %v2141 = vsel %vm2135, %v2099, %v1401
      %v2142 = vsel %vm2135, %v2100, %v1403
      %v2143 = vsel %vm2135, %v2101, %v1405
      %v2144 = vsel %vm2135, %v2102, %v1407
      %v2145 = vsel %vm2135, %v2103, %v1409
      %v2146 = vsel %vm2135, %v2104, %v1411
      %v2147 = vsel %vm2135, %v2105, %v1413
      %v2148 = vsel %vm2135, %v2106, %v1415
      %v2149 = vsel %vm2135, %v2107, %v1417
      %v2150 = vsel %vm2135, %v2108, %v1419
      %v2151 = vsel %vm2135, %v2109, %v1421
      %v2152 = vsel %vm2135, %v2110, %v1423
      %v2153 = vsel %vm2135, %v2111, %v1425
      %v2154 = vsel %vm2135, %v2112, %v1427
      %v2155 = vsel %vm2135, %v2113, %v1429
      %v2156 = vsel %vm2135, %v2114, %v1431
      %v2157 = vsel %vm2135, %v2115, %v1433
      %v2158 = vsel %vm2135, %v2116, %v1435
      %v2159 = vsel %vm2135, %v2117, %v1437
      %v2160 = vsel %vm2135, %v2118, %v1439
      %v2161 = vsel %vm2135, %v2119, %v1441
      %v2162 = vsel %vm2135, %v2120, %v1443
      %v2163 = vsel %vm2135, %v2121, %v1445
      %v2164 = vsel %vm2135, %v2122, %v1447
      %v2165 = vsel %vm2135, %v2123, %v1449
      %v2166 = vsel %vm2135, %v2124, %v1451
      %v2167 = vsel %vm2135, %v2125, %v1453
      %v2168 = vsel %vm2135, %v2126, %v1455
      %v2169 = vsel %vm2135, %v2127, %v1457
      %v2170 = vsel %vm2135, %v2128, %v1459
      %v2171 = vsel %vm2135, %v2129, %v1461
      %v2172 = vsel %vm2135, %v2130, %v1463
      %v2173 = vsel %vm2135, %v2131, %v1465
      %v2174 = vsel %vm2135, %v2132, %v1467
      %v2175 = vsel %vm2135, %v2133, %v1469
      %v2176 = vsel %vm2135, %v2134, %v1471
      %vm2177 = vcmask 195584
      %v2178 = vsel %vm2177, %v2136, %v1517
      %v2179 = vsel %vm2177, %v2137, %v1519
      %v2180 = vsel %vm2177, %v2138, %v1521
      %v2181 = vsel %vm2177, %v2139, %v1523
      %v2182 = vsel %vm2177, %v2140, %v1525
      %v2183 = vsel %vm2177, %v2141, %v1527
      %v2184 = vsel %vm2177, %v2142, %v1529
      %v2185 = vsel %vm2177, %v2143, %v1531
      %v2186 = vsel %vm2177, %v2144, %v1533
      %v2187 = vsel %vm2177, %v2145, %v1535
      %v2188 = vsel %vm2177, %v2146, %v1537
      %v2189 = vsel %vm2177, %v2147, %v1539
      %v2190 = vsel %vm2177, %v2148, %v1541
      %v2191 = vsel %vm2177, %v2149, %v1543
      %v2192 = vsel %vm2177, %v2150, %v1545
      %v2193 = vsel %vm2177, %v2151, %v1547
      %v2194 = vsel %vm2177, %v2152, %v1549
      %v2195 = vsel %vm2177, %v2153, %v1551
      %v2196 = vsel %vm2177, %v2154, %v1553
      %v2197 = vsel %vm2177, %v2155, %v1555
      %v2198 = vsel %vm2177, %v2156, %v1557
      %v2199 = vsel %vm2177, %v2157, %v1559
      %v2200 = vsel %vm2177, %v2158, %v1561
      %v2201 = vsel %vm2177, %v2159, %v1563
      %v2202 = vsel %vm2177, %v2160, %v1565
      %v2203 = vsel %vm2177, %v2161, %v1567
      %v2204 = vsel %vm2177, %v2162, %v1569
      %v2205 = vsel %vm2177, %v2163, %v1571
      %v2206 = vsel %vm2177, %v2164, %v1573
      %v2207 = vsel %vm2177, %v2165, %v1575
      %v2208 = vsel %vm2177, %v2166, %v1577
      %v2209 = vsel %vm2177, %v2167, %v1579
      %v2210 = vsel %vm2177, %v2168, %v1581
      %v2211 = vsel %vm2177, %v2169, %v1583
      %v2212 = vsel %vm2177, %v2170, %v1585
      %v2213 = vsel %vm2177, %v2171, %v1587
      %v2214 = vsel %vm2177, %v2172, %v1589
      %v2215 = vsel %vm2177, %v2173, %v1591
      %v2216 = vsel %vm2177, %v2174, %v1593
      %v2217 = vsel %vm2177, %v2175, %v1595
      %v2218 = vsel %vm2177, %v2176, %v1597
      %vm2219 = vcmask 228352
      %v2220 = vsel %vm2219, %v2178, %v1681
      %v2221 = vsel %vm2219, %v2179, %v1683
      %v2222 = vsel %vm2219, %v2180, %v1685
      %v2223 = vsel %vm2219, %v2181, %v1687
      %v2224 = vsel %vm2219, %v2182, %v1689
      %v2225 = vsel %vm2219, %v2183, %v1691
      %v2226 = vsel %vm2219, %v2184, %v1693
      %v2227 = vsel %vm2219, %v2185, %v1695
      %v2228 = vsel %vm2219, %v2186, %v1697
      %v2229 = vsel %vm2219, %v2187, %v1699
      %v2230 = vsel %vm2219, %v2188, %v1701
      %v2231 = vsel %vm2219, %v2189, %v1703
      %v2232 = vsel %vm2219, %v2190, %v1705
      %v2233 = vsel %vm2219, %v2191, %v1707
      %v2234 = vsel %vm2219, %v2192, %v1709
      %v2235 = vsel %vm2219, %v2193, %v1711
      %v2236 = vsel %vm2219, %v2194, %v1713
      %v2237 = vsel %vm2219, %v2195, %v1715
      %v2238 = vsel %vm2219, %v2196, %v1717
      %v2239 = vsel %vm2219, %v2197, %v1719
      %v2240 = vsel %vm2219, %v2198, %v1721
      %v2241 = vsel %vm2219, %v2199, %v1723
      %v2242 = vsel %vm2219, %v2200, %v1725
      %v2243 = vsel %vm2219, %v2201, %v1727
      %v2244 = vsel %vm2219, %v2202, %v1729
      %v2245 = vsel %vm2219, %v2203, %v1731
      %v2246 = vsel %vm2219, %v2204, %v1733
      %v2247 = vsel %vm2219, %v2205, %v1735
      %v2248 = vsel %vm2219, %v2206, %v1737
      %v2249 = vsel %vm2219, %v2207, %v1739
      %v2250 = vsel %vm2219, %v2208, %v1741
      %v2251 = vsel %vm2219, %v2209, %v1743
      %v2252 = vsel %vm2219, %v2210, %v1745
      %v2253 = vsel %vm2219, %v2211, %v1747
      %v2254 = vsel %vm2219, %v2212, %v1749
      %v2255 = vsel %vm2219, %v2213, %v1751
      %v2256 = vsel %vm2219, %v2214, %v1753
      %v2257 = vsel %vm2219, %v2215, %v1755
      %v2258 = vsel %vm2219, %v2216, %v1757
      %v2259 = vsel %vm2219, %v2217, %v1759
      %v2260 = vsel %vm2219, %v2218, %v1761
      %vm2261 = vcmask 261120
      %v2262 = vsel %vm2261, %v2220, %v1845
      %v2263 = vsel %vm2261, %v2221, %v1847
      %v2264 = vsel %vm2261, %v2222, %v1849
      %v2265 = vsel %vm2261, %v2223, %v1851
      %v2266 = vsel %vm2261, %v2224, %v1853
      %v2267 = vsel %vm2261, %v2225, %v1855
      %v2268 = vsel %vm2261, %v2226, %v1857
      %v2269 = vsel %vm2261, %v2227, %v1859
      %v2270 = vsel %vm2261, %v2228, %v1861
      %v2271 = vsel %vm2261, %v2229, %v1863
      %v2272 = vsel %vm2261, %v2230, %v1865
      %v2273 = vsel %vm2261, %v2231, %v1867
      %v2274 = vsel %vm2261, %v2232, %v1869
      %v2275 = vsel %vm2261, %v2233, %v1871
      %v2276 = vsel %vm2261, %v2234, %v1873
      %v2277 = vsel %vm2261, %v2235, %v1875
      %v2278 = vsel %vm2261, %v2236, %v1877
      %v2279 = vsel %vm2261, %v2237, %v1879
      %v2280 = vsel %vm2261, %v2238, %v1881
      %v2281 = vsel %vm2261, %v2239, %v1883
      %v2282 = vsel %vm2261, %v2240, %v1885
      %v2283 = vsel %vm2261, %v2241, %v1887
      %v2284 = vsel %vm2261, %v2242, %v1889
      %v2285 = vsel %vm2261, %v2243, %v1891
      %v2286 = vsel %vm2261, %v2244, %v1893
      %v2287 = vsel %vm2261, %v2245, %v1895
      %v2288 = vsel %vm2261, %v2246, %v1897
      %v2289 = vsel %vm2261, %v2247, %v1899
      %v2290 = vsel %vm2261, %v2248, %v1901
      %v2291 = vsel %vm2261, %v2249, %v1903
      %v2292 = vsel %vm2261, %v2250, %v1905
      %v2293 = vsel %vm2261, %v2251, %v1907
      %v2294 = vsel %vm2261, %v2252, %v1909
      %v2295 = vsel %vm2261, %v2253, %v1911
      %v2296 = vsel %vm2261, %v2254, %v1913
      %v2297 = vsel %vm2261, %v2255, %v1915
      %v2298 = vsel %vm2261, %v2256, %v1917
      %v2299 = vsel %vm2261, %v2257, %v1919
      %v2300 = vsel %vm2261, %v2258, %v1921
      %v2301 = vsel %vm2261, %v2259, %v1923
      %v2302 = vsel %vm2261, %v2260, %v1925
      %v2303 = vpack.c.bf16 %v2263, %v2262
      %v2304 = vpack.c.bf16 %v2265, %v2264
      %v2305 = vpack.c.bf16 %v2267, %v2266
      %v2306 = vpack.c.bf16 %v2269, %v2268
      %v2307 = vpack.c.bf16 %v2271, %v2270
      %v2308 = vpack.c.bf16 %v2273, %v2272
      %v2309 = vpack.c.bf16 %v2275, %v2274
      %v2310 = vpack.c.bf16 %v2277, %v2276
      %v2311 = vpack.c.bf16 %v2279, %v2278
      %v2312 = vpack.c.bf16 %v2281, %v2280
      %v2313 = vpack.c.bf16 %v2283, %v2282
      %v2314 = vpack.c.bf16 %v2285, %v2284
      %v2315 = vpack.c.bf16 %v2287, %v2286
      %v2316 = vpack.c.bf16 %v2289, %v2288
      %v2317 = vpack.c.bf16 %v2291, %v2290
      %v2318 = vpack.c.bf16 %v2293, %v2292
      %v2319 = vpack.c.bf16 %v2295, %v2294
      %v2320 = vpack.c.bf16 %v2297, %v2296
      %v2321 = vpack.c.bf16 %v2299, %v2298
      %v2322 = vpack.c.bf16 %v2301, %v2300
      %v2323 = vpack.c.bf16 %v2302, %v2302
      %v2324 = vld [vmem:[%s1] sm:$0xf]
      %v2325 = vld [vmem:[%s1 + $0x4] sm:$0xf]
      %v2326 = vld [vmem:[%s1 + $0x8] sm:$0xf]
      %v2327 = vld [vmem:[%s1 + $0xc] sm:$0xf]
      %v2328 = vld [vmem:[%s1 + $0x10] sm:$0x3]
      %v2329 = vld [vmem:[%s2] sm:$0x1]
      %v2331 = vlaneseq
      %v2332 = vshrl.u32 %v2331, 7
      %v2333 = vsub.s32 0, %v2332
      %v2334 = vrot.slane %v2329, %v2333
      %v2341 = vunpack.c.l.b16 %v2324
      %v2342 = vunpack.c.l.b16 %v2325
      %v2343 = vunpack.c.l.b16 %v2326
      %v2344 = vunpack.c.l.b16 %v2327
      %v2345 = vunpack.c.l.b16 %v2328
      %v2346 = vpack.c.b16 %v2342, %v2341
      %v2347 = vpack.c.b16 %v2344, %v2343
      %v2348 = vpack.c.b16 %v2345, %v2345
      %vm2351 = vcmask 293888
      %v2353 = vsel %vm2351, %v2303, 0
      %v2356 = vsel %vm2351, %v2304, 0
      %v2359 = vsel %vm2351, %v2305, 0
      %v2362 = vsel %vm2351, %v2306, 0
      %v2365 = vsel %vm2351, %v2307, 0
      %v2368 = vsel %vm2351, %v2308, 0
      %v2371 = vsel %vm2351, %v2309, 0
      %v2374 = vsel %vm2351, %v2310, 0
      %v2377 = vsel %vm2351, %v2311, 0
      %v2380 = vsel %vm2351, %v2312, 0
      %v2383 = vsel %vm2351, %v2313, 0
      %v2386 = vsel %vm2351, %v2314, 0
      %v2389 = vsel %vm2351, %v2315, 0
      %v2392 = vsel %vm2351, %v2316, 0
      %v2395 = vsel %vm2351, %v2317, 0
      %v2398 = vsel %vm2351, %v2318, 0
      %v2401 = vsel %vm2351, %v2319, 0
      %v2404 = vsel %vm2351, %v2320, 0
      %v2407 = vsel %vm2351, %v2321, 0
      %v2410 = vsel %vm2351, %v2322, 0
      %v2413 = vsel %vm2351, %v2323, 0
      %vm2415 = vcmask 1041408
      %v2417 = vsel %vm2415, %v2348, 0
      %2419 = vmatprep.subr.bf16.mxu0 0
      %2420 = vmatpush1.bf16.msra.mxu0 %v2346
      %2421 = vmatprep.subr.bf16.mxu0 0
      %2422 = vmatpush1.bf16.msra.mxu0 %v2347
      %2423 = vmatprep.subr.bf16.mxu0 0
      %2424 = vmatpush1.bf16.msra.mxu0 %v2417
      %2425 = vmatprep.subr.bf16.mxu0 0
      %2426 = vmatpush1.bf16.msra.mxu0 0
      %2427 = vmatprep.subr.bf16.mxu0 0
      %2428 = vmatpush1.bf16.msra.mxu0 0
      %2429 = vmatprep.subr.bf16.mxu0 0
      %2430 = vmatpush1.bf16.msra.mxu0 0
      %2431 = vmatprep.subr.bf16.mxu0 0
      %2432 = vmatpush1.bf16.msra.mxu0 0
      %2433 = vmatprep.subr.bf16.mxu0 0
      %2434 = vmatpush1.bf16.msra.mxu0 0
      %2435 = vmatprep.subr.bf16.mxu0 0
      %2436 = vmatpush1.bf16.msra.mxu0 0
      %2437 = vmatprep.subr.bf16.mxu0 0
      %2438 = vmatpush1.bf16.msra.mxu0 0
      %2439 = vmatprep.subr.bf16.mxu0 0
      %2440 = vmatpush1.bf16.msra.mxu0 0
      %2441 = vmatprep.subr.bf16.mxu0 0
      %2442 = vmatpush1.bf16.msra.mxu0 0
      %2443 = vmatprep.subr.bf16.mxu0 0
      %2444 = vmatpush1.bf16.msra.mxu0 0
      %2445 = vmatprep.subr.bf16.mxu0 0
      %2446 = vmatpush1.bf16.msra.mxu0 0
      %2447 = vmatprep.subr.bf16.mxu0 0
      %2448 = vmatpush1.bf16.msra.mxu0 0
      %2449 = vmatprep.subr.bf16.mxu0 0
      %2450 = vmatpush1.bf16.msra.mxu0 0
      %2451 = vmatprep.mubr.bf16.mxu0 0
      %2452 = vmatmul.mubr.bf16.gmra.mrb[0].mxu0 %v2353
      %v2453 = vpop.f32.mrb[0].mxu0
      %v2454 = vadd.f32 %v2334, %v2453
      %v2455 = vpop.f32.mrb[0].mxu0
      %v2456 = vpop.f32.mrb[0].mxu0
      %v2457 = vadd.f32 %v2334, %v2456
      %v2458 = vpop.f32.mrb[0].mxu0
      %2459 = vmatprep.mubr.bf16.mxu0 0
      %2460 = vmatmul.mubr.bf16.gmra.mrb[0].mxu0 %v2356
      %v2461 = vpop.f32.mrb[0].mxu0
      %v2462 = vadd.f32 %v2334, %v2461
      %v2463 = vpop.f32.mrb[0].mxu0
      %v2464 = vpop.f32.mrb[0].mxu0
      %v2465 = vadd.f32 %v2334, %v2464
      %v2466 = vpop.f32.mrb[0].mxu0
      %2467 = vmatprep.mubr.bf16.mxu0 0
      %2468 = vmatmul.mubr.bf16.gmra.mrb[0].mxu0 %v2359
      %v2469 = vpop.f32.mrb[0].mxu0
      %v2470 = vadd.f32 %v2334, %v2469
      %v2471 = vpop.f32.mrb[0].mxu0
      %v2472 = vpop.f32.mrb[0].mxu0
      %v2473 = vadd.f32 %v2334, %v2472
      %v2474 = vpop.f32.mrb[0].mxu0
      %2475 = vmatprep.mubr.bf16.mxu0 0
      %2476 = vmatmul.mubr.bf16.gmra.mrb[0].mxu0 %v2362
      %v2477 = vpop.f32.mrb[0].mxu0
      %v2478 = vadd.f32 %v2334, %v2477
      %v2479 = vpop.f32.mrb[0].mxu0
      %v2480 = vpop.f32.mrb[0].mxu0
      %v2481 = vadd.f32 %v2334, %v2480
      %v2482 = vpop.f32.mrb[0].mxu0
      %2483 = vmatprep.mubr.bf16.mxu0 0
      %2484 = vmatmul.mubr.bf16.gmra.mrb[0].mxu0 %v2365
      %v2485 = vpop.f32.mrb[0].mxu0
      %v2486 = vadd.f32 %v2334, %v2485
      %v2487 = vpop.f32.mrb[0].mxu0
      %v2488 = vpop.f32.mrb[0].mxu0
      %v2489 = vadd.f32 %v2334, %v2488
      %v2490 = vpop.f32.mrb[0].mxu0
      %2491 = vmatprep.mubr.bf16.mxu0 0
      %2492 = vmatmul.mubr.bf16.gmra.mrb[0].mxu0 %v2368
      %v2493 = vpop.f32.mrb[0].mxu0
      %v2494 = vadd.f32 %v2334, %v2493
      %v2495 = vpop.f32.mrb[0].mxu0
      %v2496 = vpop.f32.mrb[0].mxu0
      %v2497 = vadd.f32 %v2334, %v2496
      %v2498 = vpop.f32.mrb[0].mxu0
      %2499 = vmatprep.mubr.bf16.mxu0 0
      %2500 = vmatmul.mubr.bf16.gmra.mrb[0].mxu0 %v2371
      %v2501 = vpop.f32.mrb[0].mxu0
      %v2502 = vadd.f32 %v2334, %v2501
      %v2503 = vpop.f32.mrb[0].mxu0
      %v2504 = vpop.f32.mrb[0].mxu0
      %v2505 = vadd.f32 %v2334, %v2504
      %v2506 = vpop.f32.mrb[0].mxu0
      %2507 = vmatprep.mubr.bf16.mxu0 0
      %2508 = vmatmul.mubr.bf16.gmra.mrb[0].mxu0 %v2374
      %v2509 = vpop.f32.mrb[0].mxu0
      %v2510 = vadd.f32 %v2334, %v2509
      %v2511 = vpop.f32.mrb[0].mxu0
      %v2512 = vpop.f32.mrb[0].mxu0
      %v2513 = vadd.f32 %v2334, %v2512
      %v2514 = vpop.f32.mrb[0].mxu0
      %2515 = vmatprep.mubr.bf16.mxu0 0
      %2516 = vmatmul.mubr.bf16.gmra.mrb[0].mxu0 %v2377
      %v2517 = vpop.f32.mrb[0].mxu0
      %v2518 = vadd.f32 %v2334, %v2517
      %v2519 = vpop.f32.mrb[0].mxu0
      %v2520 = vpop.f32.mrb[0].mxu0
      %v2521 = vadd.f32 %v2334, %v2520
      %v2522 = vpop.f32.mrb[0].mxu0
      %2523 = vmatprep.mubr.bf16.mxu0 0
      %2524 = vmatmul.mubr.bf16.gmra.mrb[0].mxu0 %v2380
      %v2525 = vpop.f32.mrb[0].mxu0
      %v2526 = vadd.f32 %v2334, %v2525
      %v2527 = vpop.f32.mrb[0].mxu0
      %v2528 = vpop.f32.mrb[0].mxu0
      %v2529 = vadd.f32 %v2334, %v2528
      %v2530 = vpop.f32.mrb[0].mxu0
      %2531 = vmatprep.mubr.bf16.mxu0 0
      %2532 = vmatmul.mubr.bf16.gmra.mrb[0].mxu0 %v2383
      %v2533 = vpop.f32.mrb[0].mxu0
      %v2534 = vadd.f32 %v2334, %v2533
      %v2535 = vpop.f32.mrb[0].mxu0
      %v2536 = vpop.f32.mrb[0].mxu0
      %v2537 = vadd.f32 %v2334, %v2536
      %v2538 = vpop.f32.mrb[0].mxu0
      %2539 = vmatprep.mubr.bf16.mxu0 0
      %2540 = vmatmul.mubr.bf16.gmra.mrb[0].mxu0 %v2386
      %v2541 = vpop.f32.mrb[0].mxu0
      %v2542 = vadd.f32 %v2334, %v2541
      %v2543 = vpop.f32.mrb[0].mxu0
      %v2544 = vpop.f32.mrb[0].mxu0
      %v2545 = vadd.f32 %v2334, %v2544
      %v2546 = vpop.f32.mrb[0].mxu0
      %2547 = vmatprep.mubr.bf16.mxu0 0
      %2548 = vmatmul.mubr.bf16.gmra.mrb[0].mxu0 %v2389
      %v2549 = vpop.f32.mrb[0].mxu0
      %v2550 = vadd.f32 %v2334, %v2549
      %v2551 = vpop.f32.mrb[0].mxu0
      %v2552 = vpop.f32.mrb[0].mxu0
      %v2553 = vadd.f32 %v2334, %v2552
      %v2554 = vpop.f32.mrb[0].mxu0
      %2555 = vmatprep.mubr.bf16.mxu0 0
      %2556 = vmatmul.mubr.bf16.gmra.mrb[0].mxu0 %v2392
      %v2557 = vpop.f32.mrb[0].mxu0
      %v2558 = vadd.f32 %v2334, %v2557
      %v2559 = vpop.f32.mrb[0].mxu0
      %v2560 = vpop.f32.mrb[0].mxu0
      %v2561 = vadd.f32 %v2334, %v2560
      %v2562 = vpop.f32.mrb[0].mxu0
      %2563 = vmatprep.mubr.bf16.mxu0 0
      %2564 = vmatmul.mubr.bf16.gmra.mrb[0].mxu0 %v2395
      %v2565 = vpop.f32.mrb[0].mxu0
      %v2566 = vadd.f32 %v2334, %v2565
      %v2567 = vpop.f32.mrb[0].mxu0
      %v2568 = vpop.f32.mrb[0].mxu0
      %v2569 = vadd.f32 %v2334, %v2568
      %v2570 = vpop.f32.mrb[0].mxu0
      %2571 = vmatprep.mubr.bf16.mxu0 0
      %2572 = vmatmul.mubr.bf16.gmra.mrb[0].mxu0 %v2398
      %v2573 = vpop.f32.mrb[0].mxu0
      %v2574 = vadd.f32 %v2334, %v2573
      %v2575 = vpop.f32.mrb[0].mxu0
      %v2576 = vpop.f32.mrb[0].mxu0
      %v2577 = vadd.f32 %v2334, %v2576
      %v2578 = vpop.f32.mrb[0].mxu0
      %2579 = vmatprep.mubr.bf16.mxu0 0
      %2580 = vmatmul.mubr.bf16.gmra.mrb[0].mxu0 %v2401
      %v2581 = vpop.f32.mrb[0].mxu0
      %v2582 = vadd.f32 %v2334, %v2581
      %v2583 = vpop.f32.mrb[0].mxu0
      %v2584 = vpop.f32.mrb[0].mxu0
      %v2585 = vadd.f32 %v2334, %v2584
      %v2586 = vpop.f32.mrb[0].mxu0
      %2587 = vmatprep.mubr.bf16.mxu0 0
      %2588 = vmatmul.mubr.bf16.gmra.mrb[0].mxu0 %v2404
      %v2589 = vpop.f32.mrb[0].mxu0
      %v2590 = vadd.f32 %v2334, %v2589
      %v2591 = vpop.f32.mrb[0].mxu0
      %v2592 = vpop.f32.mrb[0].mxu0
      %v2593 = vadd.f32 %v2334, %v2592
      %v2594 = vpop.f32.mrb[0].mxu0
      %2595 = vmatprep.mubr.bf16.mxu0 0
      %2596 = vmatmul.mubr.bf16.gmra.mrb[0].mxu0 %v2407
      %v2597 = vpop.f32.mrb[0].mxu0
      %v2598 = vadd.f32 %v2334, %v2597
      %v2599 = vpop.f32.mrb[0].mxu0
      %v2600 = vpop.f32.mrb[0].mxu0
      %v2601 = vadd.f32 %v2334, %v2600
      %v2602 = vpop.f32.mrb[0].mxu0
      %2603 = vmatprep.mubr.bf16.mxu0 0
      %2604 = vmatmul.mubr.bf16.gmra.mrb[0].mxu0 %v2410
      %v2605 = vpop.f32.mrb[0].mxu0
      %v2606 = vadd.f32 %v2334, %v2605
      %v2607 = vpop.f32.mrb[0].mxu0
      %v2608 = vpop.f32.mrb[0].mxu0
      %v2609 = vadd.f32 %v2334, %v2608
      %v2610 = vpop.f32.mrb[0].mxu0
      %2611 = vmatprep.mubr.bf16.mxu0 0
      %2612 = vmatmul.mubr.bf16.gmra.mrb[0].mxu0 %v2413
      %v2613 = vpop.f32.mrb[0].mxu0
      %v2614 = vadd.f32 %v2334, %v2613
      %v2615 = vpop.f32.mrb[0].mxu0
      %v2616 = vpop.f32.mrb[0].mxu0
      %v2617 = vpop.f32.mrb[0].mxu0
      %2618 = vdwg.mxu0
      %v2619 = vmax.f32 %v2454, 0.0
      %v2620 = vmax.f32 %v2457, 0.0
      %v2621 = vmax.f32 %v2462, 0.0
      %v2622 = vmax.f32 %v2465, 0.0
      %v2623 = vmax.f32 %v2470, 0.0
      %v2624 = vmax.f32 %v2473, 0.0
      %v2625 = vmax.f32 %v2478, 0.0
      %v2626 = vmax.f32 %v2481, 0.0
      %v2627 = vmax.f32 %v2486, 0.0
      %v2628 = vmax.f32 %v2489, 0.0
      %v2629 = vmax.f32 %v2494, 0.0
      %v2630 = vmax.f32 %v2497, 0.0
      %v2631 = vmax.f32 %v2502, 0.0
      %v2632 = vmax.f32 %v2505, 0.0
      %v2633 = vmax.f32 %v2510, 0.0
      %v2634 = vmax.f32 %v2513, 0.0
      %v2635 = vmax.f32 %v2518, 0.0
      %v2636 = vmax.f32 %v2521, 0.0
      %v2637 = vmax.f32 %v2526, 0.0
      %v2638 = vmax.f32 %v2529, 0.0
      %v2639 = vmax.f32 %v2534, 0.0
      %v2640 = vmax.f32 %v2537, 0.0
      %v2641 = vmax.f32 %v2542, 0.0
      %v2642 = vmax.f32 %v2545, 0.0
      %v2643 = vmax.f32 %v2550, 0.0
      %v2644 = vmax.f32 %v2553, 0.0
      %v2645 = vmax.f32 %v2558, 0.0
      %v2646 = vmax.f32 %v2561, 0.0
      %v2647 = vmax.f32 %v2566, 0.0
      %v2648 = vmax.f32 %v2569, 0.0
      %v2649 = vmax.f32 %v2574, 0.0
      %v2650 = vmax.f32 %v2577, 0.0
      %v2651 = vmax.f32 %v2582, 0.0
      %v2652 = vmax.f32 %v2585, 0.0
      %v2653 = vmax.f32 %v2590, 0.0
      %v2654 = vmax.f32 %v2593, 0.0
      %v2655 = vmax.f32 %v2598, 0.0
      %v2656 = vmax.f32 %v2601, 0.0
      %v2657 = vmax.f32 %v2606, 0.0
      %v2658 = vmax.f32 %v2609, 0.0
      %v2659 = vmax.f32 %v2614, 0.0
      %2660 = vst.msk [vmem:[#allocation5] sm:$0xff] %vm2009, %v2619
      %2661 = vst.msk [vmem:[#allocation5 + $0x8] sm:$0xff] %vm2009, %v2620
      %2662 = vst.msk [vmem:[#allocation5 + $0x10] sm:$0xff] %vm2009, %v2621
      %2663 = vst.msk [vmem:[#allocation5 + $0x18] sm:$0xff] %vm2009, %v2622
      %2664 = vst.msk [vmem:[#allocation5 + $0x20] sm:$0xff] %vm2009, %v2623
      %2665 = vst.msk [vmem:[#allocation5 + $0x28] sm:$0xff] %vm2009, %v2624
      %2666 = vst.msk [vmem:[#allocation5 + $0x30] sm:$0xff] %vm2009, %v2625
      %2667 = vst.msk [vmem:[#allocation5 + $0x38] sm:$0xff] %vm2009, %v2626
      %2668 = vst.msk [vmem:[#allocation5 + $0x40] sm:$0xff] %vm2009, %v2627
      %2669 = vst.msk [vmem:[#allocation5 + $0x48] sm:$0xff] %vm2009, %v2628
      %2670 = vst.msk [vmem:[#allocation5 + $0x50] sm:$0xff] %vm2009, %v2629
      %2671 = vst.msk [vmem:[#allocation5 + $0x58] sm:$0xff] %vm2009, %v2630
      %2672 = vst.msk [vmem:[#allocation5 + $0x60] sm:$0xff] %vm2009, %v2631
      %2673 = vst.msk [vmem:[#allocation5 + $0x68] sm:$0xff] %vm2009, %v2632
      %2674 = vst.msk [vmem:[#allocation5 + $0x70] sm:$0xff] %vm2009, %v2633
      %2675 = vst.msk [vmem:[#allocation5 + $0x78] sm:$0xff] %vm2009, %v2634
      %2676 = vst.msk [vmem:[#allocation5 + $0x80] sm:$0xff] %vm2009, %v2635
      %2677 = vst.msk [vmem:[#allocation5 + $0x88] sm:$0xff] %vm2009, %v2636
      %2678 = vst.msk [vmem:[#allocation5 + $0x90] sm:$0xff] %vm2009, %v2637
      %2679 = vst.msk [vmem:[#allocation5 + $0x98] sm:$0xff] %vm2009, %v2638
      %2680 = vst.msk [vmem:[#allocation5 + $0xa0] sm:$0xff] %vm2009, %v2639
      %2681 = vst.msk [vmem:[#allocation5 + $0xa8] sm:$0xff] %vm2009, %v2640
      %2682 = vst.msk [vmem:[#allocation5 + $0xb0] sm:$0xff] %vm2009, %v2641
      %2683 = vst.msk [vmem:[#allocation5 + $0xb8] sm:$0xff] %vm2009, %v2642
      %2684 = vst.msk [vmem:[#allocation5 + $0xc0] sm:$0xff] %vm2009, %v2643
      %2685 = vst.msk [vmem:[#allocation5 + $0xc8] sm:$0xff] %vm2009, %v2644
      %2686 = vst.msk [vmem:[#allocation5 + $0xd0] sm:$0xff] %vm2009, %v2645
      %2687 = vst.msk [vmem:[#allocation5 + $0xd8] sm:$0xff] %vm2009, %v2646
      %2688 = vst.msk [vmem:[#allocation5 + $0xe0] sm:$0xff] %vm2009, %v2647
      %2689 = vst.msk [vmem:[#allocation5 + $0xe8] sm:$0xff] %vm2009, %v2648
      %2690 = vst.msk [vmem:[#allocation5 + $0xf0] sm:$0xff] %vm2009, %v2649
      %2691 = vst.msk [vmem:[#allocation5 + $0xf8] sm:$0xff] %vm2009, %v2650
      %2692 = vst.msk [vmem:[#allocation5 + $0x100] sm:$0xff] %vm2009, %v2651
      %2693 = vst.msk [vmem:[#allocation5 + $0x108] sm:$0xff] %vm2009, %v2652
      %2694 = vst.msk [vmem:[#allocation5 + $0x110] sm:$0xff] %vm2009, %v2653
      %2695 = vst.msk [vmem:[#allocation5 + $0x118] sm:$0xff] %vm2009, %v2654
      %2696 = vst.msk [vmem:[#allocation5 + $0x120] sm:$0xff] %vm2009, %v2655
      %2697 = vst.msk [vmem:[#allocation5 + $0x128] sm:$0xff] %vm2009, %v2656
      %2698 = vst.msk [vmem:[#allocation5 + $0x130] sm:$0xff] %vm2009, %v2657
      %2699 = vst.msk [vmem:[#allocation5 + $0x138] sm:$0xff] %vm2009, %v2658
      %vm2700 = vcmask 60416
      %2701 = vst.msk [vmem:[#allocation5 + $0x140] sm:$0xf] %vm2700, %v2659
      %2702 = vst.msk [vmem:[#allocation2] sm:$0xff] %vm2009, 0.0
      %2703 = vst.msk [vmem:[#allocation2 + $0x8] sm:$0xff] %vm2009, 0.0
      %2704 = vst.msk [vmem:[#allocation2 + $0x10] sm:$0xff] %vm2009, 0.0
      %2705 = vst.msk [vmem:[#allocation2 + $0x18] sm:$0xff] %vm2009, 0.0
      %2706 = vst.msk [vmem:[#allocation2 + $0x20] sm:$0xff] %vm2009, 0.0
      %2707 = vst.msk [vmem:[#allocation2 + $0x28] sm:$0xff] %vm2009, 0.0
      %2708 = vst.msk [vmem:[#allocation2 + $0x30] sm:$0xff] %vm2009, 0.0
      %2709 = vst.msk [vmem:[#allocation2 + $0x38] sm:$0xff] %vm2009, 0.0
      %2710 = vst.msk [vmem:[#allocation2 + $0x40] sm:$0xff] %vm2009, 0.0
      %2711 = vst.msk [vmem:[#allocation2 + $0x48] sm:$0xff] %vm2009, 0.0
      %2712 = vst.msk [vmem:[#allocation2 + $0x50] sm:$0xff] %vm2009, 0.0
      %2713 = vst.msk [vmem:[#allocation2 + $0x58] sm:$0xff] %vm2009, 0.0
      %2714 = vst.msk [vmem:[#allocation2 + $0x60] sm:$0xff] %vm2009, 0.0
      %2715 = vst.msk [vmem:[#allocation2 + $0x68] sm:$0xff] %vm2009, 0.0
      %2716 = vst.msk [vmem:[#allocation2 + $0x70] sm:$0xff] %vm2009, 0.0
      %vm2717 = vcmask 58368
      %2718 = vst.msk [vmem:[#allocation2 + $0x78] sm:$0x3] %vm2717, 0.0
      %s2719 = scalar_lea.vmem [#allocation5], 19
      %v2720 = vld [vmem:[%s2719] ss:$2 sm:$0xff]
      %s2721 = scalar_lea.vmem [#allocation5], 20
      %v2722 = vld [vmem:[%s2721] ss:$2 sm:$0xff]
      %v2723 = vmax.f32 %v2720, %v2722
      %s2724 = scalar_lea.vmem [#allocation5], 37
      %v2725 = vld [vmem:[%s2724] ss:$2 sm:$0xff]
      %s2726 = scalar_lea.vmem [#allocation5], 38
      %v2727 = vld [vmem:[%s2726] ss:$2 sm:$0xff]
      %v2728 = vmax.f32 %v2725, %v2727
      %v2729 = vmax.f32 %v2723, %v2728
      %2730 = vst.msk [vmem:[#allocation2 + $0x16] sm:$0xff] %vm2009, %v2729
      %s2731 = scalar_lea.vmem [#allocation5], 55
      %v2732 = vld [vmem:[%s2731] ss:$2 sm:$0xff]
      %s2733 = scalar_lea.vmem [#allocation5], 56
      %v2734 = vld [vmem:[%s2733] ss:$2 sm:$0xff]
      %v2735 = vmax.f32 %v2732, %v2734
      %s2736 = scalar_lea.vmem [#allocation5], 73
      %v2737 = vld [vmem:[%s2736] ss:$2 sm:$0xff]
      %s2738 = scalar_lea.vmem [#allocation5], 74
      %v2739 = vld [vmem:[%s2738] ss:$2 sm:$0xff]
      %v2740 = vmax.f32 %v2737, %v2739
      %v2741 = vmax.f32 %v2735, %v2740
      %2742 = vst.msk [vmem:[#allocation2 + $0x20] sm:$0xff] %vm2009, %v2741
      %s2743 = scalar_lea.vmem [#allocation5], 91
      %v2744 = vld [vmem:[%s2743] ss:$2 sm:$0xff]
      %s2745 = scalar_lea.vmem [#allocation5], 92
      %v2746 = vld [vmem:[%s2745] ss:$2 sm:$0xff]
      %v2747 = vmax.f32 %v2744, %v2746
      %s2748 = scalar_lea.vmem [#allocation5], 109
      %v2749 = vld [vmem:[%s2748] ss:$2 sm:$0xff]
      %s2750 = scalar_lea.vmem [#allocation5], 110
      %v2751 = vld [vmem:[%s2750] ss:$2 sm:$0xff]
      %v2752 = vmax.f32 %v2749, %v2751
      %v2753 = vmax.f32 %v2747, %v2752
      %2754 = vst.msk [vmem:[#allocation2 + $0x2a] sm:$0xff] %vm2009, %v2753
      %s2755 = scalar_lea.vmem [#allocation5], 127
      %v2756 = vld [vmem:[%s2755] ss:$2 sm:$0xff]
      %s2757 = scalar_lea.vmem [#allocation5], 128
      %v2758 = vld [vmem:[%s2757] ss:$2 sm:$0xff]
      %v2759 = vmax.f32 %v2756, %v2758
      %s2760 = scalar_lea.vmem [#allocation5], 145
      %v2761 = vld [vmem:[%s2760] ss:$2 sm:$0xff]
      %s2762 = scalar_lea.vmem [#allocation5], 146
      %v2763 = vld [vmem:[%s2762] ss:$2 sm:$0xff]
      %v2764 = vmax.f32 %v2761, %v2763
      %v2765 = vmax.f32 %v2759, %v2764
      %2766 = vst.msk [vmem:[#allocation2 + $0x34] sm:$0xff] %vm2009, %v2765
      %s2767 = scalar_lea.vmem [#allocation5], 163
      %v2768 = vld [vmem:[%s2767] ss:$2 sm:$0xff]
      %s2769 = scalar_lea.vmem [#allocation5], 164
      %v2770 = vld [vmem:[%s2769] ss:$2 sm:$0xff]
      %v2771 = vmax.f32 %v2768, %v2770
      %s2772 = scalar_lea.vmem [#allocation5], 181
      %v2773 = vld [vmem:[%s2772] ss:$2 sm:$0xff]
      %s2774 = scalar_lea.vmem [#allocation5], 182
      %v2775 = vld [vmem:[%s2774] ss:$2 sm:$0xff]
      %v2776 = vmax.f32 %v2773, %v2775
      %v2777 = vmax.f32 %v2771, %v2776
      %2778 = vst.msk [vmem:[#allocation2 + $0x3e] sm:$0xff] %vm2009, %v2777
      %s2779 = scalar_lea.vmem [#allocation5], 199
      %v2780 = vld [vmem:[%s2779] ss:$2 sm:$0xff]
      %s2781 = scalar_lea.vmem [#allocation5], 200
      %v2782 = vld [vmem:[%s2781] ss:$2 sm:$0xff]
      %v2783 = vmax.f32 %v2780, %v2782
      %s2784 = scalar_lea.vmem [#allocation5], 217
      %v2785 = vld [vmem:[%s2784] ss:$2 sm:$0xff]
      %s2786 = scalar_lea.vmem [#allocation5], 218
      %v2787 = vld [vmem:[%s2786] ss:$2 sm:$0xff]
      %v2788 = vmax.f32 %v2785, %v2787
      %v2789 = vmax.f32 %v2783, %v2788
      %2790 = vst.msk [vmem:[#allocation2 + $0x48] sm:$0xff] %vm2009, %v2789
      %s2791 = scalar_lea.vmem [#allocation5], 235
      %v2792 = vld [vmem:[%s2791] ss:$2 sm:$0xff]
      %s2793 = scalar_lea.vmem [#allocation5], 236
      %v2794 = vld [vmem:[%s2793] ss:$2 sm:$0xff]
      %v2795 = vmax.f32 %v2792, %v2794
      %s2796 = scalar_lea.vmem [#allocation5], 253
      %v2797 = vld [vmem:[%s2796] ss:$2 sm:$0xff]
      %s2798 = scalar_lea.vmem [#allocation5], 254
      %v2799 = vld [vmem:[%s2798] ss:$2 sm:$0xff]
      %v2800 = vmax.f32 %v2797, %v2799
      %v2801 = vmax.f32 %v2795, %v2800
      %2802 = vst.msk [vmem:[#allocation2 + $0x52] sm:$0xff] %vm2009, %v2801
      %s2803 = scalar_lea.vmem [#allocation5], 271
      %v2804 = vld [vmem:[%s2803] ss:$2 sm:$0xff]
      %s2805 = scalar_lea.vmem [#allocation5], 272
      %v2806 = vld [vmem:[%s2805] ss:$2 sm:$0xff]
      %v2807 = vmax.f32 %v2804, %v2806
      %s2808 = scalar_lea.vmem [#allocation5], 289
      %v2809 = vld [vmem:[%s2808] ss:$2 sm:$0xff]
      %s2810 = scalar_lea.vmem [#allocation5], 290
      %v2811 = vld [vmem:[%s2810] ss:$2 sm:$0xff]
      %v2812 = vmax.f32 %v2809, %v2811
      %v2813 = vmax.f32 %v2807, %v2812
      %2814 = vst.msk [vmem:[#allocation2 + $0x5c] sm:$0xff] %vm2009, %v2813
      %v2815 = vld [vmem:[#allocation2] sm:$0xff]
      %v2816 = vld [vmem:[#allocation2 + $0x8] sm:$0xff]
      %v2817 = vld [vmem:[#allocation2 + $0x10] sm:$0xff]
      %v2818 = vld [vmem:[#allocation2 + $0x18] sm:$0xff]
      %v2819 = vld [vmem:[#allocation2 + $0x20] sm:$0xff]
      %v2820 = vld [vmem:[#allocation2 + $0x28] sm:$0xff]
      %v2821 = vld [vmem:[#allocation2 + $0x30] sm:$0xff]
      %v2822 = vld [vmem:[#allocation2 + $0x38] sm:$0xff]
      %v2823 = vld [vmem:[#allocation2 + $0x40] sm:$0xff]
      %v2824 = vld [vmem:[#allocation2 + $0x48] sm:$0xff]
      %v2825 = vld [vmem:[#allocation2 + $0x50] sm:$0xff]
      %v2826 = vld [vmem:[#allocation2 + $0x58] sm:$0xff]
      %v2827 = vld [vmem:[#allocation2 + $0x60] sm:$0xf]
      %v2828 = vld [vmem:[#allocation2 + $0x1] sm:$0xff]
      %v2829 = vld [vmem:[#allocation2 + $0x9] sm:$0xff]
      %v2830 = vld [vmem:[#allocation2 + $0x11] sm:$0xff]
      %v2831 = vld [vmem:[#allocation2 + $0x19] sm:$0xff]
      %v2832 = vld [vmem:[#allocation2 + $0x21] sm:$0xff]
      %v2833 = vld [vmem:[#allocation2 + $0x29] sm:$0xff]
      %v2834 = vld [vmem:[#allocation2 + $0x31] sm:$0xff]
      %v2835 = vld [vmem:[#allocation2 + $0x39] sm:$0xff]
      %v2836 = vld [vmem:[#allocation2 + $0x41] sm:$0xff]
      %v2837 = vld [vmem:[#allocation2 + $0x49] sm:$0xff]
      %v2838 = vld [vmem:[#allocation2 + $0x51] sm:$0xff]
      %v2839 = vld [vmem:[#allocation2 + $0x59] sm:$0xff]
      %v2840 = vld [vmem:[#allocation2 + $0x61] sm:$0xf]
      %v2841 = vld [vmem:[#allocation2 + $0x2] sm:$0xff]
      %v2842 = vld [vmem:[#allocation2 + $0xa] sm:$0xff]
      %v2843 = vld [vmem:[#allocation2 + $0x12] sm:$0xff]
      %v2844 = vld [vmem:[#allocation2 + $0x1a] sm:$0xff]
      %v2845 = vld [vmem:[#allocation2 + $0x22] sm:$0xff]
      %v2846 = vld [vmem:[#allocation2 + $0x2a] sm:$0xff]
      %v2847 = vld [vmem:[#allocation2 + $0x32] sm:$0xff]
      %v2848 = vld [vmem:[#allocation2 + $0x3a] sm:$0xff]
      %v2849 = vld [vmem:[#allocation2 + $0x42] sm:$0xff]
      %v2850 = vld [vmem:[#allocation2 + $0x4a] sm:$0xff]
      %v2851 = vld [vmem:[#allocation2 + $0x52] sm:$0xff]
      %v2852 = vld [vmem:[#allocation2 + $0x5a] sm:$0xff]
      %v2853 = vld [vmem:[#allocation2 + $0x62] sm:$0xf]
      %v2854 = vld [vmem:[#allocation2 + $0x62] sm:$0xff]
      %v2855 = vld [vmem:[#allocation2 + $0x6a] sm:$0xf]
      %v2856 = vld [vmem:[#allocation2 + $0xb] sm:$0xff]
      %v2857 = vld [vmem:[#allocation2 + $0x13] sm:$0xff]
      %v2858 = vld [vmem:[#allocation2 + $0x1b] sm:$0xff]
      %v2859 = vld [vmem:[#allocation2 + $0x23] sm:$0xff]
      %v2860 = vld [vmem:[#allocation2 + $0x2b] sm:$0xff]
      %v2861 = vld [vmem:[#allocation2 + $0x33] sm:$0xff]
      %v2862 = vld [vmem:[#allocation2 + $0x3b] sm:$0xff]
      %v2863 = vld [vmem:[#allocation2 + $0x43] sm:$0xff]
      %v2864 = vld [vmem:[#allocation2 + $0x4b] sm:$0xff]
      %v2865 = vld [vmem:[#allocation2 + $0x53] sm:$0xff]
      %v2866 = vld [vmem:[#allocation2 + $0x5b] sm:$0xff]
      %v2867 = vld [vmem:[#allocation2 + $0x63] sm:$0xff]
      %v2868 = vld [vmem:[#allocation2 + $0x6b] sm:$0xf]
      %v2869 = vld [vmem:[#allocation2 + $0xc] sm:$0xff]
      %v2870 = vld [vmem:[#allocation2 + $0x14] sm:$0xff]
      %v2871 = vld [vmem:[#allocation2 + $0x1c] sm:$0xff]
      %v2872 = vld [vmem:[#allocation2 + $0x24] sm:$0xff]
      %v2873 = vld [vmem:[#allocation2 + $0x2c] sm:$0xff]
      %v2874 = vld [vmem:[#allocation2 + $0x34] sm:$0xff]
      %v2875 = vld [vmem:[#allocation2 + $0x3c] sm:$0xff]
      %v2876 = vld [vmem:[#allocation2 + $0x44] sm:$0xff]
      %v2877 = vld [vmem:[#allocation2 + $0x4c] sm:$0xff]
      %v2878 = vld [vmem:[#allocation2 + $0x54] sm:$0xff]
      %v2879 = vld [vmem:[#allocation2 + $0x5c] sm:$0xff]
      %v2880 = vld [vmem:[#allocation2 + $0x64] sm:$0xff]
      %v2881 = vld [vmem:[#allocation2 + $0x6c] sm:$0xf]
      %v2882 = vld [vmem:[#allocation2 + $0x6c] sm:$0xff]
      %v2883 = vld [vmem:[#allocation2 + $0x74] sm:$0xf]
      %v2884 = vld [vmem:[#allocation2 + $0x15] sm:$0xff]
      %v2885 = vld [vmem:[#allocation2 + $0x1d] sm:$0xff]
      %v2886 = vld [vmem:[#allocation2 + $0x25] sm:$0xff]
      %v2887 = vld [vmem:[#allocation2 + $0x2d] sm:$0xff]
      %v2888 = vld [vmem:[#allocation2 + $0x35] sm:$0xff]
      %v2889 = vld [vmem:[#allocation2 + $0x3d] sm:$0xff]
      %v2890 = vld [vmem:[#allocation2 + $0x45] sm:$0xff]
      %v2891 = vld [vmem:[#allocation2 + $0x4d] sm:$0xff]
      %v2892 = vld [vmem:[#allocation2 + $0x55] sm:$0xff]
      %v2893 = vld [vmem:[#allocation2 + $0x5d] sm:$0xff]
      %v2894 = vld [vmem:[#allocation2 + $0x65] sm:$0xff]
      %v2895 = vld [vmem:[#allocation2 + $0x6d] sm:$0xff]
      %v2896 = vld [vmem:[#allocation2 + $0x75] sm:$0xf]
      %v2897 = vld [vmem:[#allocation2 + $0x16] sm:$0xff]
      %v2898 = vld [vmem:[#allocation2 + $0x1e] sm:$0xff]
      %v2899 = vld [vmem:[#allocation2 + $0x26] sm:$0xff]
      %v2900 = vld [vmem:[#allocation2 + $0x2e] sm:$0xff]
      %v2901 = vld [vmem:[#allocation2 + $0x36] sm:$0xff]
      %v2902 = vld [vmem:[#allocation2 + $0x3e] sm:$0xff]
      %v2903 = vld [vmem:[#allocation2 + $0x46] sm:$0xff]
      %v2904 = vld [vmem:[#allocation2 + $0x4e] sm:$0xff]
      %v2905 = vld [vmem:[#allocation2 + $0x56] sm:$0xff]
      %v2906 = vld [vmem:[#allocation2 + $0x5e] sm:$0xff]
      %v2907 = vld [vmem:[#allocation2 + $0x66] sm:$0xff]
      %v2908 = vld [vmem:[#allocation2 + $0x6e] sm:$0xff]
      %v2909 = vld [vmem:[#allocation2 + $0x76] sm:$0xf]
      %2923 = vrot.lane.b32.xlu0 %v2828, 8
      %v2924 = vpop.permute.xlu0 %2923
      %2925 = vrot.lane.b32.xlu0 %v2829, 8
      %v2926 = vpop.permute.xlu0 %2925
      %2927 = vrot.lane.b32.xlu0 %v2830, 8
      %v2928 = vpop.permute.xlu0 %2927
      %2929 = vrot.lane.b32.xlu0 %v2831, 8
      %v2930 = vpop.permute.xlu0 %2929
      %2931 = vrot.lane.b32.xlu0 %v2832, 8
      %v2932 = vpop.permute.xlu0 %2931
      %2933 = vrot.lane.b32.xlu0 %v2833, 8
      %v2934 = vpop.permute.xlu0 %2933
      %2935 = vrot.lane.b32.xlu0 %v2834, 8
      %v2936 = vpop.permute.xlu0 %2935
      %2937 = vrot.lane.b32.xlu0 %v2835, 8
      %v2938 = vpop.permute.xlu0 %2937
      %2939 = vrot.lane.b32.xlu0 %v2836, 8
      %v2940 = vpop.permute.xlu0 %2939
      %2941 = vrot.lane.b32.xlu0 %v2837, 8
      %v2942 = vpop.permute.xlu0 %2941
      %2943 = vrot.lane.b32.xlu0 %v2838, 8
      %v2944 = vpop.permute.xlu0 %2943
      %2945 = vrot.lane.b32.xlu0 %v2839, 8
      %v2946 = vpop.permute.xlu0 %2945
      %2947 = vrot.lane.b32.xlu0 %v2840, 8
      %v2948 = vpop.permute.xlu0 %2947
      %2975 = vrot.lane.b32.xlu0 %v2841, 16
      %v2976 = vpop.permute.xlu0 %2975
      %2977 = vrot.lane.b32.xlu0 %v2842, 16
      %v2978 = vpop.permute.xlu0 %2977
      %2979 = vrot.lane.b32.xlu0 %v2843, 16
      %v2980 = vpop.permute.xlu0 %2979
      %2981 = vrot.lane.b32.xlu0 %v2844, 16
      %v2982 = vpop.permute.xlu0 %2981
      %2983 = vrot.lane.b32.xlu0 %v2845, 16
      %v2984 = vpop.permute.xlu0 %2983
      %2985 = vrot.lane.b32.xlu0 %v2846, 16
      %v2986 = vpop.permute.xlu0 %2985
      %2987 = vrot.lane.b32.xlu0 %v2847, 16
      %v2988 = vpop.permute.xlu0 %2987
      %2989 = vrot.lane.b32.xlu0 %v2848, 16
      %v2990 = vpop.permute.xlu0 %2989
      %2991 = vrot.lane.b32.xlu0 %v2849, 16
      %v2992 = vpop.permute.xlu0 %2991
      %2993 = vrot.lane.b32.xlu0 %v2850, 16
      %v2994 = vpop.permute.xlu0 %2993
      %2995 = vrot.lane.b32.xlu0 %v2851, 16
      %v2996 = vpop.permute.xlu0 %2995
      %2997 = vrot.lane.b32.xlu0 %v2852, 16
      %v2998 = vpop.permute.xlu0 %2997
      %2999 = vrot.lane.b32.xlu0 %v2853, 16
      %v3000 = vpop.permute.xlu0 %2999
      %3016 = vrot.lane.b32.xlu0 %v2842, 24
      %v3017 = vpop.permute.xlu0 %3016
      %3018 = vrot.lane.b32.xlu0 %v2843, 24
      %v3019 = vpop.permute.xlu0 %3018
      %3020 = vrot.lane.b32.xlu0 %v2844, 24
      %v3021 = vpop.permute.xlu0 %3020
      %3022 = vrot.lane.b32.xlu0 %v2845, 24
      %v3023 = vpop.permute.xlu0 %3022
      %3024 = vrot.lane.b32.xlu0 %v2846, 24
      %v3025 = vpop.permute.xlu0 %3024
      %3026 = vrot.lane.b32.xlu0 %v2847, 24
      %v3027 = vpop.permute.xlu0 %3026
      %3028 = vrot.lane.b32.xlu0 %v2848, 24
      %v3029 = vpop.permute.xlu0 %3028
      %3030 = vrot.lane.b32.xlu0 %v2849, 24
      %v3031 = vpop.permute.xlu0 %3030
      %3032 = vrot.lane.b32.xlu0 %v2850, 24
      %v3033 = vpop.permute.xlu0 %3032
      %3034 = vrot.lane.b32.xlu0 %v2851, 24
      %v3035 = vpop.permute.xlu0 %3034
      %3036 = vrot.lane.b32.xlu0 %v2852, 24
      %v3037 = vpop.permute.xlu0 %3036
      %3038 = vrot.lane.b32.xlu0 %v2854, 24
      %v3039 = vpop.permute.xlu0 %3038
      %3040 = vrot.lane.b32.xlu0 %v2855, 24
      %v3041 = vpop.permute.xlu0 %3040
      %3068 = vrot.lane.b32.xlu0 %v2856, 32
      %v3069 = vpop.permute.xlu0 %3068
      %3070 = vrot.lane.b32.xlu0 %v2857, 32
      %v3071 = vpop.permute.xlu0 %3070
      %3072 = vrot.lane.b32.xlu0 %v2858, 32
      %v3073 = vpop.permute.xlu0 %3072
      %3074 = vrot.lane.b32.xlu0 %v2859, 32
      %v3075 = vpop.permute.xlu0 %3074
      %3076 = vrot.lane.b32.xlu0 %v2860, 32
      %v3077 = vpop.permute.xlu0 %3076
      %3078 = vrot.lane.b32.xlu0 %v2861, 32
      %v3079 = vpop.permute.xlu0 %3078
      %3080 = vrot.lane.b32.xlu0 %v2862, 32
      %v3081 = vpop.permute.xlu0 %3080
      %3082 = vrot.lane.b32.xlu0 %v2863, 32
      %v3083 = vpop.permute.xlu0 %3082
      %3084 = vrot.lane.b32.xlu0 %v2864, 32
      %v3085 = vpop.permute.xlu0 %3084
      %3086 = vrot.lane.b32.xlu0 %v2865, 32
      %v3087 = vpop.permute.xlu0 %3086
      %3088 = vrot.lane.b32.xlu0 %v2866, 32
      %v3089 = vpop.permute.xlu0 %3088
      %3090 = vrot.lane.b32.xlu0 %v2867, 32
      %v3091 = vpop.permute.xlu0 %3090
      %3092 = vrot.lane.b32.xlu0 %v2868, 32
      %v3093 = vpop.permute.xlu0 %3092
      %3120 = vrot.lane.b32.xlu0 %v2869, 40
      %v3121 = vpop.permute.xlu0 %3120
      %3122 = vrot.lane.b32.xlu0 %v2870, 40
      %v3123 = vpop.permute.xlu0 %3122
      %3124 = vrot.lane.b32.xlu0 %v2871, 40
      %v3125 = vpop.permute.xlu0 %3124
      %3126 = vrot.lane.b32.xlu0 %v2872, 40
      %v3127 = vpop.permute.xlu0 %3126
      %3128 = vrot.lane.b32.xlu0 %v2873, 40
      %v3129 = vpop.permute.xlu0 %3128
      %3130 = vrot.lane.b32.xlu0 %v2874, 40
      %v3131 = vpop.permute.xlu0 %3130
      %3132 = vrot.lane.b32.xlu0 %v2875, 40
      %v3133 = vpop.permute.xlu0 %3132
      %3134 = vrot.lane.b32.xlu0 %v2876, 40
      %v3135 = vpop.permute.xlu0 %3134
      %3136 = vrot.lane.b32.xlu0 %v2877, 40
      %v3137 = vpop.permute.xlu0 %3136
      %3138 = vrot.lane.b32.xlu0 %v2878, 40
      %v3139 = vpop.permute.xlu0 %3138
      %3140 = vrot.lane.b32.xlu0 %v2879, 40
      %v3141 = vpop.permute.xlu0 %3140
      %3142 = vrot.lane.b32.xlu0 %v2880, 40
      %v3143 = vpop.permute.xlu0 %3142
      %3144 = vrot.lane.b32.xlu0 %v2881, 40
      %v3145 = vpop.permute.xlu0 %3144
      %3161 = vrot.lane.b32.xlu0 %v2870, 48
      %v3162 = vpop.permute.xlu0 %3161
      %3163 = vrot.lane.b32.xlu0 %v2871, 48
      %v3164 = vpop.permute.xlu0 %3163
      %3165 = vrot.lane.b32.xlu0 %v2872, 48
      %v3166 = vpop.permute.xlu0 %3165
      %3167 = vrot.lane.b32.xlu0 %v2873, 48
      %v3168 = vpop.permute.xlu0 %3167
      %3169 = vrot.lane.b32.xlu0 %v2874, 48
      %v3170 = vpop.permute.xlu0 %3169
      %3171 = vrot.lane.b32.xlu0 %v2875, 48
      %v3172 = vpop.permute.xlu0 %3171
      %3173 = vrot.lane.b32.xlu0 %v2876, 48
      %v3174 = vpop.permute.xlu0 %3173
      %3175 = vrot.lane.b32.xlu0 %v2877, 48
      %v3176 = vpop.permute.xlu0 %3175
      %3177 = vrot.lane.b32.xlu0 %v2878, 48
      %v3178 = vpop.permute.xlu0 %3177
      %3179 = vrot.lane.b32.xlu0 %v2879, 48
      %v3180 = vpop.permute.xlu0 %3179
      %3181 = vrot.lane.b32.xlu0 %v2880, 48
      %v3182 = vpop.permute.xlu0 %3181
      %3183 = vrot.lane.b32.xlu0 %v2882, 48
      %v3184 = vpop.permute.xlu0 %3183
      %3185 = vrot.lane.b32.xlu0 %v2883, 48
      %v3186 = vpop.permute.xlu0 %3185
      %3213 = vrot.lane.b32.xlu0 %v2884, 56
      %v3214 = vpop.permute.xlu0 %3213
      %3215 = vrot.lane.b32.xlu0 %v2885, 56
      %v3216 = vpop.permute.xlu0 %3215
      %3217 = vrot.lane.b32.xlu0 %v2886, 56
      %v3218 = vpop.permute.xlu0 %3217
      %3219 = vrot.lane.b32.xlu0 %v2887, 56
      %v3220 = vpop.permute.xlu0 %3219
      %3221 = vrot.lane.b32.xlu0 %v2888, 56
      %v3222 = vpop.permute.xlu0 %3221
      %3223 = vrot.lane.b32.xlu0 %v2889, 56
      %v3224 = vpop.permute.xlu0 %3223
      %3225 = vrot.lane.b32.xlu0 %v2890, 56
      %v3226 = vpop.permute.xlu0 %3225
      %3227 = vrot.lane.b32.xlu0 %v2891, 56
      %v3228 = vpop.permute.xlu0 %3227
      %3229 = vrot.lane.b32.xlu0 %v2892, 56
      %v3230 = vpop.permute.xlu0 %3229
      %3231 = vrot.lane.b32.xlu0 %v2893, 56
      %v3232 = vpop.permute.xlu0 %3231
      %3233 = vrot.lane.b32.xlu0 %v2894, 56
      %v3234 = vpop.permute.xlu0 %3233
      %3235 = vrot.lane.b32.xlu0 %v2895, 56
      %v3236 = vpop.permute.xlu0 %3235
      %3237 = vrot.lane.b32.xlu0 %v2896, 56
      %v3238 = vpop.permute.xlu0 %3237
      %3265 = vrot.lane.b32.xlu0 %v2897, 64
      %v3266 = vpop.permute.xlu0 %3265
      %3267 = vrot.lane.b32.xlu0 %v2898, 64
      %v3268 = vpop.permute.xlu0 %3267
      %3269 = vrot.lane.b32.xlu0 %v2899, 64
      %v3270 = vpop.permute.xlu0 %3269
      %3271 = vrot.lane.b32.xlu0 %v2900, 64
      %v3272 = vpop.permute.xlu0 %3271
      %3273 = vrot.lane.b32.xlu0 %v2901, 64
      %v3274 = vpop.permute.xlu0 %3273
      %3275 = vrot.lane.b32.xlu0 %v2902, 64
      %v3276 = vpop.permute.xlu0 %3275
      %3277 = vrot.lane.b32.xlu0 %v2903, 64
      %v3278 = vpop.permute.xlu0 %3277
      %3279 = vrot.lane.b32.xlu0 %v2904, 64
      %v3280 = vpop.permute.xlu0 %3279
      %3281 = vrot.lane.b32.xlu0 %v2905, 64
      %v3282 = vpop.permute.xlu0 %3281
      %3283 = vrot.lane.b32.xlu0 %v2906, 64
      %v3284 = vpop.permute.xlu0 %3283
      %3285 = vrot.lane.b32.xlu0 %v2907, 64
      %v3286 = vpop.permute.xlu0 %3285
      %3287 = vrot.lane.b32.xlu0 %v2908, 64
      %v3288 = vpop.permute.xlu0 %3287
      %3289 = vrot.lane.b32.xlu0 %v2909, 64
      %v3290 = vpop.permute.xlu0 %3289
      %v3304 = vsel %vm2009, %v2815, %v2924
      %v3305 = vsel %vm2009, %v2816, %v2926
      %v3306 = vsel %vm2009, %v2817, %v2928
      %v3307 = vsel %vm2009, %v2818, %v2930
      %v3308 = vsel %vm2009, %v2819, %v2932
      %v3309 = vsel %vm2009, %v2820, %v2934
      %v3310 = vsel %vm2009, %v2821, %v2936
      %v3311 = vsel %vm2009, %v2822, %v2938
      %v3312 = vsel %vm2009, %v2823, %v2940
      %v3313 = vsel %vm2009, %v2824, %v2942
      %v3314 = vsel %vm2009, %v2825, %v2944
      %v3315 = vsel %vm2009, %v2826, %v2946
      %v3316 = vsel %vm2009, %v2827, %v2948
      %v3317 = vsel %vm2093, %v3304, %v2976
      %v3318 = vsel %vm2093, %v3305, %v2978
      %v3319 = vsel %vm2093, %v3306, %v2980
      %v3320 = vsel %vm2093, %v3307, %v2982
      %v3321 = vsel %vm2093, %v3308, %v2984
      %v3322 = vsel %vm2093, %v3309, %v2986
      %v3323 = vsel %vm2093, %v3310, %v2988
      %v3324 = vsel %vm2093, %v3311, %v2990
      %v3325 = vsel %vm2093, %v3312, %v2992
      %v3326 = vsel %vm2093, %v3313, %v2994
      %v3327 = vsel %vm2093, %v3314, %v2996
      %v3328 = vsel %vm2093, %v3315, %v2998
      %v3329 = vsel %vm2093, %v3316, %v3000
      %v3330 = vsel %vm2177, %v3317, %v3017
      %v3331 = vsel %vm2177, %v3318, %v3019
      %v3332 = vsel %vm2177, %v3319, %v3021
      %v3333 = vsel %vm2177, %v3320, %v3023
      %v3334 = vsel %vm2177, %v3321, %v3025
      %v3335 = vsel %vm2177, %v3322, %v3027
      %v3336 = vsel %vm2177, %v3323, %v3029
      %v3337 = vsel %vm2177, %v3324, %v3031
      %v3338 = vsel %vm2177, %v3325, %v3033
      %v3339 = vsel %vm2177, %v3326, %v3035
      %v3340 = vsel %vm2177, %v3327, %v3037
      %v3341 = vsel %vm2177, %v3328, %v3039
      %v3342 = vsel %vm2177, %v3329, %v3041
      %v3343 = vsel %vm2261, %v3330, %v3069
      %v3344 = vsel %vm2261, %v3331, %v3071
      %v3345 = vsel %vm2261, %v3332, %v3073
      %v3346 = vsel %vm2261, %v3333, %v3075
      %v3347 = vsel %vm2261, %v3334, %v3077
      %v3348 = vsel %vm2261, %v3335, %v3079
      %v3349 = vsel %vm2261, %v3336, %v3081
      %v3350 = vsel %vm2261, %v3337, %v3083
      %v3351 = vsel %vm2261, %v3338, %v3085
      %v3352 = vsel %vm2261, %v3339, %v3087
      %v3353 = vsel %vm2261, %v3340, %v3089
      %v3354 = vsel %vm2261, %v3341, %v3091
      %v3355 = vsel %vm2261, %v3342, %v3093
      %vm3356 = vcmask 326656
      %v3357 = vsel %vm3356, %v3343, %v3121
      %v3358 = vsel %vm3356, %v3344, %v3123
      %v3359 = vsel %vm3356, %v3345, %v3125
      %v3360 = vsel %vm3356, %v3346, %v3127
      %v3361 = vsel %vm3356, %v3347, %v3129
      %v3362 = vsel %vm3356, %v3348, %v3131
      %v3363 = vsel %vm3356, %v3349, %v3133
      %v3364 = vsel %vm3356, %v3350, %v3135
      %v3365 = vsel %vm3356, %v3351, %v3137
      %v3366 = vsel %vm3356, %v3352, %v3139
      %v3367 = vsel %vm3356, %v3353, %v3141
      %v3368 = vsel %vm3356, %v3354, %v3143
      %v3369 = vsel %vm3356, %v3355, %v3145
      %vm3370 = vcmask 392192
      %v3371 = vsel %vm3370, %v3357, %v3162
      %v3372 = vsel %vm3370, %v3358, %v3164
      %v3373 = vsel %vm3370, %v3359, %v3166
      %v3374 = vsel %vm3370, %v3360, %v3168
      %v3375 = vsel %vm3370, %v3361, %v3170
      %v3376 = vsel %vm3370, %v3362, %v3172
      %v3377 = vsel %vm3370, %v3363, %v3174
      %v3378 = vsel %vm3370, %v3364, %v3176
      %v3379 = vsel %vm3370, %v3365, %v3178
      %v3380 = vsel %vm3370, %v3366, %v3180
      %v3381 = vsel %vm3370, %v3367, %v3182
      %v3382 = vsel %vm3370, %v3368, %v3184
      %v3383 = vsel %vm3370, %v3369, %v3186
      %vm3384 = vcmask 457728
      %v3385 = vsel %vm3384, %v3371, %v3214
      %v3386 = vsel %vm3384, %v3372, %v3216
      %v3387 = vsel %vm3384, %v3373, %v3218
      %v3388 = vsel %vm3384, %v3374, %v3220
      %v3389 = vsel %vm3384, %v3375, %v3222
      %v3390 = vsel %vm3384, %v3376, %v3224
      %v3391 = vsel %vm3384, %v3377, %v3226
      %v3392 = vsel %vm3384, %v3378, %v3228
      %v3393 = vsel %vm3384, %v3379, %v3230
      %v3394 = vsel %vm3384, %v3380, %v3232
      %v3395 = vsel %vm3384, %v3381, %v3234
      %v3396 = vsel %vm3384, %v3382, %v3236
      %v3397 = vsel %vm3384, %v3383, %v3238
      %vm3398 = vcmask 523264
      %v3399 = vsel %vm3398, %v3385, %v3266
      %v3400 = vsel %vm3398, %v3386, %v3268
      %v3401 = vsel %vm3398, %v3387, %v3270
      %v3402 = vsel %vm3398, %v3388, %v3272
      %v3403 = vsel %vm3398, %v3389, %v3274
      %v3404 = vsel %vm3398, %v3390, %v3276
      %v3405 = vsel %vm3398, %v3391, %v3278
      %v3406 = vsel %vm3398, %v3392, %v3280
      %v3407 = vsel %vm3398, %v3393, %v3282
      %v3408 = vsel %vm3398, %v3394, %v3284
      %v3409 = vsel %vm3398, %v3395, %v3286
      %v3410 = vsel %vm3398, %v3396, %v3288
      %v3411 = vsel %vm3398, %v3397, %v3290
      %v3412 = vpack.c.bf16 %v3400, %v3399
      %v3413 = vpack.c.bf16 %v3402, %v3401
      %v3414 = vpack.c.bf16 %v3404, %v3403
      %v3415 = vpack.c.bf16 %v3406, %v3405
      %v3416 = vpack.c.bf16 %v3408, %v3407
      %v3417 = vpack.c.bf16 %v3410, %v3409
      %v3418 = vpack.c.bf16 %v3411, %v3411
      %v3419 = vld [vmem:[%s3] sm:$0xf]
      %v3420 = vld [vmem:[%s3 + $0x4] sm:$0xf]
      %v3421 = vld [vmem:[%s3 + $0x8] sm:$0xf]
      %v3422 = vld [vmem:[%s3 + $0xc] sm:$0xf]
      %v3423 = vld [vmem:[%s3 + $0x10] sm:$0xf]
      %v3424 = vld [vmem:[%s3 + $0x14] sm:$0xf]
      %v3425 = vld [vmem:[%s3 + $0x18] sm:$0xf]
      %v3426 = vld [vmem:[%s3 + $0x1c] sm:$0xf]
      %v3427 = vld [vmem:[%s3 + $0x20] sm:$0xf]
      %v3428 = vld [vmem:[%s4] sm:$0x1]
      %v3430 = vlaneseq
      %v3431 = vshrl.u32 %v3430, 7
      %v3432 = vsub.s32 0, %v3431
      %v3433 = vrot.slane %v3428, %v3432
      %v3444 = vunpack.c.l.b16 %v3419
      %v3445 = vunpack.c.l.b16 %v3420
      %v3446 = vunpack.c.l.b16 %v3421
      %v3447 = vunpack.c.l.b16 %v3422
      %v3448 = vunpack.c.l.b16 %v3423
      %v3449 = vunpack.c.l.b16 %v3424
      %v3450 = vunpack.c.l.b16 %v3425
      %v3451 = vunpack.c.l.b16 %v3426
      %v3452 = vunpack.c.l.b16 %v3427
      %v3453 = vpack.c.b16 %v3445, %v3444
      %v3454 = vpack.c.b16 %v3447, %v3446
      %v3455 = vpack.c.b16 %v3449, %v3448
      %v3456 = vpack.c.b16 %v3451, %v3450
      %v3457 = vpack.c.b16 %v3452, %v3452
      %vm3462 = vcmask 588800
      %v3464 = vsel %vm3462, %v3412, 0
      %v3467 = vsel %vm3462, %v3413, 0
      %v3470 = vsel %vm3462, %v3414, 0
      %v3473 = vsel %vm3462, %v3415, 0
      %v3476 = vsel %vm3462, %v3416, 0
      %v3479 = vsel %vm3462, %v3417, 0
      %v3482 = vsel %vm3462, %v3418, 0
      %vm3484 = vcmask 1043456
      %v3486 = vsel %vm3484, %v3457, 0
      %3488 = vmatprep.subr.bf16.mxu0 0
      %3489 = vmatpush1.bf16.msra.mxu0 %v3453
      %3490 = vmatprep.subr.bf16.mxu0 0
      %3491 = vmatpush1.bf16.msra.mxu0 %v3454
      %3492 = vmatprep.subr.bf16.mxu0 0
      %3493 = vmatpush1.bf16.msra.mxu0 %v3455
      %3494 = vmatprep.subr.bf16.mxu0 0
      %3495 = vmatpush1.bf16.msra.mxu0 %v3456
      %3496 = vmatprep.subr.bf16.mxu0 0
      %3497 = vmatpush1.bf16.msra.mxu0 %v3486
      %3498 = vmatprep.subr.bf16.mxu0 0
      %3499 = vmatpush1.bf16.msra.mxu0 0
      %3500 = vmatprep.subr.bf16.mxu0 0
      %3501 = vmatpush1.bf16.msra.mxu0 0
      %3502 = vmatprep.subr.bf16.mxu0 0
      %3503 = vmatpush1.bf16.msra.mxu0 0
      %3504 = vmatprep.subr.bf16.mxu0 0
      %3505 = vmatpush1.bf16.msra.mxu0 0
      %3506 = vmatprep.subr.bf16.mxu0 0
      %3507 = vmatpush1.bf16.msra.mxu0 0
      %3508 = vmatprep.subr.bf16.mxu0 0
      %3509 = vmatpush1.bf16.msra.mxu0 0
      %3510 = vmatprep.subr.bf16.mxu0 0
      %3511 = vmatpush1.bf16.msra.mxu0 0
      %3512 = vmatprep.subr.bf16.mxu0 0
      %3513 = vmatpush1.bf16.msra.mxu0 0
      %3514 = vmatprep.subr.bf16.mxu0 0
      %3515 = vmatpush1.bf16.msra.mxu0 0
      %3516 = vmatprep.subr.bf16.mxu0 0
      %3517 = vmatpush1.bf16.msra.mxu0 0
      %3518 = vmatprep.subr.bf16.mxu0 0
      %3519 = vmatpush1.bf16.msra.mxu0 0
      %3520 = vmatprep.mubr.bf16.mxu0 0
      %3521 = vmatmul.mubr.bf16.gmra.mrb[0].mxu0 %v3464
      %v3522 = vpop.f32.mrb[0].mxu0
      %v3523 = vadd.f32 %v3433, %v3522
      %v3524 = vpop.f32.mrb[0].mxu0
      %v3525 = vpop.f32.mrb[0].mxu0
      %v3526 = vadd.f32 %v3433, %v3525
      %v3527 = vpop.f32.mrb[0].mxu0
      %3528 = vmatprep.mubr.bf16.mxu0 0
      %3529 = vmatmul.mubr.bf16.gmra.mrb[0].mxu0 %v3467
      %v3530 = vpop.f32.mrb[0].mxu0
      %v3531 = vadd.f32 %v3433, %v3530
      %v3532 = vpop.f32.mrb[0].mxu0
      %v3533 = vpop.f32.mrb[0].mxu0
      %v3534 = vadd.f32 %v3433, %v3533
      %v3535 = vpop.f32.mrb[0].mxu0
      %3536 = vmatprep.mubr.bf16.mxu0 0
      %3537 = vmatmul.mubr.bf16.gmra.mrb[0].mxu0 %v3470
      %v3538 = vpop.f32.mrb[0].mxu0
      %v3539 = vadd.f32 %v3433, %v3538
      %v3540 = vpop.f32.mrb[0].mxu0
      %v3541 = vpop.f32.mrb[0].mxu0
      %v3542 = vadd.f32 %v3433, %v3541
      %v3543 = vpop.f32.mrb[0].mxu0
      %3544 = vmatprep.mubr.bf16.mxu0 0
      %3545 = vmatmul.mubr.bf16.gmra.mrb[0].mxu0 %v3473
      %v3546 = vpop.f32.mrb[0].mxu0
      %v3547 = vadd.f32 %v3433, %v3546
      %v3548 = vpop.f32.mrb[0].mxu0
      %v3549 = vpop.f32.mrb[0].mxu0
      %v3550 = vadd.f32 %v3433, %v3549
      %v3551 = vpop.f32.mrb[0].mxu0
      %3552 = vmatprep.mubr.bf16.mxu0 0
      %3553 = vmatmul.mubr.bf16.gmra.mrb[0].mxu0 %v3476
      %v3554 = vpop.f32.mrb[0].mxu0
      %v3555 = vadd.f32 %v3433, %v3554
      %v3556 = vpop.f32.mrb[0].mxu0
      %v3557 = vpop.f32.mrb[0].mxu0
      %v3558 = vadd.f32 %v3433, %v3557
      %v3559 = vpop.f32.mrb[0].mxu0
      %3560 = vmatprep.mubr.bf16.mxu0 0
      %3561 = vmatmul.mubr.bf16.gmra.mrb[0].mxu0 %v3479
      %v3562 = vpop.f32.mrb[0].mxu0
      %v3563 = vadd.f32 %v3433, %v3562
      %v3564 = vpop.f32.mrb[0].mxu0
      %v3565 = vpop.f32.mrb[0].mxu0
      %v3566 = vadd.f32 %v3433, %v3565
      %v3567 = vpop.f32.mrb[0].mxu0
      %3568 = vmatprep.mubr.bf16.mxu0 0
      %3569 = vmatmul.mubr.bf16.gmra.mrb[0].mxu0 %v3482
      %v3570 = vpop.f32.mrb[0].mxu0
      %v3571 = vadd.f32 %v3433, %v3570
      %v3572 = vpop.f32.mrb[0].mxu0
      %v3573 = vpop.f32.mrb[0].mxu0
      %v3574 = vpop.f32.mrb[0].mxu0
      %3575 = vdwg.mxu0
      %v3576 = vmax.f32 %v3523, 0.0
      %v3577 = vmax.f32 %v3526, 0.0
      %v3578 = vmax.f32 %v3531, 0.0
      %v3579 = vmax.f32 %v3534, 0.0
      %v3580 = vmax.f32 %v3539, 0.0
      %v3581 = vmax.f32 %v3542, 0.0
      %v3582 = vmax.f32 %v3547, 0.0
      %v3583 = vmax.f32 %v3550, 0.0
      %v3584 = vmax.f32 %v3555, 0.0
      %v3585 = vmax.f32 %v3558, 0.0
      %v3586 = vmax.f32 %v3563, 0.0
      %v3587 = vmax.f32 %v3566, 0.0
      %v3588 = vmax.f32 %v3571, 0.0
      %3589 = vst.msk [vmem:[#allocation6] sm:$0xff] %vm2093, %v3576
      %3590 = vst.msk [vmem:[#allocation6 + $0x8] sm:$0xff] %vm2093, %v3577
      %3591 = vst.msk [vmem:[#allocation6 + $0x10] sm:$0xff] %vm2093, %v3578
      %3592 = vst.msk [vmem:[#allocation6 + $0x18] sm:$0xff] %vm2093, %v3579
      %3593 = vst.msk [vmem:[#allocation6 + $0x20] sm:$0xff] %vm2093, %v3580
      %3594 = vst.msk [vmem:[#allocation6 + $0x28] sm:$0xff] %vm2093, %v3581
      %3595 = vst.msk [vmem:[#allocation6 + $0x30] sm:$0xff] %vm2093, %v3582
      %3596 = vst.msk [vmem:[#allocation6 + $0x38] sm:$0xff] %vm2093, %v3583
      %3597 = vst.msk [vmem:[#allocation6 + $0x40] sm:$0xff] %vm2093, %v3584
      %3598 = vst.msk [vmem:[#allocation6 + $0x48] sm:$0xff] %vm2093, %v3585
      %3599 = vst.msk [vmem:[#allocation6 + $0x50] sm:$0xff] %vm2093, %v3586
      %3600 = vst.msk [vmem:[#allocation6 + $0x58] sm:$0xff] %vm2093, %v3587
      %vm3601 = vcmask 125952
      %3602 = vst.msk [vmem:[#allocation6 + $0x60] sm:$0xf] %vm3601, %v3588
      %3603 = vst.msk [vmem:[#allocation3] sm:$0xff] %vm2093, 0.0
      %3604 = vst.msk [vmem:[#allocation3 + $0x8] sm:$0xff] %vm2093, 0.0
      %3605 = vst.msk [vmem:[#allocation3 + $0x10] sm:$0xff] %vm2093, 0.0
      %3606 = vst.msk [vmem:[#allocation3 + $0x18] sm:$0xff] %vm2093, 0.0
      %3607 = vst.msk [vmem:[#allocation3 + $0x20] sm:$0xff] %vm2093, 0.0
      %3608 = vst.msk [vmem:[#allocation3 + $0x28] sm:$0xff] %vm2093, 0.0
      %vm3609 = vcmask 123904
      %3610 = vst.msk [vmem:[#allocation3 + $0x30] sm:$0x3] %vm3609, 0.0
      %s3611 = scalar_lea.vmem [#allocation6], 11
      %v3612 = vld [vmem:[%s3611] ss:$2 sm:$0xf]
      %s3613 = scalar_lea.vmem [#allocation6], 12
      %v3614 = vld [vmem:[%s3613] ss:$2 sm:$0xf]
      %v3615 = vmax.f32 %v3612, %v3614
      %s3616 = scalar_lea.vmem [#allocation6], 21
      %v3617 = vld [vmem:[%s3616] ss:$2 sm:$0xf]
      %s3618 = scalar_lea.vmem [#allocation6], 22
      %v3619 = vld [vmem:[%s3618] ss:$2 sm:$0xf]
      %v3620 = vmax.f32 %v3617, %v3619
      %v3621 = vmax.f32 %v3615, %v3620
      %3622 = vst.msk [vmem:[#allocation3 + $0xe] sm:$0xf] %vm3601, %v3621
      %s3623 = scalar_lea.vmem [#allocation6], 31
      %v3624 = vld [vmem:[%s3623] ss:$2 sm:$0xf]
      %s3625 = scalar_lea.vmem [#allocation6], 32
      %v3626 = vld [vmem:[%s3625] ss:$2 sm:$0xf]
      %v3627 = vmax.f32 %v3624, %v3626
      %s3628 = scalar_lea.vmem [#allocation6], 41
      %v3629 = vld [vmem:[%s3628] ss:$2 sm:$0xf]
      %s3630 = scalar_lea.vmem [#allocation6], 42
      %v3631 = vld [vmem:[%s3630] ss:$2 sm:$0xf]
      %v3632 = vmax.f32 %v3629, %v3631
      %v3633 = vmax.f32 %v3627, %v3632
      %3634 = vst.msk [vmem:[#allocation3 + $0x14] sm:$0xf] %vm3601, %v3633
      %s3635 = scalar_lea.vmem [#allocation6], 51
      %v3636 = vld [vmem:[%s3635] ss:$2 sm:$0xf]
      %s3637 = scalar_lea.vmem [#allocation6], 52
      %v3638 = vld [vmem:[%s3637] ss:$2 sm:$0xf]
      %v3639 = vmax.f32 %v3636, %v3638
      %s3640 = scalar_lea.vmem [#allocation6], 61
      %v3641 = vld [vmem:[%s3640] ss:$2 sm:$0xf]
      %s3642 = scalar_lea.vmem [#allocation6], 62
      %v3643 = vld [vmem:[%s3642] ss:$2 sm:$0xf]
      %v3644 = vmax.f32 %v3641, %v3643
      %v3645 = vmax.f32 %v3639, %v3644
      %3646 = vst.msk [vmem:[#allocation3 + $0x1a] sm:$0xf] %vm3601, %v3645
      %s3647 = scalar_lea.vmem [#allocation6], 71
      %v3648 = vld [vmem:[%s3647] ss:$2 sm:$0xf]
      %s3649 = scalar_lea.vmem [#allocation6], 72
      %v3650 = vld [vmem:[%s3649] ss:$2 sm:$0xf]
      %v3651 = vmax.f32 %v3648, %v3650
      %s3652 = scalar_lea.vmem [#allocation6], 81
      %v3653 = vld [vmem:[%s3652] ss:$2 sm:$0xf]
      %s3654 = scalar_lea.vmem [#allocation6], 82
      %v3655 = vld [vmem:[%s3654] ss:$2 sm:$0xf]
      %v3656 = vmax.f32 %v3653, %v3655
      %v3657 = vmax.f32 %v3651, %v3656
      %3658 = vst.msk [vmem:[#allocation3 + $0x20] sm:$0xf] %vm3601, %v3657
      %v3659 = vld [vmem:[#allocation3] sm:$0xff]
      %v3660 = vld [vmem:[#allocation3 + $0x8] sm:$0xff]
      %v3661 = vld [vmem:[#allocation3 + $0x10] sm:$0xff]
      %v3662 = vld [vmem:[#allocation3 + $0x18] sm:$0xff]
      %v3663 = vld [vmem:[#allocation3 + $0x20] sm:$0xf]
      %v3664 = vld [vmem:[#allocation3 + $0x1] sm:$0xff]
      %v3665 = vld [vmem:[#allocation3 + $0x9] sm:$0xff]
      %v3666 = vld [vmem:[#allocation3 + $0x11] sm:$0xff]
      %v3667 = vld [vmem:[#allocation3 + $0x19] sm:$0xff]
      %v3668 = vld [vmem:[#allocation3 + $0x21] sm:$0xf]
      %v3669 = vld [vmem:[#allocation3 + $0x2] sm:$0xff]
      %v3670 = vld [vmem:[#allocation3 + $0xa] sm:$0xff]
      %v3671 = vld [vmem:[#allocation3 + $0x12] sm:$0xff]
      %v3672 = vld [vmem:[#allocation3 + $0x1a] sm:$0xff]
      %v3673 = vld [vmem:[#allocation3 + $0x22] sm:$0xf]
      %v3674 = vld [vmem:[#allocation3 + $0x6] sm:$0xff]
      %v3675 = vld [vmem:[#allocation3 + $0xe] sm:$0xff]
      %v3676 = vld [vmem:[#allocation3 + $0x16] sm:$0xff]
      %v3677 = vld [vmem:[#allocation3 + $0x1e] sm:$0xff]
      %v3678 = vld [vmem:[#allocation3 + $0x26] sm:$0xf]
      %v3679 = vld [vmem:[#allocation3 + $0x7] sm:$0xff]
      %v3680 = vld [vmem:[#allocation3 + $0xf] sm:$0xff]
      %v3681 = vld [vmem:[#allocation3 + $0x17] sm:$0xff]
      %v3682 = vld [vmem:[#allocation3 + $0x1f] sm:$0xff]
      %v3683 = vld [vmem:[#allocation3 + $0x27] sm:$0xf]
      %v3684 = vld [vmem:[#allocation3 + $0x20] sm:$0xff]
      %v3685 = vld [vmem:[#allocation3 + $0x28] sm:$0xf]
      %v3686 = vld [vmem:[#allocation3 + $0xc] sm:$0xff]
      %v3687 = vld [vmem:[#allocation3 + $0x14] sm:$0xff]
      %v3688 = vld [vmem:[#allocation3 + $0x1c] sm:$0xff]
      %v3689 = vld [vmem:[#allocation3 + $0x24] sm:$0xff]
      %v3690 = vld [vmem:[#allocation3 + $0x2c] sm:$0xf]
      %v3691 = vld [vmem:[#allocation3 + $0xd] sm:$0xff]
      %v3692 = vld [vmem:[#allocation3 + $0x15] sm:$0xff]
      %v3693 = vld [vmem:[#allocation3 + $0x1d] sm:$0xff]
      %v3694 = vld [vmem:[#allocation3 + $0x25] sm:$0xff]
      %v3695 = vld [vmem:[#allocation3 + $0x2d] sm:$0xf]
      %v3696 = vld [vmem:[#allocation3 + $0x26] sm:$0xff]
      %v3697 = vld [vmem:[#allocation3 + $0x2e] sm:$0xf]
      %3703 = vrot.lane.b32.xlu0 %v3664, 16
      %v3704 = vpop.permute.xlu0 %3703
      %3705 = vrot.lane.b32.xlu0 %v3665, 16
      %v3706 = vpop.permute.xlu0 %3705
      %3707 = vrot.lane.b32.xlu0 %v3666, 16
      %v3708 = vpop.permute.xlu0 %3707
      %3709 = vrot.lane.b32.xlu0 %v3667, 16
      %v3710 = vpop.permute.xlu0 %3709
      %3711 = vrot.lane.b32.xlu0 %v3668, 16
      %v3712 = vpop.permute.xlu0 %3711
      %3723 = vrot.lane.b32.xlu0 %v3669, 32
      %v3724 = vpop.permute.xlu0 %3723
      %3725 = vrot.lane.b32.xlu0 %v3670, 32
      %v3726 = vpop.permute.xlu0 %3725
      %3727 = vrot.lane.b32.xlu0 %v3671, 32
      %v3728 = vpop.permute.xlu0 %3727
      %3729 = vrot.lane.b32.xlu0 %v3672, 32
      %v3730 = vpop.permute.xlu0 %3729
      %3731 = vrot.lane.b32.xlu0 %v3673, 32
      %v3732 = vpop.permute.xlu0 %3731
      %3743 = vrot.lane.b32.xlu0 %v3674, 48
      %v3744 = vpop.permute.xlu0 %3743
      %3745 = vrot.lane.b32.xlu0 %v3675, 48
      %v3746 = vpop.permute.xlu0 %3745
      %3747 = vrot.lane.b32.xlu0 %v3676, 48
      %v3748 = vpop.permute.xlu0 %3747
      %3749 = vrot.lane.b32.xlu0 %v3677, 48
      %v3750 = vpop.permute.xlu0 %3749
      %3751 = vrot.lane.b32.xlu0 %v3678, 48
      %v3752 = vpop.permute.xlu0 %3751
      %3763 = vrot.lane.b32.xlu0 %v3679, 64
      %v3764 = vpop.permute.xlu0 %3763
      %3765 = vrot.lane.b32.xlu0 %v3680, 64
      %v3766 = vpop.permute.xlu0 %3765
      %3767 = vrot.lane.b32.xlu0 %v3681, 64
      %v3768 = vpop.permute.xlu0 %3767
      %3769 = vrot.lane.b32.xlu0 %v3682, 64
      %v3770 = vpop.permute.xlu0 %3769
      %3771 = vrot.lane.b32.xlu0 %v3683, 64
      %v3772 = vpop.permute.xlu0 %3771
      %3783 = vrot.lane.b32.xlu0 %v3660, 80
      %v3784 = vpop.permute.xlu0 %3783
      %3785 = vrot.lane.b32.xlu0 %v3661, 80
      %v3786 = vpop.permute.xlu0 %3785
      %3787 = vrot.lane.b32.xlu0 %v3662, 80
      %v3788 = vpop.permute.xlu0 %3787
      %3789 = vrot.lane.b32.xlu0 %v3684, 80
      %v3790 = vpop.permute.xlu0 %3789
      %3791 = vrot.lane.b32.xlu0 %v3685, 80
      %v3792 = vpop.permute.xlu0 %3791
      %3803 = vrot.lane.b32.xlu0 %v3686, 96
      %v3804 = vpop.permute.xlu0 %3803
      %3805 = vrot.lane.b32.xlu0 %v3687, 96
      %v3806 = vpop.permute.xlu0 %3805
      %3807 = vrot.lane.b32.xlu0 %v3688, 96
      %v3808 = vpop.permute.xlu0 %3807
      %3809 = vrot.lane.b32.xlu0 %v3689, 96
      %v3810 = vpop.permute.xlu0 %3809
      %3811 = vrot.lane.b32.xlu0 %v3690, 96
      %v3812 = vpop.permute.xlu0 %3811
      %3823 = vrot.lane.b32.xlu0 %v3691, 112
      %v3824 = vpop.permute.xlu0 %3823
      %3825 = vrot.lane.b32.xlu0 %v3692, 112
      %v3826 = vpop.permute.xlu0 %3825
      %3827 = vrot.lane.b32.xlu0 %v3693, 112
      %v3828 = vpop.permute.xlu0 %3827
      %3829 = vrot.lane.b32.xlu0 %v3694, 112
      %v3830 = vpop.permute.xlu0 %3829
      %3831 = vrot.lane.b32.xlu0 %v3695, 112
      %v3832 = vpop.permute.xlu0 %3831
      %v3838 = vsel %vm2093, %v3659, %v3704
      %v3839 = vsel %vm2093, %v3660, %v3706
      %v3840 = vsel %vm2093, %v3661, %v3708
      %v3841 = vsel %vm2093, %v3662, %v3710
      %v3842 = vsel %vm2093, %v3663, %v3712
      %v3843 = vsel %vm2261, %v3838, %v3724
      %v3844 = vsel %vm2261, %v3839, %v3726
      %v3845 = vsel %vm2261, %v3840, %v3728
      %v3846 = vsel %vm2261, %v3841, %v3730
      %v3847 = vsel %vm2261, %v3842, %v3732
      %v3848 = vsel %vm3370, %v3843, %v3744
      %v3849 = vsel %vm3370, %v3844, %v3746
      %v3850 = vsel %vm3370, %v3845, %v3748
      %v3851 = vsel %vm3370, %v3846, %v3750
      %v3852 = vsel %vm3370, %v3847, %v3752
      %v3853 = vsel %vm3398, %v3848, %v3764
      %v3854 = vsel %vm3398, %v3849, %v3766
      %v3855 = vsel %vm3398, %v3850, %v3768
      %v3856 = vsel %vm3398, %v3851, %v3770
      %v3857 = vsel %vm3398, %v3852, %v3772
      %vm3858 = vcmask 654336
      %v3859 = vsel %vm3858, %v3853, %v3784
      %v3860 = vsel %vm3858, %v3854, %v3786
      %v3861 = vsel %vm3858, %v3855, %v3788
      %v3862 = vsel %vm3858, %v3856, %v3790
      %v3863 = vsel %vm3858, %v3857, %v3792
      %vm3864 = vcmask 785408
      %v3865 = vsel %vm3864, %v3859, %v3804
      %v3866 = vsel %vm3864, %v3860, %v3806
      %v3867 = vsel %vm3864, %v3861, %v3808
      %v3868 = vsel %vm3864, %v3862, %v3810
      %v3869 = vsel %vm3864, %v3863, %v3812
      %vm3870 = vcmask 916480
      %v3871 = vsel %vm3870, %v3865, %v3824
      %v3872 = vsel %vm3870, %v3866, %v3826
      %v3873 = vsel %vm3870, %v3867, %v3828
      %v3874 = vsel %vm3870, %v3868, %v3830
      %v3875 = vsel %vm3870, %v3869, %v3832
      %v3876 = vpack.c.bf16 %v3872, %v3871
      %v3877 = vpack.c.bf16 %v3676, %v3675
      %v3878 = vpack.c.bf16 %v3874, %v3873
      %v3879 = vpack.c.bf16 %v3696, %v3677
      %v3880 = vpack.c.bf16 %v3875, %v3875
      %v3881 = vpack.c.bf16 %v3697, %v3697
      %v3882 = vld [vmem:[%s5] sm:$0xf]
      %v3883 = vld [vmem:[%s5 + $0x4] sm:$0xf]
      %v3884 = vld [vmem:[%s5 + $0x8] sm:$0xf]
      %v3885 = vld [vmem:[%s5 + $0xc] sm:$0xf]
      %v3886 = vld [vmem:[%s5 + $0x10] sm:$0xf]
      %v3887 = vld [vmem:[%s5 + $0x14] sm:$0xf]
      %v3888 = vld [vmem:[%s5 + $0x18] sm:$0xf]
      %v3889 = vld [vmem:[%s5 + $0x1c] sm:$0xf]
      %v3890 = vld [vmem:[%s5 + $0x20] sm:$0xf]
      %v3891 = vld [vmem:[%s5 + $0x24] sm:$0xf]
      %v3892 = vld [vmem:[%s5 + $0x28] sm:$0xf]
      %v3893 = vld [vmem:[%s5 + $0x2c] sm:$0xf]
      %v3894 = vld [vmem:[%s5 + $0x30] sm:$0xf]
      %v3895 = vld [vmem:[%s5 + $0x34] sm:$0xf]
      %v3896 = vld [vmem:[%s5 + $0x38] sm:$0xf]
      %v3897 = vld [vmem:[%s5 + $0x3c] sm:$0xf]
      %v3898 = vld [vmem:[%s5 + $0x40] sm:$0xf]
      %v3899 = vld [vmem:[%s5 + $0x44] sm:$0xf]
      %v3900 = vld [vmem:[%s6] sm:$0x1]
      %v3902 = vlaneseq
      %v3903 = vshrl.u32 %v3902, 7
      %v3904 = vsub.s32 0, %v3903
      %v3905 = vrot.slane %v3900, %v3904
      %v3925 = vunpack.c.l.b16 %v3882
      %v3926 = vunpack.c.l.b16 %v3883
      %v3927 = vunpack.c.l.b16 %v3884
      %v3928 = vunpack.c.l.b16 %v3885
      %v3929 = vunpack.c.l.b16 %v3886
      %v3930 = vunpack.c.l.b16 %v3887
      %v3931 = vunpack.c.l.b16 %v3888
      %v3932 = vunpack.c.l.b16 %v3889
      %v3933 = vunpack.c.l.b16 %v3890
      %v3934 = vunpack.c.l.b16 %v3891
      %v3935 = vunpack.c.l.b16 %v3892
      %v3936 = vunpack.c.l.b16 %v3893
      %v3937 = vunpack.c.l.b16 %v3894
      %v3938 = vunpack.c.l.b16 %v3895
      %v3939 = vunpack.c.l.b16 %v3896
      %v3940 = vunpack.c.l.b16 %v3897
      %v3941 = vunpack.c.l.b16 %v3898
      %v3942 = vunpack.c.l.b16 %v3899
      %v3943 = vpack.c.b16 %v3926, %v3925
      %v3944 = vpack.c.b16 %v3928, %v3927
      %v3945 = vpack.c.b16 %v3930, %v3929
      %v3946 = vpack.c.b16 %v3932, %v3931
      %v3947 = vpack.c.b16 %v3934, %v3933
      %v3948 = vpack.c.b16 %v3936, %v3935
      %v3949 = vpack.c.b16 %v3938, %v3937
      %v3950 = vpack.c.b16 %v3940, %v3939
      %v3951 = vpack.c.b16 %v3942, %v3941
      %v3962 = vsel %vm2093, %v3877, 0
      %v3965 = vsel %vm2093, %v3879, 0
      %v3968 = vsel %vm2093, %v3881, 0
      %3970 = vmatprep.subr.bf16.mxu0 0
      %3971 = vmatpush1.bf16.msra.mxu0 %v3943
      %3972 = vmatprep.subr.bf16.mxu0 0
      %3973 = vmatpush1.bf16.msra.mxu0 %v3944
      %3974 = vmatprep.subr.bf16.mxu0 0
      %3975 = vmatpush1.bf16.msra.mxu0 %v3945
      %3976 = vmatprep.subr.bf16.mxu0 0
      %3977 = vmatpush1.bf16.msra.mxu0 %v3946
      %3978 = vmatprep.subr.bf16.mxu0 0
      %3979 = vmatpush1.bf16.msra.mxu0 %v3947
      %3980 = vmatprep.subr.bf16.mxu0 0
      %3981 = vmatpush1.bf16.msra.mxu0 %v3948
      %3982 = vmatprep.subr.bf16.mxu0 0
      %3983 = vmatpush1.bf16.msra.mxu0 %v3949
      %3984 = vmatprep.subr.bf16.mxu0 0
      %3985 = vmatpush1.bf16.msra.mxu0 %v3950
      %3986 = vmatprep.subr.bf16.mxu0 0
      %3987 = vmatpush1.bf16.msra.mxu0 %v3951
      %3988 = vmatprep.subr.bf16.mxu0 0
      %3989 = vmatpush1.bf16.msra.mxu0 0
      %3990 = vmatprep.subr.bf16.mxu0 0
      %3991 = vmatpush1.bf16.msra.mxu0 0
      %3992 = vmatprep.subr.bf16.mxu0 0
      %3993 = vmatpush1.bf16.msra.mxu0 0
      %3994 = vmatprep.subr.bf16.mxu0 0
      %3995 = vmatpush1.bf16.msra.mxu0 0
      %3996 = vmatprep.subr.bf16.mxu0 0
      %3997 = vmatpush1.bf16.msra.mxu0 0
      %3998 = vmatprep.subr.bf16.mxu0 0
      %3999 = vmatpush1.bf16.msra.mxu0 0
      %4000 = vmatprep.subr.bf16.mxu0 0
      %4001 = vmatpush1.bf16.msra.mxu0 0
      %4002 = vmatprep.mubr.bf16.mxu0 %v3962
      %4003 = vmatmul.mubr.bf16.gmra.mrb[0].mxu0 %v3876
      %v4004 = vpop.f32.mrb[0].mxu0
      %v4005 = vadd.f32 %v3905, %v4004
      %v4006 = vpop.f32.mrb[0].mxu0
      %v4007 = vpop.f32.mrb[0].mxu0
      %v4008 = vadd.f32 %v3905, %v4007
      %v4009 = vpop.f32.mrb[0].mxu0
      %4010 = vmatprep.mubr.bf16.mxu0 %v3965
      %4011 = vmatmul.mubr.bf16.gmra.mrb[0].mxu0 %v3878
      %v4012 = vpop.f32.mrb[0].mxu0
      %v4013 = vadd.f32 %v3905, %v4012
      %v4014 = vpop.f32.mrb[0].mxu0
      %v4015 = vpop.f32.mrb[0].mxu0
      %v4016 = vadd.f32 %v3905, %v4015
      %v4017 = vpop.f32.mrb[0].mxu0
      %4018 = vmatprep.mubr.bf16.mxu0 %v3968
      %4019 = vmatmul.mubr.bf16.gmra.mrb[0].mxu0 %v3880
      %v4020 = vpop.f32.mrb[0].mxu0
      %v4021 = vadd.f32 %v3905, %v4020
      %v4022 = vpop.f32.mrb[0].mxu0
      %v4023 = vpop.f32.mrb[0].mxu0
      %v4024 = vpop.f32.mrb[0].mxu0
      %4025 = vdwg.mxu0
      %v4026 = vmax.f32 %v4005, 0.0
      %v4027 = vmax.f32 %v4008, 0.0
      %v4028 = vmax.f32 %v4013, 0.0
      %v4029 = vmax.f32 %v4016, 0.0
      %v4030 = vmax.f32 %v4021, 0.0
      %4031 = vst.msk [vmem:[#allocation7] sm:$0xff] %vm2261, %v4026
      %4032 = vst.msk [vmem:[#allocation7 + $0x8] sm:$0xff] %vm2261, %v4027
      %4033 = vst.msk [vmem:[#allocation7 + $0x10] sm:$0xff] %vm2261, %v4028
      %4034 = vst.msk [vmem:[#allocation7 + $0x18] sm:$0xff] %vm2261, %v4029
      %vm4035 = vcmask 257024
      %4036 = vst.msk [vmem:[#allocation7 + $0x20] sm:$0xf] %vm4035, %v4030
      %4037 = vst.msk [vmem:[#allocation4] sm:$0xff] %vm2261, 0.0
      %4038 = vst.msk [vmem:[#allocation4 + $0x8] sm:$0xff] %vm2261, 0.0
      %4039 = vst.msk [vmem:[#allocation4 + $0x10] sm:$0xff] %vm2261, 0.0
      %vm4040 = vcmask 254976
      %4041 = vst.msk [vmem:[#allocation4 + $0x18] sm:$0x3] %vm4040, 0.0
      %s4042 = scalar_lea.vmem [#allocation7], 7
      %v4043 = vld [vmem:[%s4042] ss:$2 sm:$0x3]
      %s4044 = scalar_lea.vmem [#allocation7], 8
      %v4045 = vld [vmem:[%s4044] ss:$2 sm:$0x3]
      %v4046 = vmax.f32 %v4043, %v4045
      %s4047 = scalar_lea.vmem [#allocation7], 13
      %v4048 = vld [vmem:[%s4047] ss:$2 sm:$0x3]
      %s4049 = scalar_lea.vmem [#allocation7], 14
      %v4050 = vld [vmem:[%s4049] ss:$2 sm:$0x3]
      %v4051 = vmax.f32 %v4048, %v4050
      %v4052 = vmax.f32 %v4046, %v4051
      %4053 = vst.msk [vmem:[#allocation4 + $0xa] sm:$0x3] %vm4040, %v4052
      %s4054 = scalar_lea.vmem [#allocation7], 19
      %v4055 = vld [vmem:[%s4054] ss:$2 sm:$0x3]
      %s4056 = scalar_lea.vmem [#allocation7], 20
      %v4057 = vld [vmem:[%s4056] ss:$2 sm:$0x3]
      %v4058 = vmax.f32 %v4055, %v4057
      %s4059 = scalar_lea.vmem [#allocation7], 25
      %v4060 = vld [vmem:[%s4059] ss:$2 sm:$0x3]
      %s4061 = scalar_lea.vmem [#allocation7], 26
      %v4062 = vld [vmem:[%s4061] ss:$2 sm:$0x3]
      %v4063 = vmax.f32 %v4060, %v4062
      %v4064 = vmax.f32 %v4058, %v4063
      %4065 = vst.msk [vmem:[#allocation4 + $0xe] sm:$0x3] %vm4040, %v4064
      %v4066 = vld [vmem:[#allocation4] sm:$0xff]
      %v4067 = vld [vmem:[#allocation4 + $0x8] sm:$0xff]
      %v4068 = vld [vmem:[#allocation4 + $0x1] sm:$0xff]
      %v4069 = vld [vmem:[#allocation4 + $0x9] sm:$0xff]
      %v4070 = vld [vmem:[#allocation4 + $0x2] sm:$0xff]
      %v4071 = vld [vmem:[#allocation4 + $0xa] sm:$0xff]
      %v4072 = vld [vmem:[#allocation4 + $0x4] sm:$0xff]
      %v4073 = vld [vmem:[#allocation4 + $0xc] sm:$0xff]
      %v4074 = vld [vmem:[#allocation4 + $0x5] sm:$0xff]
      %v4075 = vld [vmem:[#allocation4 + $0xd] sm:$0xff]
      %v4076 = vld [vmem:[#allocation4 + $0x6] sm:$0xff]
      %v4077 = vld [vmem:[#allocation4 + $0xe] sm:$0xff]
      %v4078 = vld [vmem:[#allocation4 + $0x10] sm:$0xff]
      %v4079 = vld [vmem:[#allocation4 + $0x11] sm:$0xff]
      %v4080 = vld [vmem:[#allocation4 + $0x12] sm:$0xff]
      %4083 = vrot.lane.b32.xlu0 %v4068, 32
      %v4084 = vpop.permute.xlu0 %4083
      %4085 = vrot.lane.b32.xlu0 %v4069, 32
      %v4086 = vpop.permute.xlu0 %4085
      %4091 = vrot.lane.b32.xlu0 %v4070, 64
      %v4092 = vpop.permute.xlu0 %4091
      %4093 = vrot.lane.b32.xlu0 %v4071, 64
      %v4094 = vpop.permute.xlu0 %4093
      %4099 = vrot.lane.b32.xlu0 %v4072, 96
      %v4100 = vpop.permute.xlu0 %4099
      %4101 = vrot.lane.b32.xlu0 %v4073, 96
      %v4102 = vpop.permute.xlu0 %4101
      %4107 = vrot.lane.b32.xlu0 %v4076, 32
      %v4108 = vpop.permute.xlu0 %4107
      %4109 = vrot.lane.b32.xlu0 %v4077, 32
      %v4110 = vpop.permute.xlu0 %4109
      %4115 = vrot.lane.b32.xlu0 %v4067, 64
      %v4116 = vpop.permute.xlu0 %4115
      %4117 = vrot.lane.b32.xlu0 %v4078, 64
      %v4118 = vpop.permute.xlu0 %4117
      %4122 = vrot.lane.b32.xlu0 %v4069, 96
      %v4123 = vpop.permute.xlu0 %4122
      %4124 = vrot.lane.b32.xlu0 %v4079, 96
      %v4125 = vpop.permute.xlu0 %4124
      %v4128 = vsel %vm2261, %v4066, %v4084
      %v4129 = vsel %vm2261, %v4067, %v4086
      %v4130 = vsel %vm3398, %v4128, %v4092
      %v4131 = vsel %vm3398, %v4129, %v4094
      %v4132 = vsel %vm3864, %v4130, %v4100
      %v4133 = vsel %vm3864, %v4131, %v4102
      %v4134 = vsel %vm2261, %v4074, %v4108
      %v4135 = vsel %vm2261, %v4075, %v4110
      %v4136 = vsel %vm3398, %v4134, %v4116
      %v4137 = vsel %vm3398, %v4135, %v4118
      %v4138 = vsel %vm3864, %v4136, %v4123
      %v4139 = vsel %vm3864, %v4137, %v4125
      %v4140 = vpack.c.bf16 %v4133, %v4132
      %v4141 = vpack.c.bf16 %v4139, %v4138
      %v4142 = vpack.c.bf16 %v4080, %v4071
      %v4143 = vld [vmem:[%s7] sm:$0xf]
      %v4144 = vld [vmem:[%s7 + $0x4] sm:$0xf]
      %v4145 = vld [vmem:[%s7 + $0x8] sm:$0xf]
      %v4146 = vld [vmem:[%s7 + $0xc] sm:$0xf]
      %v4147 = vld [vmem:[%s7 + $0x10] sm:$0xf]
      %v4148 = vld [vmem:[%s7 + $0x14] sm:$0xf]
      %v4149 = vld [vmem:[%s7 + $0x18] sm:$0xf]
      %v4150 = vld [vmem:[%s7 + $0x1c] sm:$0xf]
      %v4151 = vld [vmem:[%s7 + $0x20] sm:$0xf]
      %v4152 = vld [vmem:[%s7 + $0x24] sm:$0xf]
      %v4153 = vld [vmem:[%s7 + $0x28] sm:$0xf]
      %v4154 = vld [vmem:[%s7 + $0x2c] sm:$0xf]
      %v4155 = vld [vmem:[%s7 + $0x30] sm:$0xf]
      %v4156 = vld [vmem:[%s7 + $0x34] sm:$0xf]
      %v4157 = vld [vmem:[%s7 + $0x38] sm:$0xf]
      %v4158 = vld [vmem:[%s7 + $0x3c] sm:$0xf]
      %v4159 = vld [vmem:[%s7 + $0x40] sm:$0xf]
      %v4160 = vld [vmem:[%s7 + $0x44] sm:$0xf]
      %v4161 = vld [vmem:[%s7 + $0x48] sm:$0xf]
      %v4162 = vld [vmem:[%s7 + $0x4c] sm:$0xf]
      %v4163 = vld [vmem:[%s7 + $0x50] sm:$0xf]
      %v4164 = vld [vmem:[%s7 + $0x54] sm:$0xf]
      %v4165 = vld [vmem:[%s7 + $0x58] sm:$0xf]
      %v4166 = vld [vmem:[%s7 + $0x5c] sm:$0xf]
      %v4167 = vld [vmem:[%s7 + $0x60] sm:$0xf]
      %v4168 = vld [vmem:[%s7 + $0x64] sm:$0xf]
      %v4169 = vld [vmem:[%s7 + $0x68] sm:$0xf]
      %v4170 = vld [vmem:[%s7 + $0x6c] sm:$0xf]
      %v4171 = vld [vmem:[%s7 + $0x70] sm:$0xf]
      %v4172 = vld [vmem:[%s7 + $0x74] sm:$0xf]
      %v4173 = vld [vmem:[%s7 + $0x78] sm:$0xf]
      %v4174 = vld [vmem:[%s7 + $0x7c] sm:$0xf]
      %v4175 = vld [vmem:[%s7 + $0x80] sm:$0xf]
      %v4176 = vld [vmem:[%s7 + $0x84] sm:$0xf]
      %v4177 = vld [vmem:[%s7 + $0x88] sm:$0xf]
      %v4178 = vld [vmem:[%s7 + $0x8c] sm:$0xf]
      %v4179 = vld [vmem:[%s8] sm:$0x1]
      %v4181 = vlaneseq
      %v4182 = vshrl.u32 %v4181, 7
      %v4183 = vsub.s32 0, %v4182
      %v4184 = vrot.slane %v4179, %v4183
      %v4222 = vunpack.c.l.b16 %v4143
      %v4223 = vunpack.c.l.b16 %v4144
      %v4224 = vunpack.c.l.b16 %v4145
      %v4225 = vunpack.c.l.b16 %v4146
      %v4226 = vunpack.c.l.b16 %v4147
      %v4227 = vunpack.c.l.b16 %v4148
      %v4228 = vunpack.c.l.b16 %v4149
      %v4229 = vunpack.c.l.b16 %v4150
      %v4230 = vunpack.c.l.b16 %v4151
      %v4231 = vunpack.c.l.b16 %v4152
      %v4232 = vunpack.c.l.b16 %v4153
      %v4233 = vunpack.c.l.b16 %v4154
      %v4234 = vunpack.c.l.b16 %v4155
      %v4235 = vunpack.c.l.b16 %v4156
      %v4236 = vunpack.c.l.b16 %v4157
      %v4237 = vunpack.c.l.b16 %v4158
      %v4238 = vunpack.c.l.b16 %v4159
      %v4239 = vunpack.c.l.b16 %v4160
      %v4240 = vunpack.c.l.b16 %v4161
      %v4241 = vunpack.c.l.b16 %v4162
      %v4242 = vunpack.c.l.b16 %v4163
      %v4243 = vunpack.c.l.b16 %v4164
      %v4244 = vunpack.c.l.b16 %v4165
      %v4245 = vunpack.c.l.b16 %v4166
      %v4246 = vunpack.c.l.b16 %v4167
      %v4247 = vunpack.c.l.b16 %v4168
      %v4248 = vunpack.c.l.b16 %v4169
      %v4249 = vunpack.c.l.b16 %v4170
      %v4250 = vunpack.c.l.b16 %v4171
      %v4251 = vunpack.c.l.b16 %v4172
      %v4252 = vunpack.c.l.b16 %v4173
      %v4253 = vunpack.c.l.b16 %v4174
      %v4254 = vunpack.c.l.b16 %v4175
      %v4255 = vunpack.c.l.b16 %v4176
      %v4256 = vunpack.c.l.b16 %v4177
      %v4257 = vunpack.c.l.b16 %v4178
      %v4258 = vpack.c.b16 %v4223, %v4222
      %v4259 = vpack.c.b16 %v4225, %v4224
      %v4260 = vpack.c.b16 %v4227, %v4226
      %v4261 = vpack.c.b16 %v4229, %v4228
      %v4262 = vpack.c.b16 %v4231, %v4230
      %v4263 = vpack.c.b16 %v4233, %v4232
      %v4264 = vpack.c.b16 %v4235, %v4234
      %v4265 = vpack.c.b16 %v4237, %v4236
      %v4266 = vpack.c.b16 %v4239, %v4238
      %v4267 = vpack.c.b16 %v4241, %v4240
      %v4268 = vpack.c.b16 %v4243, %v4242
      %v4269 = vpack.c.b16 %v4245, %v4244
      %v4270 = vpack.c.b16 %v4247, %v4246
      %v4271 = vpack.c.b16 %v4249, %v4248
      %v4272 = vpack.c.b16 %v4251, %v4250
      %v4273 = vpack.c.b16 %v4253, %v4252
      %v4274 = vpack.c.b16 %v4255, %v4254
      %v4275 = vpack.c.b16 %v4257, %v4256
      %v4295 = vsel %vm2261, %v4142, 0
      %4297 = vmatprep.subr.bf16.mxu0 0
      %4298 = vmatpush1.bf16.msra.mxu0 %v4258
      %4299 = vmatprep.subr.bf16.mxu0 0
      %4300 = vmatpush1.bf16.msra.mxu0 %v4259
      %4301 = vmatprep.subr.bf16.mxu0 0
      %4302 = vmatpush1.bf16.msra.mxu0 %v4260
      %4303 = vmatprep.subr.bf16.mxu0 0
      %4304 = vmatpush1.bf16.msra.mxu0 %v4261
      %4305 = vmatprep.subr.bf16.mxu0 0
      %4306 = vmatpush1.bf16.msra.mxu0 %v4262
      %4307 = vmatprep.subr.bf16.mxu0 0
      %4308 = vmatpush1.bf16.msra.mxu0 %v4263
      %4309 = vmatprep.subr.bf16.mxu0 0
      %4310 = vmatpush1.bf16.msra.mxu0 %v4264
      %4311 = vmatprep.subr.bf16.mxu0 0
      %4312 = vmatpush1.bf16.msra.mxu0 %v4265
      %4313 = vmatprep.subr.bf16.mxu0 0
      %4314 = vmatpush1.bf16.msra.mxu0 %v4266
      %4315 = vmatprep.subr.bf16.mxu0 0
      %4316 = vmatpush1.bf16.msra.mxu0 %v4267
      %4317 = vmatprep.subr.bf16.mxu0 0
      %4318 = vmatpush1.bf16.msra.mxu0 %v4268
      %4319 = vmatprep.subr.bf16.mxu0 0
      %4320 = vmatpush1.bf16.msra.mxu0 %v4269
      %4321 = vmatprep.subr.bf16.mxu0 0
      %4322 = vmatpush1.bf16.msra.mxu0 %v4270
      %4323 = vmatprep.subr.bf16.mxu0 0
      %4324 = vmatpush1.bf16.msra.mxu0 %v4271
      %4325 = vmatprep.subr.bf16.mxu0 0
      %4326 = vmatpush1.bf16.msra.mxu0 %v4272
      %4327 = vmatprep.subr.bf16.mxu0 0
      %4328 = vmatpush1.bf16.msra.mxu0 %v4273
      %4329 = vmatprep.mubr.bf16.mxu0 %v4141
      %4330 = vmatmul.mubr.bf16.gmra.mrb[0].mxu0 %v4140
      %v4331 = vpop.f32.mrb[0].mxu0
      %v4332 = vadd.f32 %v4184, %v4331
      %v4333 = vpop.f32.mrb[0].mxu0
      %v4334 = vpop.f32.mrb[0].mxu0
      %v4335 = vadd.f32 %v4184, %v4334
      %v4336 = vpop.f32.mrb[0].mxu0
      %4337 = vdwg.mxu0
      %4338 = vmatprep.subr.bf16.mxu0 0
      %4339 = vmatpush1.bf16.msra.mxu0 %v4274
      %4340 = vmatprep.subr.bf16.mxu0 0
      %4341 = vmatpush1.bf16.msra.mxu0 %v4275
      %4342 = vmatprep.subr.bf16.mxu0 0
      %4343 = vmatpush1.bf16.msra.mxu0 0
      %4344 = vmatprep.subr.bf16.mxu0 0
      %4345 = vmatpush1.bf16.msra.mxu0 0
      %4346 = vmatprep.subr.bf16.mxu0 0
      %4347 = vmatpush1.bf16.msra.mxu0 0
      %4348 = vmatprep.subr.bf16.mxu0 0
      %4349 = vmatpush1.bf16.msra.mxu0 0
      %4350 = vmatprep.subr.bf16.mxu0 0
      %4351 = vmatpush1.bf16.msra.mxu0 0
      %4352 = vmatprep.subr.bf16.mxu0 0
      %4353 = vmatpush1.bf16.msra.mxu0 0
      %4354 = vmatprep.subr.bf16.mxu0 0
      %4355 = vmatpush1.bf16.msra.mxu0 0
      %4356 = vmatprep.subr.bf16.mxu0 0
      %4357 = vmatpush1.bf16.msra.mxu0 0
      %4358 = vmatprep.subr.bf16.mxu0 0
      %4359 = vmatpush1.bf16.msra.mxu0 0
      %4360 = vmatprep.subr.bf16.mxu0 0
      %4361 = vmatpush1.bf16.msra.mxu0 0
      %4362 = vmatprep.subr.bf16.mxu0 0
      %4363 = vmatpush1.bf16.msra.mxu0 0
      %4364 = vmatprep.subr.bf16.mxu0 0
      %4365 = vmatpush1.bf16.msra.mxu0 0
      %4366 = vmatprep.subr.bf16.mxu0 0
      %4367 = vmatpush1.bf16.msra.mxu0 0
      %4368 = vmatprep.subr.bf16.mxu0 0
      %4369 = vmatpush1.bf16.msra.mxu0 0
      %4370 = vmatprep.mubr.bf16.mxu0 0
      %4371 = vmatmul.mubr.bf16.gmra.mrb[0].mxu0 %v4295
      %v4372 = vpop.f32.mrb[0].mxu0
      %v4373 = vadd.f32 %v4332, %v4372
      %v4374 = vpop.f32.mrb[0].mxu0
      %v4375 = vpop.f32.mrb[0].mxu0
      %v4376 = vadd.f32 %v4335, %v4375
      %v4377 = vpop.f32.mrb[0].mxu0
      %4378 = vdwg.mxu0
      %v4379 = vmax.f32 %v4373, 0.0
      %v4380 = vmax.f32 %v4376, 0.0
      %4381 = vst.msk [vmem:[#allocation8] sm:$0xff] %vm3398, %v4379
      %4382 = vst.msk [vmem:[#allocation8 + $0x8] sm:$0xff] %vm3398, %v4380
      %v4383 = vld [vmem:[#allocation8 + $0x5] sm:$0x1]
      %v4384 = vld [vmem:[#allocation8 + $0x6] sm:$0x1]
      %v4385 = vmax.f32 %v4383, %v4384
      %v4386 = vld [vmem:[#allocation8 + $0x9] sm:$0x1]
      %v4387 = vld [vmem:[#allocation8 + $0xa] sm:$0x1]
      %v4388 = vmax.f32 %v4386, %v4387
      %v4389 = vmax.f32 %v4385, %v4388
      %v4390 = vpack.c.bf16 %v4389, %v4389
      %v4391 = vld [vmem:[%s9] sm:$0xf]
      %v4392 = vld [vmem:[%s9 + $0x4] sm:$0xf]
      %v4393 = vld [vmem:[%s9 + $0x8] sm:$0xf]
      %v4394 = vld [vmem:[%s9 + $0xc] sm:$0xf]
      %v4395 = vld [vmem:[%s9 + $0x10] sm:$0xf]
      %v4396 = vld [vmem:[%s9 + $0x14] sm:$0xf]
      %v4397 = vld [vmem:[%s9 + $0x18] sm:$0xf]
      %v4398 = vld [vmem:[%s9 + $0x1c] sm:$0xf]
      %v4399 = vld [vmem:[%s10] sm:$0x1]
      %v4408 = vunpack.c.l.b16 %v4391
      %v4409 = vunpack.c.l.b16 %v4392
      %v4410 = vunpack.c.l.b16 %v4393
      %v4411 = vunpack.c.l.b16 %v4394
      %v4412 = vunpack.c.l.b16 %v4395
      %v4413 = vunpack.c.l.b16 %v4396
      %v4414 = vunpack.c.l.b16 %v4397
      %v4415 = vunpack.c.l.b16 %v4398
      %v4416 = vpack.c.b16 %v4409, %v4408
      %v4417 = vpack.c.b16 %v4411, %v4410
      %v4418 = vpack.c.b16 %v4413, %v4412
      %v4419 = vpack.c.b16 %v4415, %v4414
      %v4425 = vsel %vm3398, %v4390, 0
      %4427 = vmatprep.subr.bf16.mxu0 0
      %4428 = vmatpush1.bf16.msra.mxu0 %v4416
      %4429 = vmatprep.subr.bf16.mxu0 0
      %4430 = vmatpush1.bf16.msra.mxu0 %v4417
      %4431 = vmatprep.subr.bf16.mxu0 0
      %4432 = vmatpush1.bf16.msra.mxu0 %v4418
      %4433 = vmatprep.subr.bf16.mxu0 0
      %4434 = vmatpush1.bf16.msra.mxu0 %v4419
      %4435 = vmatprep.subr.bf16.mxu0 0
      %4436 = vmatpush1.bf16.msra.mxu0 0
      %4437 = vmatprep.subr.bf16.mxu0 0
      %4438 = vmatpush1.bf16.msra.mxu0 0
      %4439 = vmatprep.subr.bf16.mxu0 0
      %4440 = vmatpush1.bf16.msra.mxu0 0
      %4441 = vmatprep.subr.bf16.mxu0 0
      %4442 = vmatpush1.bf16.msra.mxu0 0
      %4443 = vmatprep.subr.bf16.mxu0 0
      %4444 = vmatpush1.bf16.msra.mxu0 0
      %4445 = vmatprep.subr.bf16.mxu0 0
      %4446 = vmatpush1.bf16.msra.mxu0 0
      %4447 = vmatprep.subr.bf16.mxu0 0
      %4448 = vmatpush1.bf16.msra.mxu0 0
      %4449 = vmatprep.subr.bf16.mxu0 0
      %4450 = vmatpush1.bf16.msra.mxu0 0
      %4451 = vmatprep.subr.bf16.mxu0 0
      %4452 = vmatpush1.bf16.msra.mxu0 0
      %4453 = vmatprep.subr.bf16.mxu0 0
      %4454 = vmatpush1.bf16.msra.mxu0 0
      %4455 = vmatprep.subr.bf16.mxu0 0
      %4456 = vmatpush1.bf16.msra.mxu0 0
      %4457 = vmatprep.subr.bf16.mxu0 0
      %4458 = vmatpush1.bf16.msra.mxu0 0
      %4459 = vmatprep.mubr.bf16.mxu0 0
      %4460 = vmatmul.mubr.bf16.gmra.mrb[0].mxu0 %v4425
      %v4461 = vpop.f32.mrb[0].mxu0
      %v4462 = vadd.f32 %v4399, %v4461
      %v4463 = vpop.f32.mrb[0].mxu0
      %v4464 = vpop.f32.mrb[0].mxu0
      %v4465 = vpop.f32.mrb[0].mxu0
      %4466 = vdwg.mxu0
      %v4467 = vmax.f32 %v4462, 0.0
      %v4468 = vpack.c.bf16 %v4467, %v4467
      %v4469 = vld [vmem:[%s11] sm:$0xf]
      %v4470 = vld [vmem:[%s11 + $0x4] sm:$0xf]
      %v4471 = vld [vmem:[%s11 + $0x8] sm:$0xf]
      %v4472 = vld [vmem:[%s11 + $0xc] sm:$0xf]
      %v4473 = vld [vmem:[%s12] sm:$0x1]
      %v4478 = vunpack.c.l.b16 %v4469
      %v4479 = vunpack.c.l.b16 %v4470
      %v4480 = vunpack.c.l.b16 %v4471
      %v4481 = vunpack.c.l.b16 %v4472
      %v4482 = vpack.c.b16 %v4479, %v4478
      %v4483 = vpack.c.b16 %v4481, %v4480
      %v4487 = vsel %vm2261, %v4468, 0
      %4489 = vmatprep.subr.bf16.mxu0 0
      %4490 = vmatpush1.bf16.msra.mxu0 %v4482
      %4491 = vmatprep.subr.bf16.mxu0 0
      %4492 = vmatpush1.bf16.msra.mxu0 %v4483
      %4493 = vmatprep.subr.bf16.mxu0 0
      %4494 = vmatpush1.bf16.msra.mxu0 0
      %4495 = vmatprep.subr.bf16.mxu0 0
      %4496 = vmatpush1.bf16.msra.mxu0 0
      %4497 = vmatprep.subr.bf16.mxu0 0
      %4498 = vmatpush1.bf16.msra.mxu0 0
      %4499 = vmatprep.subr.bf16.mxu0 0
      %4500 = vmatpush1.bf16.msra.mxu0 0
      %4501 = vmatprep.subr.bf16.mxu0 0
      %4502 = vmatpush1.bf16.msra.mxu0 0
      %4503 = vmatprep.subr.bf16.mxu0 0
      %4504 = vmatpush1.bf16.msra.mxu0 0
      %4505 = vmatprep.subr.bf16.mxu0 0
      %4506 = vmatpush1.bf16.msra.mxu0 0
      %4507 = vmatprep.subr.bf16.mxu0 0
      %4508 = vmatpush1.bf16.msra.mxu0 0
      %4509 = vmatprep.subr.bf16.mxu0 0
      %4510 = vmatpush1.bf16.msra.mxu0 0
      %4511 = vmatprep.subr.bf16.mxu0 0
      %4512 = vmatpush1.bf16.msra.mxu0 0
      %4513 = vmatprep.subr.bf16.mxu0 0
      %4514 = vmatpush1.bf16.msra.mxu0 0
      %4515 = vmatprep.subr.bf16.mxu0 0
      %4516 = vmatpush1.bf16.msra.mxu0 0
      %4517 = vmatprep.subr.bf16.mxu0 0
      %4518 = vmatpush1.bf16.msra.mxu0 0
      %4519 = vmatprep.subr.bf16.mxu0 0
      %4520 = vmatpush1.bf16.msra.mxu0 0
      %4521 = vmatprep.mubr.bf16.mxu0 0
      %4522 = vmatmul.mubr.bf16.gmra.mrb[0].mxu0 %v4487
      %v4523 = vpop.f32.mrb[0].mxu0
      %v4524 = vadd.f32 %v4473, %v4523
      %v4525 = vpop.f32.mrb[0].mxu0
      %v4526 = vpop.f32.mrb[0].mxu0
      %v4527 = vpop.f32.mrb[0].mxu0
      %4528 = vdwg.mxu0
      %v4529 = vlaneseq
      %v4530 = vand.u32 %v4529, 127
      %vm4531 = vcmp.lt.s32.totalorder %v4530, 5
      %v4532 = vsel %vm4531, %v4524, -1e+30
      %vm4533 = vcmask 1040384
      %v4534 = vsel %vm4533, %v4532, -inf
      %4535 = vmax.xlane.f32.xlu0 %v4534
      %v4536 = vpop.xlane.xlu0 %4535
      %v4537 = vsub.f32 %v4532, %v4536
      %v4538 = vmul.f32 %v4537, 1.442695
      %v4539 = vpow.pop %v4538
      %v4540 = vsel %vm4531, %v4539, 0.0
      %v4541 = vsel %vm4533, %v4540, 0.0
      %4542 = vadd.xlane.f32.xlu0 %v4541
      %v4543 = vpop.xlane.xlu0 %4542
      %v4544 = vrcp.pop %v4543
      %v4545 = vmul.f32 %v4540, %v4544
      %vm4546 = vcmp.eq.s32.totalorder %v4530, 5
      %v4547 = vsel %vm4546, %v4524, 0.0
      %v4548 = vadd.f32 %v4545, %v4547
      %4549 = vst [vmem:[%s436] sm:$0x1] %v4548
      %p4550 = scmp.lt.s32.totalorder %s24, 1
      %s4551 = scalar_select %p4550, %s24, 1
      %s4552 = scalar_lea.vmem %s13, %s4551
      // Predicated region
      $region73: #{forward.1} parent=71 // pred_check
        %p4553 = pneg %p320
      $region74: #{forward.1} parent=71 // pred_check_branch
        %4555 = sbr.rel (%p4553) target = $region76
      $region75: #{forward.1} parent=71 // pred_region
        _
      $region76: #{forward.1} parent=71 // pred_fallthru
        _
    $region72: #{forward.1} parent=5 // pred_fallthru
      _
    %p4556 = scmp.le.s32.totalorder 2, %s19
    // Predicated region
    $region77: #{forward.1} parent=5 // pred_check
      %p4557 = pneg %p4556
    $region78: #{forward.1} parent=5 // pred_check_branch
      %4559 = sbr.rel (%p4557) target = $region80
    $region79: #{forward.1} parent=5 // pred_region
      %s4560 = ssub.s32 %s19, 2
      // Predicated region
      $region81: #{forward.1} parent=79 // pred_check
        %p4561 = pneg %p326
      $region82: #{forward.1} parent=79 // pred_check_branch
        %4563 = sbr.rel (%p4561) target = $region84
      $region83: #{forward.1} parent=79 // pred_region
        %p4564 = scmp.lt.s32.totalorder %s25, 1
        %s4565 = scalar_select %p4564, %s25, 1
        %s4566 = scalar_lea.vmem %s13, %s4565
      $region84: #{forward.1} parent=79 // pred_fallthru
        _
    $region80: #{forward.1} parent=5 // pred_fallthru
      _
  $region6: #{forward.1} parent=0 // loop_footer
    %s23 = sadd.s32 1, %s19
  $region7: #{forward.1} parent=0 // loop_footer_branch
    %18 = sbr.rel target = $region3
  $region8: #{forward.1} parent=0 // loop_exit
    _

</llo_original>
